<compile_context>
chip_gen: v6e
topology: v6e:2x2x1
jax: 0.10.0
libtpu: 0.0.40
codegen_flags: <defaults>
</compile_context>

<pallas_src>
import jax
import jax.numpy as jnp
from jax import lax
from jax.experimental import pallas as pl
from jax.experimental.pallas import tpu as pltpu

HEADS = 8
DIM_HEAD = 64
INNER_DIM = HEADS * DIM_HEAD          # 512
SCALE = DIM_HEAD ** -0.5              # 0.125 (exact in bf16)


def san_kernel(x_ref, wqkv_ref, wout_ref, bout_ref, o_ref, w_sc, out_sc):
    # x_ref:    (1, N, dim)        one batch element (original dtype)
    # wqkv_ref: (dim, INNER_DIM)   bf16, pre-transposed qkv weight
    # wout_ref: (INNER_DIM, dim)   bf16, pre-transposed output-proj weight
    # bout_ref: (1, dim)           f32 bias of to_out
    # o_ref:    (1, TQ, dim)       output q-tile
    # w_sc:     (N, INNER_DIM)     bf16 VMEM scratch: shared w = qkv(x), persists
    #                              across the q-tile grid axis for a given batch
    # out_sc:   (TQ, INNER_DIM)    bf16 VMEM scratch: per-head attention outputs
    tq = o_ref.shape[1]
    q = pl.program_id(1)

    # Compute the shared projection once per batch element (q-tile axis is
    # "arbitrary", so for a fixed b the steps q=0..Q-1 run in order on one core
    # and the scratch carries across them).
    @pl.when(q == 0)
    def _():
        x = x_ref[0].astype(jnp.bfloat16)                       # (N, dim)
        w_full = jnp.dot(x, wqkv_ref[...],
                         preferred_element_type=jnp.float32)    # (N, 512) f32
        w_sc[...] = w_full.astype(jnp.bfloat16)

    row0 = pl.multiple_of(q * tq, tq)

    # Static loop over heads: every iteration reads slices of w_sc and writes a
    # 64-lane slab of out_sc, so nothing (besides refs) stays live across heads.
    for h in range(HEADS):
        c0 = h * DIM_HEAD
        # Fold the 1/sqrt(d) scale into the small (TQ, d) Q slice (exact in bf16).
        wq = w_sc[pl.ds(row0, tq), pl.ds(c0, DIM_HEAD)] * SCALE  # (TQ, d) bf16
        wk = w_sc[:, pl.ds(c0, DIM_HEAD)]                        # (N,  d) bf16

        # dots = (wq @ wk^T)  -> (TQ, N) f32
        dots = lax.dot_general(wq, wk, (((1,), (1,)), ((), ())),
                               preferred_element_type=jnp.float32)

        # Softmax with deferred normalization (f32 max / exp / sum).
        m = jnp.max(dots, axis=-1, keepdims=True)
        p = jnp.exp(dots - m)                                    # (TQ, N) f32
        l = jnp.sum(p, axis=-1, keepdims=True)                   # (TQ, 1) f32

        # out_h = (p @ wk) / l  — normalization applied to the (TQ, d) result.
        pv = jnp.dot(p.astype(jnp.bfloat16), wk,
                     preferred_element_type=jnp.float32)         # (TQ, d) f32
        out_h = pv * pl.reciprocal(l, approx=True)
        out_sc[:, pl.ds(c0, DIM_HEAD)] = out_h.astype(jnp.bfloat16)

    # Single fused output projection: (TQ, 512) @ (512, dim) + bias.
    y = jnp.dot(out_sc[...], wout_ref[...],
                preferred_element_type=jnp.float32)              # (TQ, dim) f32
    o_ref[0] = (y + bout_ref[...]).astype(o_ref.dtype)


def prepare_params(wqkv, wout, bout, compute_dtype=jnp.bfloat16):
    """One-time, load-time layout + dtype prep (do NOT call per forward).

    wqkv: (INNER_DIM, dim)  PyTorch Linear layout (out_features, in_features)
    wout: (dim, INNER_DIM)  PyTorch Linear layout
    bout: (dim,)
    """
    inner, dim = wqkv.shape
    assert inner == INNER_DIM and wout.shape == (dim, INNER_DIM)
    wqkv_p = jnp.asarray(wqkv).T.astype(compute_dtype)      # (dim, 512)
    wout_p = jnp.asarray(wout).T.astype(compute_dtype)      # (512, dim)
    bout_p = jnp.asarray(bout).reshape(1, dim).astype(jnp.float32)
    return wqkv_p, wout_p, bout_p


def san_forward(x, wqkv_p, wout_p, bout_p, *, tq=None):
    """x: (B, N, dim); wqkv_p/wout_p/bout_p from prepare_params."""
    B, N, dim = x.shape
    assert wqkv_p.shape == (dim, INNER_DIM)
    assert wout_p.shape == (INNER_DIM, dim)
    assert bout_p.shape == (1, dim)

    if tq is None:
        # >=2 q-tiles per batch element when the sequence allows it, so each
        # TensorCore gets pipeline depth even with a tiny batch (v7x megacore).
        tq = N // 2 if (N >= 32 and N % 16 == 0) else N
    assert N % tq == 0 and tq % 8 == 0
    num_q = N // tq

    xbytes = jnp.dtype(x.dtype).itemsize
    wbytes = jnp.dtype(wqkv_p.dtype).itemsize
    flops = (2 * B * N * dim * INNER_DIM                 # qkv projection
             + 2 * 2 * B * HEADS * N * N * DIM_HEAD      # dots + attn@w
             + 2 * B * N * INNER_DIM * dim)              # output projection
    bytes_accessed = (B * N * dim * xbytes               # x
                      + 2 * dim * INNER_DIM * wbytes     # both weights
                      + dim * 4                          # bias
                      + B * N * dim * xbytes)            # output

    return pl.pallas_call(
        san_kernel,
        out_shape=jax.ShapeDtypeStruct((B, N, dim), x.dtype),
        grid_spec=pltpu.PrefetchScalarGridSpec(
            num_scalar_prefetch=0,
            grid=(B, num_q),
            in_specs=[
                pl.BlockSpec((1, N, dim), lambda b, q: (b, 0, 0)),          # x
                pl.BlockSpec((dim, INNER_DIM), lambda b, q: (0, 0)),        # Wqkv^T
                pl.BlockSpec((INNER_DIM, dim), lambda b, q: (0, 0)),        # Wout^T
                pl.BlockSpec((1, dim), lambda b, q: (0, 0)),                # bias
            ],
            out_specs=pl.BlockSpec((1, tq, dim), lambda b, q: (b, q, 0)),
            scratch_shapes=[
                pltpu.VMEM((N, INNER_DIM), jnp.bfloat16),   # shared w = qkv(x)
                pltpu.VMEM((tq, INNER_DIM), jnp.bfloat16),  # per-head outputs
            ],
        ),
        compiler_params=pltpu.CompilerParams(
            # batch -> megacore sharding; q-tile axis must be sequential so the
            # w scratch computed at q==0 is valid for the later q-tiles.
            dimension_semantics=("parallel", "arbitrary"),
            vmem_limit_bytes=32 * 1024 * 1024,
        ),
        cost_estimate=pl.CostEstimate(
            flops=int(flops),
            transcendentals=int(B * HEADS * N * N),
            bytes_accessed=int(bytes_accessed),
        ),
    )(x, wqkv_p, wout_p, bout_p)


def san_reference(x, wqkv, wout, bout):
    """Pure-JAX f32 reference with the exact PyTorch-module semantics."""
    B, N, dim = x.shape
    w = x @ wqkv.T                                               # (B, N, 512)
    wh = w.reshape(B, N, HEADS, DIM_HEAD).transpose(0, 2, 1, 3)  # (B, H, N, d)
    dots = jnp.einsum('bhnd,bhmd->bhnm', wh, wh) * SCALE
    attn = jax.nn.softmax(dots, axis=-1)
    out = jnp.einsum('bhnm,bhmd->bhnd', attn, wh)
    out = out.transpose(0, 2, 1, 3).reshape(B, N, INNER_DIM)
    return out @ wout.T + bout


if __name__ == "__main__":
    # Small shapes consistent with the module: x is (batch, seq, dim).
    batch, seq, dim = 2, 128, 128

    key = jax.random.PRNGKey(0)
    kx, k1, k2, k3 = jax.random.split(key, 4)

    x = jax.random.normal(kx, (batch, seq, dim), dtype=jnp.float32)
    # PyTorch-Linear-like init: weight (out_features, in_features), bias for to_out.
    b1 = 1.0 / (dim ** 0.5)
    b2 = 1.0 / (INNER_DIM ** 0.5)
    wqkv = jax.random.uniform(k1, (INNER_DIM, dim), jnp.float32, -b1, b1)
    wout = jax.random.uniform(k2, (dim, INNER_DIM), jnp.float32, -b2, b2)
    bout = jax.random.uniform(k3, (dim,), jnp.float32, -b2, b2)

    # One-time parameter prep (transpose + bf16 cast) — outside the hot path.
    wqkv_p, wout_p, bout_p = prepare_params(wqkv, wout, bout)

    y = san_forward(x, wqkv_p, wout_p, bout_p)
    y = jax.block_until_ready(y)

    y_ref = san_reference(x, wqkv, wout, bout)
    assert y.shape == (batch, seq, dim)
    # bf16 MXU inputs with f32 accumulation -> loosened tolerance vs f32 reference.
    assert jnp.allclose(y, y_ref, atol=2e-2, rtol=2e-2), (
        float(jnp.max(jnp.abs(y - y_ref))))

    print("KERNEL_OK")
</pallas_src>

<mosaic_0001>
module attributes {stable_mosaic.version = 11 : i64} {
  func.func @san_kernel(%arg0: i32, %arg1: i32, %arg2: memref<1x128x128xf32, #tpu.memory_space<vmem>>, %arg3: memref<128x512xbf16, #tpu.memory_space<vmem>>, %arg4: memref<512x128xbf16, #tpu.memory_space<vmem>>, %arg5: memref<1x128xf32, #tpu.memory_space<vmem>>, %arg6: memref<1x64x128xf32, #tpu.memory_space<vmem>>, %arg7: memref<128x512xbf16, #tpu.memory_space<vmem>>, %arg8: memref<64x512xbf16, #tpu.memory_space<vmem>>) attributes {dimension_semantics = [#tpu.dimension_semantics<parallel>, #tpu.dimension_semantics<arbitrary>], iteration_bounds = array<i64: 2, 2>, scalar_prefetch = 0 : i64, scratch_operands = 2 : i64, tpu.core_type = #tpu.core_type<tc>, window_params = [{transform_indices = @transform_0, window_bounds = array<i64: 1, 128, 128>}, {pipeline_mode = #tpu.pipeline_mode<synchronous>, transform_indices = @transform_1, window_bounds = array<i64: 128, 512>}, {pipeline_mode = #tpu.pipeline_mode<synchronous>, transform_indices = @transform_2, window_bounds = array<i64: 512, 128>}, {pipeline_mode = #tpu.pipeline_mode<synchronous>, transform_indices = @transform_3, window_bounds = array<i64: 1, 128>}, {transform_indices = @transform_4, window_bounds = array<i64: 1, 64, 128>}]} {
    %c0_i32 = arith.constant 0 : i32
    %0 = arith.cmpi eq, %arg1, %c0_i32 : i32
    %1 = arith.extui %0 : i1 to i32
    %c0_i32_0 = arith.constant 0 : i32
    %2 = arith.cmpi ne, %1, %c0_i32_0 : i32
    scf.if %2 {
      %c0_82 = arith.constant 0 : index
      %c0_83 = arith.constant 0 : index
      %c0_84 = arith.constant 0 : index
      %174 = vector.load %arg2[%c0_82, %c0_83, %c0_84] : memref<1x128x128xf32, #tpu.memory_space<vmem>>, vector<1x128x128xf32>
      %175 = vector.shape_cast %174 : vector<1x128x128xf32> to vector<128x128xf32>
      %176 = arith.truncf %175 : vector<128x128xf32> to vector<128x128xbf16>
      %c0_85 = arith.constant 0 : index
      %c0_86 = arith.constant 0 : index
      %177 = vector.load %arg3[%c0_85, %c0_86] : memref<128x512xbf16, #tpu.memory_space<vmem>>, vector<128x512xbf16>
      %cst_87 = arith.constant dense<0.000000e+00> : vector<128x512xf32>
      %178 = tpu.matmul %176, %177, %cst_87 {dimension_numbers = #tpu.dot_dimension_numbers<[1], [0], [0], [1], [0, 0, 1, 1], [], []>} : vector<128x128xbf16>, vector<128x512xbf16>, vector<128x512xf32> -> vector<128x512xf32>
      %179 = arith.truncf %178 : vector<128x512xf32> to vector<128x512xbf16>
      %c0_88 = arith.constant 0 : index
      %c0_89 = arith.constant 0 : index
      %180 = vector.load %arg7[%c0_88, %c0_89] : memref<128x512xbf16, #tpu.memory_space<vmem>>, vector<128x512xbf16>
      tpu.vector_store %arg7[%c0_88, %c0_89], %179 {strides = array<i32>} : memref<128x512xbf16, #tpu.memory_space<vmem>>, vector<128x512xbf16>,
    } else {
    }
    %c64_i32 = arith.constant 64 : i32
    %3 = arith.muli %arg1, %c64_i32 : i32
    %4 = tpu.assume_multiple %3, 64 : i32
    %5 = arith.index_cast %4 : i32 to index
    %c0 = arith.constant 0 : index
    %6 = vector.load %arg7[%5, %c0] : memref<128x512xbf16, #tpu.memory_space<vmem>>, vector<64x64xbf16>
    %cst = arith.constant 1.250000e-01 : bf16
    %7 = vector.broadcast %cst : bf16 to vector<64x64xbf16>
    %8 = arith.mulf %6, %7 : vector<64x64xbf16>
    %c0_1 = arith.constant 0 : index
    %c0_2 = arith.constant 0 : index
    %9 = vector.load %arg7[%c0_1, %c0_2] : memref<128x512xbf16, #tpu.memory_space<vmem>>, vector<128x64xbf16>
    %cst_3 = arith.constant dense<0.000000e+00> : vector<64x128xf32>
    %10 = tpu.matmul %8, %9, %cst_3 {dimension_numbers = #tpu.dot_dimension_numbers<[1], [1], [0], [0], [0, 0, 1, 0], [], []>} : vector<64x64xbf16>, vector<128x64xbf16>, vector<64x128xf32> -> vector<64x128xf32>
    %cst_4 = arith.constant dense<0xFF800000> : vector<64xf32>
    %11 = vector.multi_reduction <maximumf>, %10, %cst_4 [1] : vector<64x128xf32> to vector<64xf32>
    %12 = vector.shape_cast %11 : vector<64xf32> to vector<64x1xf32>
    %13 = vector.broadcast %12 : vector<64x1xf32> to vector<64x128xf32>
    %14 = arith.subf %10, %13 : vector<64x128xf32>
    %15 = math.exp %14 : vector<64x128xf32>
    %cst_5 = arith.constant dense<0.000000e+00> : vector<64xf32>
    %16 = vector.multi_reduction <add>, %15, %cst_5 [1] : vector<64x128xf32> to vector<64xf32>
    %17 = vector.shape_cast %16 : vector<64xf32> to vector<64x1xf32>
    %18 = arith.truncf %15 : vector<64x128xf32> to vector<64x128xbf16>
    %cst_6 = arith.constant dense<0.000000e+00> : vector<64x64xf32>
    %19 = tpu.matmul %18, %9, %cst_6 {dimension_numbers = #tpu.dot_dimension_numbers<[1], [0], [0], [1], [0, 0, 1, 1], [], []>} : vector<64x128xbf16>, vector<128x64xbf16>, vector<64x64xf32> -> vector<64x64xf32>
    %20 = tpu.reciprocal %17 {approx = true} : vector<64x1xf32> -> vector<64x1xf32>
    %21 = vector.broadcast %20 : vector<64x1xf32> to vector<64x64xf32>
    %22 = arith.mulf %19, %21 : vector<64x64xf32>
    %23 = arith.truncf %22 : vector<64x64xf32> to vector<64x64xbf16>
    %c0_7 = arith.constant 0 : index
    %c0_8 = arith.constant 0 : index
    %24 = vector.load %arg8[%c0_7, %c0_8] : memref<64x512xbf16, #tpu.memory_space<vmem>>, vector<64x64xbf16>
    tpu.vector_store %arg8[%c0_7, %c0_8], %23 {strides = array<i32>} : memref<64x512xbf16, #tpu.memory_space<vmem>>, vector<64x64xbf16>,
    %25 = arith.index_cast %4 : i32 to index
    %c64 = arith.constant 64 : index
    %26 = vector.load %arg7[%25, %c64] : memref<128x512xbf16, #tpu.memory_space<vmem>>, vector<64x64xbf16>
    %cst_9 = arith.constant 1.250000e-01 : bf16
    %27 = vector.broadcast %cst_9 : bf16 to vector<64x64xbf16>
    %28 = arith.mulf %26, %27 : vector<64x64xbf16>
    %c0_10 = arith.constant 0 : index
    %c64_11 = arith.constant 64 : index
    %29 = vector.load %arg7[%c0_10, %c64_11] : memref<128x512xbf16, #tpu.memory_space<vmem>>, vector<128x64xbf16>
    %cst_12 = arith.constant dense<0.000000e+00> : vector<64x128xf32>
    %30 = tpu.matmul %28, %29, %cst_12 {dimension_numbers = #tpu.dot_dimension_numbers<[1], [1], [0], [0], [0, 0, 1, 0], [], []>} : vector<64x64xbf16>, vector<128x64xbf16>, vector<64x128xf32> -> vector<64x128xf32>
    %cst_13 = arith.constant dense<0xFF800000> : vector<64xf32>
    %31 = vector.multi_reduction <maximumf>, %30, %cst_13 [1] : vector<64x128xf32> to vector<64xf32>
    %32 = vector.shape_cast %31 : vector<64xf32> to vector<64x1xf32>
    %33 = vector.broadcast %32 : vector<64x1xf32> to vector<64x128xf32>
    %34 = arith.subf %30, %33 : vector<64x128xf32>
    %35 = math.exp %34 : vector<64x128xf32>
    %cst_14 = arith.constant dense<0.000000e+00> : vector<64xf32>
    %36 = vector.multi_reduction <add>, %35, %cst_14 [1] : vector<64x128xf32> to vector<64xf32>
    %37 = vector.shape_cast %36 : vector<64xf32> to vector<64x1xf32>
    %38 = arith.truncf %35 : vector<64x128xf32> to vector<64x128xbf16>
    %cst_15 = arith.constant dense<0.000000e+00> : vector<64x64xf32>
    %39 = tpu.matmul %38, %29, %cst_15 {dimension_numbers = #tpu.dot_dimension_numbers<[1], [0], [0], [1], [0, 0, 1, 1], [], []>} : vector<64x128xbf16>, vector<128x64xbf16>, vector<64x64xf32> -> vector<64x64xf32>
    %40 = tpu.reciprocal %37 {approx = true} : vector<64x1xf32> -> vector<64x1xf32>
    %41 = vector.broadcast %40 : vector<64x1xf32> to vector<64x64xf32>
    %42 = arith.mulf %39, %41 : vector<64x64xf32>
    %43 = arith.truncf %42 : vector<64x64xf32> to vector<64x64xbf16>
    %c0_16 = arith.constant 0 : index
    %c64_17 = arith.constant 64 : index
    %44 = vector.load %arg8[%c0_16, %c64_17] : memref<64x512xbf16, #tpu.memory_space<vmem>>, vector<64x64xbf16>
    tpu.vector_store %arg8[%c0_16, %c64_17], %43 {strides = array<i32>} : memref<64x512xbf16, #tpu.memory_space<vmem>>, vector<64x64xbf16>,
    %45 = arith.index_cast %4 : i32 to index
    %c128 = arith.constant 128 : index
    %46 = vector.load %arg7[%45, %c128] : memref<128x512xbf16, #tpu.memory_space<vmem>>, vector<64x64xbf16>
    %cst_18 = arith.constant 1.250000e-01 : bf16
    %47 = vector.broadcast %cst_18 : bf16 to vector<64x64xbf16>
    %48 = arith.mulf %46, %47 : vector<64x64xbf16>
    %c0_19 = arith.constant 0 : index
    %c128_20 = arith.constant 128 : index
    %49 = vector.load %arg7[%c0_19, %c128_20] : memref<128x512xbf16, #tpu.memory_space<vmem>>, vector<128x64xbf16>
    %cst_21 = arith.constant dense<0.000000e+00> : vector<64x128xf32>
    %50 = tpu.matmul %48, %49, %cst_21 {dimension_numbers = #tpu.dot_dimension_numbers<[1], [1], [0], [0], [0, 0, 1, 0], [], []>} : vector<64x64xbf16>, vector<128x64xbf16>, vector<64x128xf32> -> vector<64x128xf32>
    %cst_22 = arith.constant dense<0xFF800000> : vector<64xf32>
    %51 = vector.multi_reduction <maximumf>, %50, %cst_22 [1] : vector<64x128xf32> to vector<64xf32>
    %52 = vector.shape_cast %51 : vector<64xf32> to vector<64x1xf32>
    %53 = vector.broadcast %52 : vector<64x1xf32> to vector<64x128xf32>
    %54 = arith.subf %50, %53 : vector<64x128xf32>
    %55 = math.exp %54 : vector<64x128xf32>
    %cst_23 = arith.constant dense<0.000000e+00> : vector<64xf32>
    %56 = vector.multi_reduction <add>, %55, %cst_23 [1] : vector<64x128xf32> to vector<64xf32>
    %57 = vector.shape_cast %56 : vector<64xf32> to vector<64x1xf32>
    %58 = arith.truncf %55 : vector<64x128xf32> to vector<64x128xbf16>
    %cst_24 = arith.constant dense<0.000000e+00> : vector<64x64xf32>
    %59 = tpu.matmul %58, %49, %cst_24 {dimension_numbers = #tpu.dot_dimension_numbers<[1], [0], [0], [1], [0, 0, 1, 1], [], []>} : vector<64x128xbf16>, vector<128x64xbf16>, vector<64x64xf32> -> vector<64x64xf32>
    %60 = tpu.reciprocal %57 {approx = true} : vector<64x1xf32> -> vector<64x1xf32>
    %61 = vector.broadcast %60 : vector<64x1xf32> to vector<64x64xf32>
    %62 = arith.mulf %59, %61 : vector<64x64xf32>
    %63 = arith.truncf %62 : vector<64x64xf32> to vector<64x64xbf16>
    %c0_25 = arith.constant 0 : index
    %c128_26 = arith.constant 128 : index
    %64 = vector.load %arg8[%c0_25, %c128_26] : memref<64x512xbf16, #tpu.memory_space<vmem>>, vector<64x64xbf16>
    tpu.vector_store %arg8[%c0_25, %c128_26], %63 {strides = array<i32>} : memref<64x512xbf16, #tpu.memory_space<vmem>>, vector<64x64xbf16>,
    %65 = arith.index_cast %4 : i32 to index
    %c192 = arith.constant 192 : index
    %66 = vector.load %arg7[%65, %c192] : memref<128x512xbf16, #tpu.memory_space<vmem>>, vector<64x64xbf16>
    %cst_27 = arith.constant 1.250000e-01 : bf16
    %67 = vector.broadcast %cst_27 : bf16 to vector<64x64xbf16>
    %68 = arith.mulf %66, %67 : vector<64x64xbf16>
    %c0_28 = arith.constant 0 : index
    %c192_29 = arith.constant 192 : index
    %69 = vector.load %arg7[%c0_28, %c192_29] : memref<128x512xbf16, #tpu.memory_space<vmem>>, vector<128x64xbf16>
    %cst_30 = arith.constant dense<0.000000e+00> : vector<64x128xf32>
    %70 = tpu.matmul %68, %69, %cst_30 {dimension_numbers = #tpu.dot_dimension_numbers<[1], [1], [0], [0], [0, 0, 1, 0], [], []>} : vector<64x64xbf16>, vector<128x64xbf16>, vector<64x128xf32> -> vector<64x128xf32>
    %cst_31 = arith.constant dense<0xFF800000> : vector<64xf32>
    %71 = vector.multi_reduction <maximumf>, %70, %cst_31 [1] : vector<64x128xf32> to vector<64xf32>
    %72 = vector.shape_cast %71 : vector<64xf32> to vector<64x1xf32>
    %73 = vector.broadcast %72 : vector<64x1xf32> to vector<64x128xf32>
    %74 = arith.subf %70, %73 : vector<64x128xf32>
    %75 = math.exp %74 : vector<64x128xf32>
    %cst_32 = arith.constant dense<0.000000e+00> : vector<64xf32>
    %76 = vector.multi_reduction <add>, %75, %cst_32 [1] : vector<64x128xf32> to vector<64xf32>
    %77 = vector.shape_cast %76 : vector<64xf32> to vector<64x1xf32>
    %78 = arith.truncf %75 : vector<64x128xf32> to vector<64x128xbf16>
    %cst_33 = arith.constant dense<0.000000e+00> : vector<64x64xf32>
    %79 = tpu.matmul %78, %69, %cst_33 {dimension_numbers = #tpu.dot_dimension_numbers<[1], [0], [0], [1], [0, 0, 1, 1], [], []>} : vector<64x128xbf16>, vector<128x64xbf16>, vector<64x64xf32> -> vector<64x64xf32>
    %80 = tpu.reciprocal %77 {approx = true} : vector<64x1xf32> -> vector<64x1xf32>
    %81 = vector.broadcast %80 : vector<64x1xf32> to vector<64x64xf32>
    %82 = arith.mulf %79, %81 : vector<64x64xf32>
    %83 = arith.truncf %82 : vector<64x64xf32> to vector<64x64xbf16>
    %c0_34 = arith.constant 0 : index
    %c192_35 = arith.constant 192 : index
    %84 = vector.load %arg8[%c0_34, %c192_35] : memref<64x512xbf16, #tpu.memory_space<vmem>>, vector<64x64xbf16>
    tpu.vector_store %arg8[%c0_34, %c192_35], %83 {strides = array<i32>} : memref<64x512xbf16, #tpu.memory_space<vmem>>, vector<64x64xbf16>,
    %85 = arith.index_cast %4 : i32 to index
    %c256 = arith.constant 256 : index
    %86 = vector.load %arg7[%85, %c256] : memref<128x512xbf16, #tpu.memory_space<vmem>>, vector<64x64xbf16>
    %cst_36 = arith.constant 1.250000e-01 : bf16
    %87 = vector.broadcast %cst_36 : bf16 to vector<64x64xbf16>
    %88 = arith.mulf %86, %87 : vector<64x64xbf16>
    %c0_37 = arith.constant 0 : index
    %c256_38 = arith.constant 256 : index
    %89 = vector.load %arg7[%c0_37, %c256_38] : memref<128x512xbf16, #tpu.memory_space<vmem>>, vector<128x64xbf16>
    %cst_39 = arith.constant dense<0.000000e+00> : vector<64x128xf32>
    %90 = tpu.matmul %88, %89, %cst_39 {dimension_numbers = #tpu.dot_dimension_numbers<[1], [1], [0], [0], [0, 0, 1, 0], [], []>} : vector<64x64xbf16>, vector<128x64xbf16>, vector<64x128xf32> -> vector<64x128xf32>
    %cst_40 = arith.constant dense<0xFF800000> : vector<64xf32>
    %91 = vector.multi_reduction <maximumf>, %90, %cst_40 [1] : vector<64x128xf32> to vector<64xf32>
    %92 = vector.shape_cast %91 : vector<64xf32> to vector<64x1xf32>
    %93 = vector.broadcast %92 : vector<64x1xf32> to vector<64x128xf32>
    %94 = arith.subf %90, %93 : vector<64x128xf32>
    %95 = math.exp %94 : vector<64x128xf32>
    %cst_41 = arith.constant dense<0.000000e+00> : vector<64xf32>
    %96 = vector.multi_reduction <add>, %95, %cst_41 [1] : vector<64x128xf32> to vector<64xf32>
    %97 = vector.shape_cast %96 : vector<64xf32> to vector<64x1xf32>
    %98 = arith.truncf %95 : vector<64x128xf32> to vector<64x128xbf16>
    %cst_42 = arith.constant dense<0.000000e+00> : vector<64x64xf32>
    %99 = tpu.matmul %98, %89, %cst_42 {dimension_numbers = #tpu.dot_dimension_numbers<[1], [0], [0], [1], [0, 0, 1, 1], [], []>} : vector<64x128xbf16>, vector<128x64xbf16>, vector<64x64xf32> -> vector<64x64xf32>
    %100 = tpu.reciprocal %97 {approx = true} : vector<64x1xf32> -> vector<64x1xf32>
    %101 = vector.broadcast %100 : vector<64x1xf32> to vector<64x64xf32>
    %102 = arith.mulf %99, %101 : vector<64x64xf32>
    %103 = arith.truncf %102 : vector<64x64xf32> to vector<64x64xbf16>
    %c0_43 = arith.constant 0 : index
    %c256_44 = arith.constant 256 : index
    %104 = vector.load %arg8[%c0_43, %c256_44] : memref<64x512xbf16, #tpu.memory_space<vmem>>, vector<64x64xbf16>
    tpu.vector_store %arg8[%c0_43, %c256_44], %103 {strides = array<i32>} : memref<64x512xbf16, #tpu.memory_space<vmem>>, vector<64x64xbf16>,
    %105 = arith.index_cast %4 : i32 to index
    %c320 = arith.constant 320 : index
    %106 = vector.load %arg7[%105, %c320] : memref<128x512xbf16, #tpu.memory_space<vmem>>, vector<64x64xbf16>
    %cst_45 = arith.constant 1.250000e-01 : bf16
    %107 = vector.broadcast %cst_45 : bf16 to vector<64x64xbf16>
    %108 = arith.mulf %106, %107 : vector<64x64xbf16>
    %c0_46 = arith.constant 0 : index
    %c320_47 = arith.constant 320 : index
    %109 = vector.load %arg7[%c0_46, %c320_47] : memref<128x512xbf16, #tpu.memory_space<vmem>>, vector<128x64xbf16>
    %cst_48 = arith.constant dense<0.000000e+00> : vector<64x128xf32>
    %110 = tpu.matmul %108, %109, %cst_48 {dimension_numbers = #tpu.dot_dimension_numbers<[1], [1], [0], [0], [0, 0, 1, 0], [], []>} : vector<64x64xbf16>, vector<128x64xbf16>, vector<64x128xf32> -> vector<64x128xf32>
    %cst_49 = arith.constant dense<0xFF800000> : vector<64xf32>
    %111 = vector.multi_reduction <maximumf>, %110, %cst_49 [1] : vector<64x128xf32> to vector<64xf32>
    %112 = vector.shape_cast %111 : vector<64xf32> to vector<64x1xf32>
    %113 = vector.broadcast %112 : vector<64x1xf32> to vector<64x128xf32>
    %114 = arith.subf %110, %113 : vector<64x128xf32>
    %115 = math.exp %114 : vector<64x128xf32>
    %cst_50 = arith.constant dense<0.000000e+00> : vector<64xf32>
    %116 = vector.multi_reduction <add>, %115, %cst_50 [1] : vector<64x128xf32> to vector<64xf32>
    %117 = vector.shape_cast %116 : vector<64xf32> to vector<64x1xf32>
    %118 = arith.truncf %115 : vector<64x128xf32> to vector<64x128xbf16>
    %cst_51 = arith.constant dense<0.000000e+00> : vector<64x64xf32>
    %119 = tpu.matmul %118, %109, %cst_51 {dimension_numbers = #tpu.dot_dimension_numbers<[1], [0], [0], [1], [0, 0, 1, 1], [], []>} : vector<64x128xbf16>, vector<128x64xbf16>, vector<64x64xf32> -> vector<64x64xf32>
    %120 = tpu.reciprocal %117 {approx = true} : vector<64x1xf32> -> vector<64x1xf32>
    %121 = vector.broadcast %120 : vector<64x1xf32> to vector<64x64xf32>
    %122 = arith.mulf %119, %121 : vector<64x64xf32>
    %123 = arith.truncf %122 : vector<64x64xf32> to vector<64x64xbf16>
    %c0_52 = arith.constant 0 : index
    %c320_53 = arith.constant 320 : index
    %124 = vector.load %arg8[%c0_52, %c320_53] : memref<64x512xbf16, #tpu.memory_space<vmem>>, vector<64x64xbf16>
    tpu.vector_store %arg8[%c0_52, %c320_53], %123 {strides = array<i32>} : memref<64x512xbf16, #tpu.memory_space<vmem>>, vector<64x64xbf16>,
    %125 = arith.index_cast %4 : i32 to index
    %c384 = arith.constant 384 : index
    %126 = vector.load %arg7[%125, %c384] : memref<128x512xbf16, #tpu.memory_space<vmem>>, vector<64x64xbf16>
    %cst_54 = arith.constant 1.250000e-01 : bf16
    %127 = vector.broadcast %cst_54 : bf16 to vector<64x64xbf16>
    %128 = arith.mulf %126, %127 : vector<64x64xbf16>
    %c0_55 = arith.constant 0 : index
    %c384_56 = arith.constant 384 : index
    %129 = vector.load %arg7[%c0_55, %c384_56] : memref<128x512xbf16, #tpu.memory_space<vmem>>, vector<128x64xbf16>
    %cst_57 = arith.constant dense<0.000000e+00> : vector<64x128xf32>
    %130 = tpu.matmul %128, %129, %cst_57 {dimension_numbers = #tpu.dot_dimension_numbers<[1], [1], [0], [0], [0, 0, 1, 0], [], []>} : vector<64x64xbf16>, vector<128x64xbf16>, vector<64x128xf32> -> vector<64x128xf32>
    %cst_58 = arith.constant dense<0xFF800000> : vector<64xf32>
    %131 = vector.multi_reduction <maximumf>, %130, %cst_58 [1] : vector<64x128xf32> to vector<64xf32>
    %132 = vector.shape_cast %131 : vector<64xf32> to vector<64x1xf32>
    %133 = vector.broadcast %132 : vector<64x1xf32> to vector<64x128xf32>
    %134 = arith.subf %130, %133 : vector<64x128xf32>
    %135 = math.exp %134 : vector<64x128xf32>
    %cst_59 = arith.constant dense<0.000000e+00> : vector<64xf32>
    %136 = vector.multi_reduction <add>, %135, %cst_59 [1] : vector<64x128xf32> to vector<64xf32>
    %137 = vector.shape_cast %136 : vector<64xf32> to vector<64x1xf32>
    %138 = arith.truncf %135 : vector<64x128xf32> to vector<64x128xbf16>
    %cst_60 = arith.constant dense<0.000000e+00> : vector<64x64xf32>
    %139 = tpu.matmul %138, %129, %cst_60 {dimension_numbers = #tpu.dot_dimension_numbers<[1], [0], [0], [1], [0, 0, 1, 1], [], []>} : vector<64x128xbf16>, vector<128x64xbf16>, vector<64x64xf32> -> vector<64x64xf32>
    %140 = tpu.reciprocal %137 {approx = true} : vector<64x1xf32> -> vector<64x1xf32>
    %141 = vector.broadcast %140 : vector<64x1xf32> to vector<64x64xf32>
    %142 = arith.mulf %139, %141 : vector<64x64xf32>
    %143 = arith.truncf %142 : vector<64x64xf32> to vector<64x64xbf16>
    %c0_61 = arith.constant 0 : index
    %c384_62 = arith.constant 384 : index
    %144 = vector.load %arg8[%c0_61, %c384_62] : memref<64x512xbf16, #tpu.memory_space<vmem>>, vector<64x64xbf16>
    tpu.vector_store %arg8[%c0_61, %c384_62], %143 {strides = array<i32>} : memref<64x512xbf16, #tpu.memory_space<vmem>>, vector<64x64xbf16>,
    %145 = arith.index_cast %4 : i32 to index
    %c448 = arith.constant 448 : index
    %146 = vector.load %arg7[%145, %c448] : memref<128x512xbf16, #tpu.memory_space<vmem>>, vector<64x64xbf16>
    %cst_63 = arith.constant 1.250000e-01 : bf16
    %147 = vector.broadcast %cst_63 : bf16 to vector<64x64xbf16>
    %148 = arith.mulf %146, %147 : vector<64x64xbf16>
    %c0_64 = arith.constant 0 : index
    %c448_65 = arith.constant 448 : index
    %149 = vector.load %arg7[%c0_64, %c448_65] : memref<128x512xbf16, #tpu.memory_space<vmem>>, vector<128x64xbf16>
    %cst_66 = arith.constant dense<0.000000e+00> : vector<64x128xf32>
    %150 = tpu.matmul %148, %149, %cst_66 {dimension_numbers = #tpu.dot_dimension_numbers<[1], [1], [0], [0], [0, 0, 1, 0], [], []>} : vector<64x64xbf16>, vector<128x64xbf16>, vector<64x128xf32> -> vector<64x128xf32>
    %cst_67 = arith.constant dense<0xFF800000> : vector<64xf32>
    %151 = vector.multi_reduction <maximumf>, %150, %cst_67 [1] : vector<64x128xf32> to vector<64xf32>
    %152 = vector.shape_cast %151 : vector<64xf32> to vector<64x1xf32>
    %153 = vector.broadcast %152 : vector<64x1xf32> to vector<64x128xf32>
    %154 = arith.subf %150, %153 : vector<64x128xf32>
    %155 = math.exp %154 : vector<64x128xf32>
    %cst_68 = arith.constant dense<0.000000e+00> : vector<64xf32>
    %156 = vector.multi_reduction <add>, %155, %cst_68 [1] : vector<64x128xf32> to vector<64xf32>
    %157 = vector.shape_cast %156 : vector<64xf32> to vector<64x1xf32>
    %158 = arith.truncf %155 : vector<64x128xf32> to vector<64x128xbf16>
    %cst_69 = arith.constant dense<0.000000e+00> : vector<64x64xf32>
    %159 = tpu.matmul %158, %149, %cst_69 {dimension_numbers = #tpu.dot_dimension_numbers<[1], [0], [0], [1], [0, 0, 1, 1], [], []>} : vector<64x128xbf16>, vector<128x64xbf16>, vector<64x64xf32> -> vector<64x64xf32>
    %160 = tpu.reciprocal %157 {approx = true} : vector<64x1xf32> -> vector<64x1xf32>
    %161 = vector.broadcast %160 : vector<64x1xf32> to vector<64x64xf32>
    %162 = arith.mulf %159, %161 : vector<64x64xf32>
    %163 = arith.truncf %162 : vector<64x64xf32> to vector<64x64xbf16>
    %c0_70 = arith.constant 0 : index
    %c448_71 = arith.constant 448 : index
    %164 = vector.load %arg8[%c0_70, %c448_71] : memref<64x512xbf16, #tpu.memory_space<vmem>>, vector<64x64xbf16>
    tpu.vector_store %arg8[%c0_70, %c448_71], %163 {strides = array<i32>} : memref<64x512xbf16, #tpu.memory_space<vmem>>, vector<64x64xbf16>,
    %c0_72 = arith.constant 0 : index
    %c0_73 = arith.constant 0 : index
    %165 = vector.load %arg8[%c0_72, %c0_73] : memref<64x512xbf16, #tpu.memory_space<vmem>>, vector<64x512xbf16>
    %c0_74 = arith.constant 0 : index
    %c0_75 = arith.constant 0 : index
    %166 = vector.load %arg4[%c0_74, %c0_75] : memref<512x128xbf16, #tpu.memory_space<vmem>>, vector<512x128xbf16>
    %cst_76 = arith.constant dense<0.000000e+00> : vector<64x128xf32>
    %167 = tpu.matmul %165, %166, %cst_76 {dimension_numbers = #tpu.dot_dimension_numbers<[1], [0], [0], [1], [0, 0, 1, 1], [], []>} : vector<64x512xbf16>, vector<512x128xbf16>, vector<64x128xf32> -> vector<64x128xf32>
    %c0_77 = arith.constant 0 : index
    %c0_78 = arith.constant 0 : index
    %168 = vector.load %arg5[%c0_77, %c0_78] : memref<1x128xf32, #tpu.memory_space<vmem>>, vector<1x128xf32>
    %169 = vector.broadcast %168 : vector<1x128xf32> to vector<64x128xf32>
    %170 = arith.addf %167, %169 : vector<64x128xf32>
    %c0_79 = arith.constant 0 : index
    %c0_80 = arith.constant 0 : index
    %c0_81 = arith.constant 0 : index
    %171 = vector.load %arg6[%c0_79, %c0_80, %c0_81] : memref<1x64x128xf32, #tpu.memory_space<vmem>>, vector<1x64x128xf32>
    %172 = vector.shape_cast %171 : vector<1x64x128xf32> to vector<64x128xf32>
    %173 = vector.shape_cast %170 : vector<64x128xf32> to vector<1x64x128xf32>
    tpu.vector_store %arg6[%c0_79, %c0_80, %c0_81], %173 {strides = array<i32>} : memref<1x64x128xf32, #tpu.memory_space<vmem>>, vector<1x64x128xf32>,
    return
  }
  func.func @transform_0(%arg0: i32, %arg1: i32) -> (i32, i32, i32) {
    %c0_i32 = arith.constant 0 : i32
    %c0_i32_0 = arith.constant 0 : i32
    %c0_i32_1 = arith.constant 0 : i32
    return %arg0, %c0_i32, %c0_i32_0 : i32, i32, i32
  }
  func.func @transform_1(%arg0: i32, %arg1: i32) -> (i32, i32) {
    %c0_i32 = arith.constant 0 : i32
    %c0_i32_0 = arith.constant 0 : i32
    %c0_i32_1 = arith.constant 0 : i32
    return %c0_i32, %c0_i32_0 : i32, i32
  }
  func.func @transform_2(%arg0: i32, %arg1: i32) -> (i32, i32) {
    %c0_i32 = arith.constant 0 : i32
    %c0_i32_0 = arith.constant 0 : i32
    %c0_i32_1 = arith.constant 0 : i32
    return %c0_i32, %c0_i32_0 : i32, i32
  }
  func.func @transform_3(%arg0: i32, %arg1: i32) -> (i32, i32) {
    %c0_i32 = arith.constant 0 : i32
    %c0_i32_0 = arith.constant 0 : i32
    %c0_i32_1 = arith.constant 0 : i32
    return %c0_i32, %c0_i32_0 : i32, i32
  }
  func.func @transform_4(%arg0: i32, %arg1: i32) -> (i32, i32, i32) {
    %c0_i32 = arith.constant 0 : i32
    %c0_i32_0 = arith.constant 0 : i32
    return %arg0, %arg1, %c0_i32 : i32, i32, i32
  }
}

</mosaic_0001>

<llo_original>
// kernel: tpu_custom_call.1
$region0: #{tpu_custom_call.1}
  #allocation0 [shape = 'u32[]', space=smem, size = 0x4, offset = 0x4, fixed_abs, tag = 'smem constant byte address 0x4 - core index']
  #allocation1 [shape = 'u32[144,128]{1,0:T(1,128)}', space=vmem, size = 0x12000, scoped, tag = 'internal scratch']
  #allocation2 [shape = 'bf16[128,512]{1,0:T(8,128)(2,1)}', space=vmem, size = 0x20000, scoped, tag = 'scratch operand']
  #allocation3 [shape = 'bf16[64,512]{1,0:T(8,128)(2,1)}', space=vmem, size = 0x10000, scoped, tag = 'scratch operand']
  %s0 = inlined_call_operand.hbm [shape: f32[2,128,128], index: 0, kind: input, shape index: {}]
  %s1 = inlined_call_operand.hbm [shape: bf16[128,512], index: 1, kind: input, shape index: {}]
  %s2 = inlined_call_operand.hbm [shape: bf16[512,128], index: 2, kind: input, shape index: {}]
  %s3 = inlined_call_operand.vmem [shape: f32[1,128], index: 3, kind: input, shape index: {}]
  %s4 = inlined_call_operand.hbm [shape: f32[2,128,128], index: 4, kind: output, shape index: {}]
  %s5 = sld [smem:[#allocation0]]
  $region65: #{tpu_custom_call.1} parent=0
    _
  %s7 = ssub.s32 1, %s5
  %s8 = scalar_select 0, %s7, %s5
  $region1: #{tpu_custom_call.1} parent=0
    #allocation4 [shape = 'u8[131072]{0}', space=vmem, size = 0x20000, scoped, tag = 'input window, operand 0']
    #allocation5 [shape = 's32[2]{0}', space=sflag, size = 0x8, scoped, tag = 'scoped memory for tpu_custom_call.1']
    #allocation6 [shape = 's32[2]{0}', space=sflag, size = 0x8, scoped, tag = 'scoped memory for tpu_custom_call.1']
    #allocation7 [shape = 'u8[131072]{0}', space=vmem, size = 0x20000, scoped, tag = 'input window, operand 1, single buffered']
    #allocation8 [shape = 's32[1]{0}', space=sflag, size = 0x4, scoped, tag = 'scoped memory for tpu_custom_call.1']
    #allocation9 [shape = 'u8[131072]{0}', space=vmem, size = 0x20000, scoped, tag = 'input window, operand 2, single buffered']
    #allocation10 [shape = 'u8[65536]{0}', space=vmem, size = 0x10000, scoped, tag = 'output window, operand 0']
    %9 = vsyncpa [#allocation5], 0
    %s10 = scalar_lea.sflag [#allocation5], 1
    %11 = vsyncpa %s10, 0
    %12 = vsyncpa [#allocation8], 0
    %13 = vsyncpa [#allocation6], 0
    %s14 = scalar_lea.sflag [#allocation6], 1
    %15 = vsyncpa %s14, 0
    loop: start=0, step=1, limit=6
    $region2: #{tpu_custom_call.1} parent=1 // loop_pre_header
      _
    $region3: #{tpu_custom_call.1} parent=1 // loop_header
      %s17 = sphi 0, %s21
      %p18 = scmp.ge.s32.totalorder %s17, 6
      %s24 = sphi 0, %s36
      %s25 = sphi 0, %s32
      %s26 = sphi 0, %s24
      %s27 = sphi 0, %s25
      %s28 = sphi 0, %s26
      %s29 = sphi 0, %s27
      %s39 = sphi 0, %s41
      %s42 = sphi 0, %s39
      %s43 = sphi 0, %s42
      %s59 = sphi 0, %s43
      %s63 = sphi 0, %s63
      %s65 = sphi 0, %s63
      %s66 = sphi 0, %s65
      %s80 = sphi 0, %s66
      %s84 = sphi 0, %s84
      %s86 = sphi 0, %s84
      %s87 = sphi 0, %s86
      %s101 = sphi 0, %s87
      %s105 = sphi 0, %s105
      %s107 = sphi 0, %s105
      %s108 = sphi 0, %s107
      %s122 = sphi 0, %s108
      %s130 = sphi 0, %s132
      %s133 = sphi 0, %s130
      %s134 = sphi 0, %s133
      %s150 = sphi 0, %s134
    $region4: #{tpu_custom_call.1} parent=1 // loop_header_branch
      %20 = sbr.rel (%p18) target = $region8
    $region5: #{tpu_custom_call.1} parent=1 // loop_body
      %s22 = ssub.s32 %s17, 1
      %s23 = ssub.s32 %s17, 2
      %s30 = sadd.s32 1, %s25
      %p31 = scmp.ge.s32.totalorder %s30, 2
      %s32 = scalar_select %p31, 0, %s30
      %s33 = sadd.s32 1, %s24
      %s34 = scalar_select %p31, %s33, %s24
      %p35 = scmp.ge.s32.totalorder %s34, 2
      %s36 = scalar_select %p35, 0, %s34
      %s37 = ssub.s32 %s24, %s36
      %p38 = scmp.eq.s32.totalorder %s37, 0
      %s40 = sadd.s32 %s39, 1
      %s41 = scalar_select %p38, %s39, %s40
      %p44 = pneg %p38
      %p45 = scmp.eq.s32.totalorder %s17, 3
      %p46 = por %p44, %p45
      %p47 = scmp.ne.s32.totalorder %s39, %s42
      %p48 = scmp.eq.s32.totalorder %s17, 0
      %p49 = por %p47, %p48
      %p50 = scmp.ne.s32.totalorder %s39, %s42
      %p51 = scmp.eq.s32.totalorder %s22, 3
      %p52 = por %p50, %p51
      %p53 = scmp.ne.s32.totalorder %s42, %s43
      %p54 = scmp.eq.s32.totalorder %s22, 0
      %p55 = por %p53, %p54
      %p56 = scmp.ne.s32.totalorder %s42, %s43
      %p57 = scmp.eq.s32.totalorder %s23, 3
      %p58 = por %p56, %p57
      %p60 = scmp.ne.s32.totalorder %s43, %s59
      %p61 = scmp.eq.s32.totalorder %s23, 0
      %p62 = por %p60, %p61
      %s64 = sadd.s32 %s63, 1
      %p67 = scmp.eq.s32.totalorder %s17, 3
      %p68 = scmp.ne.s32.totalorder %s63, %s65
      %p69 = scmp.eq.s32.totalorder %s17, 0
      %p70 = por %p68, %p69
      %p71 = scmp.ne.s32.totalorder %s63, %s65
      %p72 = scmp.eq.s32.totalorder %s22, 3
      %p73 = por %p71, %p72
      %p74 = scmp.ne.s32.totalorder %s65, %s66
      %p75 = scmp.eq.s32.totalorder %s22, 0
      %p76 = por %p74, %p75
      %p77 = scmp.ne.s32.totalorder %s65, %s66
      %p78 = scmp.eq.s32.totalorder %s23, 3
      %p79 = por %p77, %p78
      %p81 = scmp.ne.s32.totalorder %s66, %s80
      %p82 = scmp.eq.s32.totalorder %s23, 0
      %p83 = por %p81, %p82
      %s85 = sadd.s32 %s84, 1
      %p88 = scmp.eq.s32.totalorder %s17, 3
      %p89 = scmp.ne.s32.totalorder %s84, %s86
      %p90 = scmp.eq.s32.totalorder %s17, 0
      %p91 = por %p89, %p90
      %p92 = scmp.ne.s32.totalorder %s84, %s86
      %p93 = scmp.eq.s32.totalorder %s22, 3
      %p94 = por %p92, %p93
      %p95 = scmp.ne.s32.totalorder %s86, %s87
      %p96 = scmp.eq.s32.totalorder %s22, 0
      %p97 = por %p95, %p96
      %p98 = scmp.ne.s32.totalorder %s86, %s87
      %p99 = scmp.eq.s32.totalorder %s23, 3
      %p100 = por %p98, %p99
      %p102 = scmp.ne.s32.totalorder %s87, %s101
      %p103 = scmp.eq.s32.totalorder %s23, 0
      %p104 = por %p102, %p103
      %s106 = sadd.s32 %s105, 1
      %p109 = scmp.eq.s32.totalorder %s17, 3
      %p110 = scmp.ne.s32.totalorder %s105, %s107
      %p111 = scmp.eq.s32.totalorder %s17, 0
      %p112 = por %p110, %p111
      %p113 = scmp.ne.s32.totalorder %s105, %s107
      %p114 = scmp.eq.s32.totalorder %s22, 3
      %p115 = por %p113, %p114
      %p116 = scmp.ne.s32.totalorder %s107, %s108
      %p117 = scmp.eq.s32.totalorder %s22, 0
      %p118 = por %p116, %p117
      %p119 = scmp.ne.s32.totalorder %s107, %s108
      %p120 = scmp.eq.s32.totalorder %s23, 3
      %p121 = por %p119, %p120
      %p123 = scmp.ne.s32.totalorder %s108, %s122
      %p124 = scmp.eq.s32.totalorder %s23, 0
      %p125 = por %p123, %p124
      %s126 = ssub.s32 %s24, %s36
      %s127 = ssub.s32 %s25, %s32
      %s128 = sor.u32 %s126, %s127
      %p129 = scmp.eq.s32.totalorder %s128, 0
      %s131 = sadd.s32 %s130, 1
      %s132 = scalar_select %p129, %s130, %s131
      %p135 = pneg %p129
      %p136 = scmp.eq.s32.totalorder %s17, 3
      %p137 = por %p135, %p136
      %p138 = scmp.ne.s32.totalorder %s130, %s133
      %p139 = scmp.eq.s32.totalorder %s17, 0
      %p140 = por %p138, %p139
      %p141 = scmp.ne.s32.totalorder %s130, %s133
      %p142 = scmp.eq.s32.totalorder %s22, 3
      %p143 = por %p141, %p142
      %p144 = scmp.ne.s32.totalorder %s133, %s134
      %p145 = scmp.eq.s32.totalorder %s22, 0
      %p146 = por %p144, %p145
      %p147 = scmp.ne.s32.totalorder %s133, %s134
      %p148 = scmp.eq.s32.totalorder %s23, 3
      %p149 = por %p147, %p148
      %p151 = scmp.ne.s32.totalorder %s134, %s150
      %p152 = scmp.eq.s32.totalorder %s23, 0
      %p153 = por %p151, %p152
      %p154 = scmp.le.s32.totalorder 1, %s17
      %p155 = scmp.lt.s32.totalorder %s17, 5
      %p156 = pnand %p154, %p155
      %p157 = pneg %p156
      // Predicated region
      $region9: #{tpu_custom_call.1} parent=5 // pred_check
        _
      $region10: #{tpu_custom_call.1} parent=5 // pred_check_branch
        %159 = sbr.rel (%p156) target = $region12
      $region11: #{tpu_custom_call.1} parent=5 // pred_region
        %s160 = ssub.s32 %s17, 1
        // Predicated region
        $region13: #{tpu_custom_call.1} parent=11 // pred_check
          %p161 = pneg %p76
        $region14: #{tpu_custom_call.1} parent=11 // pred_check_branch
          %163 = sbr.rel (%p161) target = $region16
        $region15: #{tpu_custom_call.1} parent=11 // pred_region
          %s165 = ssub.s32 4096, 4096
          %166 = vsyncadd [#allocation8], %s165
          %s167 = sshll.u32 [#allocation7], 4
          %s168 = int_to_ptr.vmem [resolvable:$true] %s167
          %173 = dma.hbm_to_vmem [thread:$0]  %s1, 4096, %s168, [#allocation8], 256, 256, 16
        $region16: #{tpu_custom_call.1} parent=11 // pred_fallthru
          _
        // Predicated region
        $region17: #{tpu_custom_call.1} parent=11 // pred_check
          %p174 = pneg %p97
        $region18: #{tpu_custom_call.1} parent=11 // pred_check_branch
          %176 = sbr.rel (%p174) target = $region20
        $region19: #{tpu_custom_call.1} parent=11 // pred_region
          %s178 = ssub.s32 4096, 4096
          %179 = vsyncadd [#allocation8], %s178
          %s180 = sshll.u32 [#allocation9], 4
          %s181 = int_to_ptr.vmem [resolvable:$true] %s180
          %186 = dma.hbm_to_vmem [thread:$0]  %s2, 4096, %s181, [#allocation8], 64, 64, 4
        $region20: #{tpu_custom_call.1} parent=11 // pred_fallthru
          _
        // Predicated region
        $region21: #{tpu_custom_call.1} parent=11 // pred_check
          %p187 = pneg %p118
        $region22: #{tpu_custom_call.1} parent=11 // pred_check_branch
          %189 = sbr.rel (%p187) target = $region24
        $region23: #{tpu_custom_call.1} parent=11 // pred_region
          _
        $region24: #{tpu_custom_call.1} parent=11 // pred_fallthru
          _
      $region12: #{tpu_custom_call.1} parent=5 // pred_fallthru
        _
      %p190 = scmp.lt.s32.totalorder %s17, 4
      // Predicated region
      $region25: #{tpu_custom_call.1} parent=5 // pred_check
        %p191 = pneg %p190
      $region26: #{tpu_custom_call.1} parent=5 // pred_check_branch
        %193 = sbr.rel (%p191) target = $region28
      $region27: #{tpu_custom_call.1} parent=5 // pred_region
        // Predicated region
        $region29: #{tpu_custom_call.1} parent=27 // pred_check
          %p194 = pneg %p49
        $region30: #{tpu_custom_call.1} parent=27 // pred_check_branch
          %196 = sbr.rel (%p194) target = $region32
        $region31: #{tpu_custom_call.1} parent=27 // pred_region
          %s197 = sand.u32 %s39, 1
          %s198 = scalar_lea.sflag [#allocation5], %s197
          %s199 = sand.u32 %s39, 1
          %s200 = smul.addr %s199, 128
          %s201 = scalar_lea.vmem [#allocation4], %s200
          %s203 = ssub.s32 2048, 2048
          %204 = vsyncadd %s198, %s203
          %s205 = smul.addr %s24, 16
          %s206 = smul.addr %s205, 128
          %s207 = scalar_lea.hbm %s0, %s206
          %s208 = sshll.u32 %s201, 4
          %s209 = int_to_ptr.vmem [resolvable:$true] %s208
          %214 = dma.hbm_to_vmem [thread:$0]  %s207, 2048, %s209, %s198, 128, 128, 8
        $region32: #{tpu_custom_call.1} parent=27 // pred_fallthru
          _
      $region28: #{tpu_custom_call.1} parent=5 // pred_fallthru
        _
      %p215 = scmp.le.s32.totalorder 1, %s17
      %p216 = scmp.lt.s32.totalorder %s17, 5
      %p217 = pnand %p215, %p216
      %p218 = pneg %p217
      // Predicated region
      $region33: #{tpu_custom_call.1} parent=5 // pred_check
        _
      $region34: #{tpu_custom_call.1} parent=5 // pred_check_branch
        %220 = sbr.rel (%p217) target = $region36
      $region35: #{tpu_custom_call.1} parent=5 // pred_region
        %s221 = ssub.s32 %s17, 1
        %s222 = sand.u32 %s42, 1
        %s223 = scalar_lea.sflag [#allocation5], %s222
        %s224 = sand.u32 %s42, 1
        %s225 = smul.addr %s224, 128
        %s226 = scalar_lea.vmem [#allocation4], %s225
        // Predicated region
        $region37: #{tpu_custom_call.1} parent=35 // pred_check
          %p227 = pneg %p55
        $region38: #{tpu_custom_call.1} parent=35 // pred_check_branch
          %229 = sbr.rel (%p227) target = $region40
        $region39: #{tpu_custom_call.1} parent=35 // pred_region
          %230 = dma.done %s223, 2048
        $region40: #{tpu_custom_call.1} parent=35 // pred_fallthru
          _
        // Predicated region
        $region41: #{tpu_custom_call.1} parent=35 // pred_check
          %p231 = pneg %p76
        $region42: #{tpu_custom_call.1} parent=35 // pred_check_branch
          %233 = sbr.rel (%p231) target = $region44
        $region43: #{tpu_custom_call.1} parent=35 // pred_region
          %234 = dma.done [#allocation8], 4096
        $region44: #{tpu_custom_call.1} parent=35 // pred_fallthru
          _
        // Predicated region
        $region45: #{tpu_custom_call.1} parent=35 // pred_check
          %p235 = pneg %p97
        $region46: #{tpu_custom_call.1} parent=35 // pred_check_branch
          %237 = sbr.rel (%p235) target = $region48
        $region47: #{tpu_custom_call.1} parent=35 // pred_region
          %238 = dma.done [#allocation8], 4096
        $region48: #{tpu_custom_call.1} parent=35 // pred_fallthru
          _
        %s239 = sand.u32 %s42, 1
        %s240 = scalar_lea.sflag [#allocation5], %s239
        %s241 = sand.u32 %s42, 1
        %s242 = smul.addr %s241, 128
        %s243 = scalar_lea.vmem [#allocation4], %s242
        %p244 = pneg %p55
        %p245 = pneg %p52
        %p246 = pneg %p76
        %p247 = pneg %p73
        %p248 = pneg %p97
        %p249 = pneg %p94
        %p250 = pneg %p118
        %p251 = pneg %p115
        %p252 = pneg %p146
        %p253 = pneg %p143
        %s254 = sand.u32 %s133, 1
        %s255 = scalar_lea.sflag [#allocation6], %s254
        %s256 = sand.u32 %s133, 1
        %s257 = smul.addr %s256, 64
        %s258 = scalar_lea.vmem [#allocation10], %s257
        %s259 = smul.u32 8, %s27
        %p262 = scmp.eq.s32.totalorder %s27, 0
        // Predicated region
        $region49: #{tpu_custom_call.1} parent=35 // pred_check
          %p263 = pneg %p262
        $region50: #{tpu_custom_call.1} parent=35 // pred_check_branch
          %265 = sbr.rel (%p263) target = $region52
        $region51: #{tpu_custom_call.1} parent=35 // pred_region
          %v266 = vld [vmem:[%s226] sm:$0xff]
          %v267 = vld [vmem:[%s226 + $0x8] sm:$0xff]
          %v268 = vld [vmem:[%s226 + $0x10] sm:$0xff]
          %v269 = vld [vmem:[%s226 + $0x18] sm:$0xff]
          %v270 = vld [vmem:[%s226 + $0x20] sm:$0xff]
          %v271 = vld [vmem:[%s226 + $0x28] sm:$0xff]
          %v272 = vld [vmem:[%s226 + $0x30] sm:$0xff]
          %v273 = vld [vmem:[%s226 + $0x38] sm:$0xff]
          %v274 = vld [vmem:[%s226 + $0x40] sm:$0xff]
          %v275 = vld [vmem:[%s226 + $0x48] sm:$0xff]
          %v276 = vld [vmem:[%s226 + $0x50] sm:$0xff]
          %v277 = vld [vmem:[%s226 + $0x58] sm:$0xff]
          %v278 = vld [vmem:[%s226 + $0x60] sm:$0xff]
          %v279 = vld [vmem:[%s226 + $0x68] sm:$0xff]
          %v280 = vld [vmem:[%s226 + $0x70] sm:$0xff]
          %v281 = vld [vmem:[%s226 + $0x78] sm:$0xff]
          %v282 = vpack.c.bf16 %v267, %v266
          %v283 = vpack.c.bf16 %v269, %v268
          %v284 = vpack.c.bf16 %v271, %v270
          %v285 = vpack.c.bf16 %v273, %v272
          %v286 = vpack.c.bf16 %v275, %v274
          %v287 = vpack.c.bf16 %v277, %v276
          %v288 = vpack.c.bf16 %v279, %v278
          %v289 = vpack.c.bf16 %v281, %v280
          %v290 = vld [vmem:[#allocation7] sm:$0xff]
          %v291 = vld [vmem:[#allocation7 + $0x8] sm:$0xff]
          %v292 = vld [vmem:[#allocation7 + $0x10] sm:$0xff]
          %v293 = vld [vmem:[#allocation7 + $0x18] sm:$0xff]
          %v294 = vld [vmem:[#allocation7 + $0x20] sm:$0xff]
          %v295 = vld [vmem:[#allocation7 + $0x28] sm:$0xff]
          %v296 = vld [vmem:[#allocation7 + $0x30] sm:$0xff]
          %v297 = vld [vmem:[#allocation7 + $0x38] sm:$0xff]
          %v298 = vld [vmem:[#allocation7 + $0x40] sm:$0xff]
          %v299 = vld [vmem:[#allocation7 + $0x48] sm:$0xff]
          %v300 = vld [vmem:[#allocation7 + $0x50] sm:$0xff]
          %v301 = vld [vmem:[#allocation7 + $0x58] sm:$0xff]
          %v302 = vld [vmem:[#allocation7 + $0x60] sm:$0xff]
          %v303 = vld [vmem:[#allocation7 + $0x68] sm:$0xff]
          %v304 = vld [vmem:[#allocation7 + $0x70] sm:$0xff]
          %v305 = vld [vmem:[#allocation7 + $0x78] sm:$0xff]
          %v306 = vld [vmem:[#allocation7 + $0x80] sm:$0xff]
          %v307 = vld [vmem:[#allocation7 + $0x88] sm:$0xff]
          %v308 = vld [vmem:[#allocation7 + $0x90] sm:$0xff]
          %v309 = vld [vmem:[#allocation7 + $0x98] sm:$0xff]
          %v310 = vld [vmem:[#allocation7 + $0xa0] sm:$0xff]
          %v311 = vld [vmem:[#allocation7 + $0xa8] sm:$0xff]
          %v312 = vld [vmem:[#allocation7 + $0xb0] sm:$0xff]
          %v313 = vld [vmem:[#allocation7 + $0xb8] sm:$0xff]
          %v314 = vld [vmem:[#allocation7 + $0xc0] sm:$0xff]
          %v315 = vld [vmem:[#allocation7 + $0xc8] sm:$0xff]
          %v316 = vld [vmem:[#allocation7 + $0xd0] sm:$0xff]
          %v317 = vld [vmem:[#allocation7 + $0xd8] sm:$0xff]
          %v318 = vld [vmem:[#allocation7 + $0xe0] sm:$0xff]
          %v319 = vld [vmem:[#allocation7 + $0xe8] sm:$0xff]
          %v320 = vld [vmem:[#allocation7 + $0xf0] sm:$0xff]
          %v321 = vld [vmem:[#allocation7 + $0xf8] sm:$0xff]
          %v354 = vunpack.c.l.b16 %v290
          %v355 = vunpack.c.h.b16 %v290
          %v356 = vunpack.c.l.b16 %v291
          %v357 = vunpack.c.h.b16 %v291
          %v358 = vunpack.c.l.b16 %v292
          %v359 = vunpack.c.h.b16 %v292
          %v360 = vunpack.c.l.b16 %v293
          %v361 = vunpack.c.h.b16 %v293
          %v362 = vunpack.c.l.b16 %v294
          %v363 = vunpack.c.h.b16 %v294
          %v364 = vunpack.c.l.b16 %v295
          %v365 = vunpack.c.h.b16 %v295
          %v366 = vunpack.c.l.b16 %v296
          %v367 = vunpack.c.h.b16 %v296
          %v368 = vunpack.c.l.b16 %v297
          %v369 = vunpack.c.h.b16 %v297
          %v370 = vunpack.c.l.b16 %v298
          %v371 = vunpack.c.h.b16 %v298
          %v372 = vunpack.c.l.b16 %v299
          %v373 = vunpack.c.h.b16 %v299
          %v374 = vunpack.c.l.b16 %v300
          %v375 = vunpack.c.h.b16 %v300
          %v376 = vunpack.c.l.b16 %v301
          %v377 = vunpack.c.h.b16 %v301
          %v378 = vunpack.c.l.b16 %v302
          %v379 = vunpack.c.h.b16 %v302
          %v380 = vunpack.c.l.b16 %v303
          %v381 = vunpack.c.h.b16 %v303
          %v382 = vunpack.c.l.b16 %v304
          %v383 = vunpack.c.h.b16 %v304
          %v384 = vunpack.c.l.b16 %v305
          %v385 = vunpack.c.h.b16 %v305
          %v386 = vunpack.c.l.b16 %v306
          %v387 = vunpack.c.h.b16 %v306
          %v388 = vunpack.c.l.b16 %v307
          %v389 = vunpack.c.h.b16 %v307
          %v390 = vunpack.c.l.b16 %v308
          %v391 = vunpack.c.h.b16 %v308
          %v392 = vunpack.c.l.b16 %v309
          %v393 = vunpack.c.h.b16 %v309
          %v394 = vunpack.c.l.b16 %v310
          %v395 = vunpack.c.h.b16 %v310
          %v396 = vunpack.c.l.b16 %v311
          %v397 = vunpack.c.h.b16 %v311
          %v398 = vunpack.c.l.b16 %v312
          %v399 = vunpack.c.h.b16 %v312
          %v400 = vunpack.c.l.b16 %v313
          %v401 = vunpack.c.h.b16 %v313
          %v402 = vunpack.c.l.b16 %v314
          %v403 = vunpack.c.h.b16 %v314
          %v404 = vunpack.c.l.b16 %v315
          %v405 = vunpack.c.h.b16 %v315
          %v406 = vunpack.c.l.b16 %v316
          %v407 = vunpack.c.h.b16 %v316
          %v408 = vunpack.c.l.b16 %v317
          %v409 = vunpack.c.h.b16 %v317
          %v410 = vunpack.c.l.b16 %v318
          %v411 = vunpack.c.h.b16 %v318
          %v412 = vunpack.c.l.b16 %v319
          %v413 = vunpack.c.h.b16 %v319
          %v414 = vunpack.c.l.b16 %v320
          %v415 = vunpack.c.h.b16 %v320
          %v416 = vunpack.c.l.b16 %v321
          %v417 = vunpack.c.h.b16 %v321
          %v418 = vpack.c.b16 %v358, %v354
          %v419 = vpack.c.b16 %v359, %v355
          %v420 = vpack.c.b16 %v360, %v356
          %v421 = vpack.c.b16 %v361, %v357
          %v422 = vpack.c.b16 %v366, %v362
          %v423 = vpack.c.b16 %v367, %v363
          %v424 = vpack.c.b16 %v368, %v364
          %v425 = vpack.c.b16 %v369, %v365
          %v426 = vpack.c.b16 %v374, %v370
          %v427 = vpack.c.b16 %v375, %v371
          %v428 = vpack.c.b16 %v376, %v372
          %v429 = vpack.c.b16 %v377, %v373
          %v430 = vpack.c.b16 %v382, %v378
          %v431 = vpack.c.b16 %v383, %v379
          %v432 = vpack.c.b16 %v384, %v380
          %v433 = vpack.c.b16 %v385, %v381
          %v434 = vpack.c.b16 %v390, %v386
          %v435 = vpack.c.b16 %v391, %v387
          %v436 = vpack.c.b16 %v392, %v388
          %v437 = vpack.c.b16 %v393, %v389
          %v438 = vpack.c.b16 %v398, %v394
          %v439 = vpack.c.b16 %v399, %v395
          %v440 = vpack.c.b16 %v400, %v396
          %v441 = vpack.c.b16 %v401, %v397
          %v442 = vpack.c.b16 %v406, %v402
          %v443 = vpack.c.b16 %v407, %v403
          %v444 = vpack.c.b16 %v408, %v404
          %v445 = vpack.c.b16 %v409, %v405
          %v446 = vpack.c.b16 %v414, %v410
          %v447 = vpack.c.b16 %v415, %v411
          %v448 = vpack.c.b16 %v416, %v412
          %v449 = vpack.c.b16 %v417, %v413
          %482 = vmatprep.subr.bf16.mxu0 %v447
          %483 = vmatpush1.bf16.msra.mxu0 %v446
          %484 = vmatprep.subr.bf16.mxu0 %v443
          %485 = vmatpush1.bf16.msra.mxu0 %v442
          %486 = vmatprep.subr.bf16.mxu0 %v439
          %487 = vmatpush1.bf16.msra.mxu0 %v438
          %488 = vmatprep.subr.bf16.mxu0 %v435
          %489 = vmatpush1.bf16.msra.mxu0 %v434
          %490 = vmatprep.subr.bf16.mxu0 %v431
          %491 = vmatpush1.bf16.msra.mxu0 %v430
          %492 = vmatprep.subr.bf16.mxu0 %v427
          %493 = vmatpush1.bf16.msra.mxu0 %v426
          %494 = vmatprep.subr.bf16.mxu0 %v423
          %495 = vmatpush1.bf16.msra.mxu0 %v422
          %496 = vmatprep.subr.bf16.mxu0 %v419
          %497 = vmatpush1.bf16.msra.mxu0 %v418
          %498 = vmatprep.subr.bf16.mxu0 0
          %499 = vmatpush2.bf16.msra.mxu0 0
          %500 = vmatprep.subr.bf16.mxu0 0
          %501 = vmatpush2.bf16.msra.mxu0 0
          %502 = vmatprep.subr.bf16.mxu0 0
          %503 = vmatpush2.bf16.msra.mxu0 0
          %504 = vmatprep.subr.bf16.mxu0 0
          %505 = vmatpush2.bf16.msra.mxu0 0
          %506 = vmatprep.subr.bf16.mxu0 0
          %507 = vmatpush2.bf16.msra.mxu0 0
          %508 = vmatprep.subr.bf16.mxu0 0
          %509 = vmatpush2.bf16.msra.mxu0 0
          %510 = vmatprep.subr.bf16.mxu0 0
          %511 = vmatpush2.bf16.msra.mxu0 0
          %512 = vmatprep.subr.bf16.mxu0 0
          %513 = vmatpush2.bf16.msra.mxu0 0
          %514 = vmatprep.mubr.bf16.mxu0 0
          %515 = vmatmul.mubr.bf16.gmra.mxu0 %v282
          %v516 = vpop.f32.mrf.mxu0
          %v517 = vadd.f32 0.0, %v516
          %v518 = vpop.f32.mrf.mxu0
          %v519 = vadd.f32 0.0, %v518
          %v520 = vpop.f32.mrf.mxu0
          %v521 = vadd.f32 0.0, %v520
          %v522 = vpop.f32.mrf.mxu0
          %v523 = vadd.f32 0.0, %v522
          %524 = vmatprep.mubr.bf16.mxu0 0
          %525 = vmatmul.mubr.bf16.gmra.mxu0 %v283
          %v526 = vpop.f32.mrf.mxu0
          %v527 = vadd.f32 0.0, %v526
          %v528 = vpop.f32.mrf.mxu0
          %v529 = vadd.f32 0.0, %v528
          %v530 = vpop.f32.mrf.mxu0
          %v531 = vadd.f32 0.0, %v530
          %v532 = vpop.f32.mrf.mxu0
          %v533 = vadd.f32 0.0, %v532
          %534 = vmatprep.mubr.bf16.mxu0 0
          %535 = vmatmul.mubr.bf16.gmra.mxu0 %v284
          %v536 = vpop.f32.mrf.mxu0
          %v537 = vadd.f32 0.0, %v536
          %v538 = vpop.f32.mrf.mxu0
          %v539 = vadd.f32 0.0, %v538
          %v540 = vpop.f32.mrf.mxu0
          %v541 = vadd.f32 0.0, %v540
          %v542 = vpop.f32.mrf.mxu0
          %v543 = vadd.f32 0.0, %v542
          %544 = vmatprep.mubr.bf16.mxu0 0
          %545 = vmatmul.mubr.bf16.gmra.mxu0 %v285
          %v546 = vpop.f32.mrf.mxu0
          %v547 = vadd.f32 0.0, %v546
          %v548 = vpop.f32.mrf.mxu0
          %v549 = vadd.f32 0.0, %v548
          %v550 = vpop.f32.mrf.mxu0
          %v551 = vadd.f32 0.0, %v550
          %v552 = vpop.f32.mrf.mxu0
          %v553 = vadd.f32 0.0, %v552
          %554 = vmatprep.mubr.bf16.mxu0 0
          %555 = vmatmul.mubr.bf16.gmra.mxu0 %v286
          %v556 = vpop.f32.mrf.mxu0
          %v557 = vadd.f32 0.0, %v556
          %v558 = vpop.f32.mrf.mxu0
          %v559 = vadd.f32 0.0, %v558
          %v560 = vpop.f32.mrf.mxu0
          %v561 = vadd.f32 0.0, %v560
          %v562 = vpop.f32.mrf.mxu0
          %v563 = vadd.f32 0.0, %v562
          %564 = vmatprep.mubr.bf16.mxu0 0
          %565 = vmatmul.mubr.bf16.gmra.mxu0 %v287
          %v566 = vpop.f32.mrf.mxu0
          %v567 = vadd.f32 0.0, %v566
          %v568 = vpop.f32.mrf.mxu0
          %v569 = vadd.f32 0.0, %v568
          %v570 = vpop.f32.mrf.mxu0
          %v571 = vadd.f32 0.0, %v570
          %v572 = vpop.f32.mrf.mxu0
          %v573 = vadd.f32 0.0, %v572
          %574 = vmatprep.mubr.bf16.mxu0 0
          %575 = vmatmul.mubr.bf16.gmra.mxu0 %v288
          %v576 = vpop.f32.mrf.mxu0
          %v577 = vadd.f32 0.0, %v576
          %v578 = vpop.f32.mrf.mxu0
          %v579 = vadd.f32 0.0, %v578
          %v580 = vpop.f32.mrf.mxu0
          %v581 = vadd.f32 0.0, %v580
          %v582 = vpop.f32.mrf.mxu0
          %v583 = vadd.f32 0.0, %v582
          %584 = vmatprep.mubr.bf16.mxu0 0
          %585 = vmatmul.mubr.bf16.gmra.mxu0 %v289
          %v586 = vpop.f32.mrf.mxu0
          %v587 = vadd.f32 0.0, %v586
          %v588 = vpop.f32.mrf.mxu0
          %v589 = vadd.f32 0.0, %v588
          %v590 = vpop.f32.mrf.mxu0
          %v591 = vadd.f32 0.0, %v590
          %v592 = vpop.f32.mrf.mxu0
          %v593 = vadd.f32 0.0, %v592
          %594 = vdwg.mxu0
          %595 = vmatprep.subr.bf16.mxu0 %v449
          %596 = vmatpush1.bf16.msra.mxu0 %v448
          %597 = vmatprep.subr.bf16.mxu0 %v445
          %598 = vmatpush1.bf16.msra.mxu0 %v444
          %599 = vmatprep.subr.bf16.mxu0 %v441
          %600 = vmatpush1.bf16.msra.mxu0 %v440
          %601 = vmatprep.subr.bf16.mxu0 %v437
          %602 = vmatpush1.bf16.msra.mxu0 %v436
          %603 = vmatprep.subr.bf16.mxu0 %v433
          %604 = vmatpush1.bf16.msra.mxu0 %v432
          %605 = vmatprep.subr.bf16.mxu0 %v429
          %606 = vmatpush1.bf16.msra.mxu0 %v428
          %607 = vmatprep.subr.bf16.mxu0 %v425
          %608 = vmatpush1.bf16.msra.mxu0 %v424
          %609 = vmatprep.subr.bf16.mxu0 %v421
          %610 = vmatpush1.bf16.msra.mxu0 %v420
          %611 = vmatprep.subr.bf16.mxu0 0
          %612 = vmatpush2.bf16.msra.mxu0 0
          %613 = vmatprep.subr.bf16.mxu0 0
          %614 = vmatpush2.bf16.msra.mxu0 0
          %615 = vmatprep.subr.bf16.mxu0 0
          %616 = vmatpush2.bf16.msra.mxu0 0
          %617 = vmatprep.subr.bf16.mxu0 0
          %618 = vmatpush2.bf16.msra.mxu0 0
          %619 = vmatprep.subr.bf16.mxu0 0
          %620 = vmatpush2.bf16.msra.mxu0 0
          %621 = vmatprep.subr.bf16.mxu0 0
          %622 = vmatpush2.bf16.msra.mxu0 0
          %623 = vmatprep.subr.bf16.mxu0 0
          %624 = vmatpush2.bf16.msra.mxu0 0
          %625 = vmatprep.subr.bf16.mxu0 0
          %626 = vmatpush2.bf16.msra.mxu0 0
          %627 = vmatprep.mubr.bf16.mxu0 0
          %628 = vmatmul.mubr.bf16.gmra.mxu0 %v282
          %v629 = vpop.f32.mrf.mxu0
          %v630 = vadd.f32 0.0, %v629
          %v631 = vpop.f32.mrf.mxu0
          %v632 = vadd.f32 0.0, %v631
          %v633 = vpop.f32.mrf.mxu0
          %v634 = vadd.f32 0.0, %v633
          %v635 = vpop.f32.mrf.mxu0
          %v636 = vadd.f32 0.0, %v635
          %637 = vmatprep.mubr.bf16.mxu0 0
          %638 = vmatmul.mubr.bf16.gmra.mxu0 %v283
          %v639 = vpop.f32.mrf.mxu0
          %v640 = vadd.f32 0.0, %v639
          %v641 = vpop.f32.mrf.mxu0
          %v642 = vadd.f32 0.0, %v641
          %v643 = vpop.f32.mrf.mxu0
          %v644 = vadd.f32 0.0, %v643
          %v645 = vpop.f32.mrf.mxu0
          %v646 = vadd.f32 0.0, %v645
          %647 = vmatprep.mubr.bf16.mxu0 0
          %648 = vmatmul.mubr.bf16.gmra.mxu0 %v284
          %v649 = vpop.f32.mrf.mxu0
          %v650 = vadd.f32 0.0, %v649
          %v651 = vpop.f32.mrf.mxu0
          %v652 = vadd.f32 0.0, %v651
          %v653 = vpop.f32.mrf.mxu0
          %v654 = vadd.f32 0.0, %v653
          %v655 = vpop.f32.mrf.mxu0
          %v656 = vadd.f32 0.0, %v655
          %657 = vmatprep.mubr.bf16.mxu0 0
          %658 = vmatmul.mubr.bf16.gmra.mxu0 %v285
          %v659 = vpop.f32.mrf.mxu0
          %v660 = vadd.f32 0.0, %v659
          %v661 = vpop.f32.mrf.mxu0
          %v662 = vadd.f32 0.0, %v661
          %v663 = vpop.f32.mrf.mxu0
          %v664 = vadd.f32 0.0, %v663
          %v665 = vpop.f32.mrf.mxu0
          %v666 = vadd.f32 0.0, %v665
          %667 = vmatprep.mubr.bf16.mxu0 0
          %668 = vmatmul.mubr.bf16.gmra.mxu0 %v286
          %v669 = vpop.f32.mrf.mxu0
          %v670 = vadd.f32 0.0, %v669
          %v671 = vpop.f32.mrf.mxu0
          %v672 = vadd.f32 0.0, %v671
          %v673 = vpop.f32.mrf.mxu0
          %v674 = vadd.f32 0.0, %v673
          %v675 = vpop.f32.mrf.mxu0
          %v676 = vadd.f32 0.0, %v675
          %677 = vmatprep.mubr.bf16.mxu0 0
          %678 = vmatmul.mubr.bf16.gmra.mxu0 %v287
          %v679 = vpop.f32.mrf.mxu0
          %v680 = vadd.f32 0.0, %v679
          %v681 = vpop.f32.mrf.mxu0
          %v682 = vadd.f32 0.0, %v681
          %v683 = vpop.f32.mrf.mxu0
          %v684 = vadd.f32 0.0, %v683
          %v685 = vpop.f32.mrf.mxu0
          %v686 = vadd.f32 0.0, %v685
          %687 = vmatprep.mubr.bf16.mxu0 0
          %688 = vmatmul.mubr.bf16.gmra.mxu0 %v288
          %v689 = vpop.f32.mrf.mxu0
          %v690 = vadd.f32 0.0, %v689
          %v691 = vpop.f32.mrf.mxu0
          %v692 = vadd.f32 0.0, %v691
          %v693 = vpop.f32.mrf.mxu0
          %v694 = vadd.f32 0.0, %v693
          %v695 = vpop.f32.mrf.mxu0
          %v696 = vadd.f32 0.0, %v695
          %697 = vmatprep.mubr.bf16.mxu0 0
          %698 = vmatmul.mubr.bf16.gmra.mxu0 %v289
          %v699 = vpop.f32.mrf.mxu0
          %v700 = vadd.f32 0.0, %v699
          %v701 = vpop.f32.mrf.mxu0
          %v702 = vadd.f32 0.0, %v701
          %v703 = vpop.f32.mrf.mxu0
          %v704 = vadd.f32 0.0, %v703
          %v705 = vpop.f32.mrf.mxu0
          %v706 = vadd.f32 0.0, %v705
          %707 = vdwg.mxu0
          %v708 = vpack.c.bf16 %v521, %v517
          %v709 = vpack.c.bf16 %v523, %v519
          %v710 = vpack.c.bf16 %v634, %v630
          %v711 = vpack.c.bf16 %v636, %v632
          %v712 = vpack.c.bf16 %v531, %v527
          %v713 = vpack.c.bf16 %v533, %v529
          %v714 = vpack.c.bf16 %v644, %v640
          %v715 = vpack.c.bf16 %v646, %v642
          %v716 = vpack.c.bf16 %v541, %v537
          %v717 = vpack.c.bf16 %v543, %v539
          %v718 = vpack.c.bf16 %v654, %v650
          %v719 = vpack.c.bf16 %v656, %v652
          %v720 = vpack.c.bf16 %v551, %v547
          %v721 = vpack.c.bf16 %v553, %v549
          %v722 = vpack.c.bf16 %v664, %v660
          %v723 = vpack.c.bf16 %v666, %v662
          %v724 = vpack.c.bf16 %v561, %v557
          %v725 = vpack.c.bf16 %v563, %v559
          %v726 = vpack.c.bf16 %v674, %v670
          %v727 = vpack.c.bf16 %v676, %v672
          %v728 = vpack.c.bf16 %v571, %v567
          %v729 = vpack.c.bf16 %v573, %v569
          %v730 = vpack.c.bf16 %v684, %v680
          %v731 = vpack.c.bf16 %v686, %v682
          %v732 = vpack.c.bf16 %v581, %v577
          %v733 = vpack.c.bf16 %v583, %v579
          %v734 = vpack.c.bf16 %v694, %v690
          %v735 = vpack.c.bf16 %v696, %v692
          %v736 = vpack.c.bf16 %v591, %v587
          %v737 = vpack.c.bf16 %v593, %v589
          %v738 = vpack.c.bf16 %v704, %v700
          %v739 = vpack.c.bf16 %v706, %v702
          %v772 = vunpack.c.l.b16 %v708
          %v773 = vunpack.c.l.b16 %v709
          %v774 = vunpack.c.l.b16 %v710
          %v775 = vunpack.c.l.b16 %v711
          %v776 = vunpack.c.h.b16 %v708
          %v777 = vunpack.c.h.b16 %v709
          %v778 = vunpack.c.h.b16 %v710
          %v779 = vunpack.c.h.b16 %v711
          %v780 = vunpack.c.l.b16 %v712
          %v781 = vunpack.c.l.b16 %v713
          %v782 = vunpack.c.l.b16 %v714
          %v783 = vunpack.c.l.b16 %v715
          %v784 = vunpack.c.h.b16 %v712
          %v785 = vunpack.c.h.b16 %v713
          %v786 = vunpack.c.h.b16 %v714
          %v787 = vunpack.c.h.b16 %v715
          %v788 = vunpack.c.l.b16 %v716
          %v789 = vunpack.c.l.b16 %v717
          %v790 = vunpack.c.l.b16 %v718
          %v791 = vunpack.c.l.b16 %v719
          %v792 = vunpack.c.h.b16 %v716
          %v793 = vunpack.c.h.b16 %v717
          %v794 = vunpack.c.h.b16 %v718
          %v795 = vunpack.c.h.b16 %v719
          %v796 = vunpack.c.l.b16 %v720
          %v797 = vunpack.c.l.b16 %v721
          %v798 = vunpack.c.l.b16 %v722
          %v799 = vunpack.c.l.b16 %v723
          %v800 = vunpack.c.h.b16 %v720
          %v801 = vunpack.c.h.b16 %v721
          %v802 = vunpack.c.h.b16 %v722
          %v803 = vunpack.c.h.b16 %v723
          %v804 = vunpack.c.l.b16 %v724
          %v805 = vunpack.c.l.b16 %v725
          %v806 = vunpack.c.l.b16 %v726
          %v807 = vunpack.c.l.b16 %v727
          %v808 = vunpack.c.h.b16 %v724
          %v809 = vunpack.c.h.b16 %v725
          %v810 = vunpack.c.h.b16 %v726
          %v811 = vunpack.c.h.b16 %v727
          %v812 = vunpack.c.l.b16 %v728
          %v813 = vunpack.c.l.b16 %v729
          %v814 = vunpack.c.l.b16 %v730
          %v815 = vunpack.c.l.b16 %v731
          %v816 = vunpack.c.h.b16 %v728
          %v817 = vunpack.c.h.b16 %v729
          %v818 = vunpack.c.h.b16 %v730
          %v819 = vunpack.c.h.b16 %v731
          %v820 = vunpack.c.l.b16 %v732
          %v821 = vunpack.c.l.b16 %v733
          %v822 = vunpack.c.l.b16 %v734
          %v823 = vunpack.c.l.b16 %v735
          %v824 = vunpack.c.h.b16 %v732
          %v825 = vunpack.c.h.b16 %v733
          %v826 = vunpack.c.h.b16 %v734
          %v827 = vunpack.c.h.b16 %v735
          %v828 = vunpack.c.l.b16 %v736
          %v829 = vunpack.c.l.b16 %v737
          %v830 = vunpack.c.l.b16 %v738
          %v831 = vunpack.c.l.b16 %v739
          %v832 = vunpack.c.h.b16 %v736
          %v833 = vunpack.c.h.b16 %v737
          %v834 = vunpack.c.h.b16 %v738
          %v835 = vunpack.c.h.b16 %v739
          %v836 = vpack.c.b16 %v773, %v772
          %v837 = vpack.c.b16 %v775, %v774
          %v838 = vpack.c.b16 %v777, %v776
          %v839 = vpack.c.b16 %v779, %v778
          %v840 = vpack.c.b16 %v781, %v780
          %v841 = vpack.c.b16 %v783, %v782
          %v842 = vpack.c.b16 %v785, %v784
          %v843 = vpack.c.b16 %v787, %v786
          %v844 = vpack.c.b16 %v789, %v788
          %v845 = vpack.c.b16 %v791, %v790
          %v846 = vpack.c.b16 %v793, %v792
          %v847 = vpack.c.b16 %v795, %v794
          %v848 = vpack.c.b16 %v797, %v796
          %v849 = vpack.c.b16 %v799, %v798
          %v850 = vpack.c.b16 %v801, %v800
          %v851 = vpack.c.b16 %v803, %v802
          %v852 = vpack.c.b16 %v805, %v804
          %v853 = vpack.c.b16 %v807, %v806
          %v854 = vpack.c.b16 %v809, %v808
          %v855 = vpack.c.b16 %v811, %v810
          %v856 = vpack.c.b16 %v813, %v812
          %v857 = vpack.c.b16 %v815, %v814
          %v858 = vpack.c.b16 %v817, %v816
          %v859 = vpack.c.b16 %v819, %v818
          %v860 = vpack.c.b16 %v821, %v820
          %v861 = vpack.c.b16 %v823, %v822
          %v862 = vpack.c.b16 %v825, %v824
          %v863 = vpack.c.b16 %v827, %v826
          %v864 = vpack.c.b16 %v829, %v828
          %v865 = vpack.c.b16 %v831, %v830
          %v866 = vpack.c.b16 %v833, %v832
          %v867 = vpack.c.b16 %v835, %v834
          %900 = vst [vmem:[#allocation2] sm:$0xff] %v836
          %901 = vst [vmem:[#allocation2 + $0x8] sm:$0xff] %v837
          %902 = vst [vmem:[#allocation2 + $0x10] sm:$0xff] %v838
          %903 = vst [vmem:[#allocation2 + $0x18] sm:$0xff] %v839
          %904 = vst [vmem:[#allocation2 + $0x20] sm:$0xff] %v840
          %905 = vst [vmem:[#allocation2 + $0x28] sm:$0xff] %v841
          %906 = vst [vmem:[#allocation2 + $0x30] sm:$0xff] %v842
          %907 = vst [vmem:[#allocation2 + $0x38] sm:$0xff] %v843
          %908 = vst [vmem:[#allocation2 + $0x40] sm:$0xff] %v844
          %909 = vst [vmem:[#allocation2 + $0x48] sm:$0xff] %v845
          %910 = vst [vmem:[#allocation2 + $0x50] sm:$0xff] %v846
          %911 = vst [vmem:[#allocation2 + $0x58] sm:$0xff] %v847
          %912 = vst [vmem:[#allocation2 + $0x60] sm:$0xff] %v848
          %913 = vst [vmem:[#allocation2 + $0x68] sm:$0xff] %v849
          %914 = vst [vmem:[#allocation2 + $0x70] sm:$0xff] %v850
          %915 = vst [vmem:[#allocation2 + $0x78] sm:$0xff] %v851
          %916 = vst [vmem:[#allocation2 + $0x80] sm:$0xff] %v852
          %917 = vst [vmem:[#allocation2 + $0x88] sm:$0xff] %v853
          %918 = vst [vmem:[#allocation2 + $0x90] sm:$0xff] %v854
          %919 = vst [vmem:[#allocation2 + $0x98] sm:$0xff] %v855
          %920 = vst [vmem:[#allocation2 + $0xa0] sm:$0xff] %v856
          %921 = vst [vmem:[#allocation2 + $0xa8] sm:$0xff] %v857
          %922 = vst [vmem:[#allocation2 + $0xb0] sm:$0xff] %v858
          %923 = vst [vmem:[#allocation2 + $0xb8] sm:$0xff] %v859
          %924 = vst [vmem:[#allocation2 + $0xc0] sm:$0xff] %v860
          %925 = vst [vmem:[#allocation2 + $0xc8] sm:$0xff] %v861
          %926 = vst [vmem:[#allocation2 + $0xd0] sm:$0xff] %v862
          %927 = vst [vmem:[#allocation2 + $0xd8] sm:$0xff] %v863
          %928 = vst [vmem:[#allocation2 + $0xe0] sm:$0xff] %v864
          %929 = vst [vmem:[#allocation2 + $0xe8] sm:$0xff] %v865
          %930 = vst [vmem:[#allocation2 + $0xf0] sm:$0xff] %v866
          %931 = vst [vmem:[#allocation2 + $0xf8] sm:$0xff] %v867
        $region52: #{tpu_custom_call.1} parent=35 // pred_fallthru
          _
        %s932 = smul.u32 %s27, 64
        %s933 = sshra.s32 %s932, 3
        %s934 = sand.u32 %s932, 7
        %s935 = smul.u32 %s933, 4
        %s936 = smul.addr %s935, 4
        %s937 = scalar_lea.vmem [#allocation2], %s936
        %v938 = vld [vmem:[%s937] sm:$0xf]
        %v939 = vld [vmem:[%s937 + $0x10] sm:$0xf]
        %v940 = vld [vmem:[%s937 + $0x20] sm:$0xf]
        %v941 = vld [vmem:[%s937 + $0x30] sm:$0xf]
        %v942 = vld [vmem:[%s937 + $0x40] sm:$0xf]
        %v943 = vld [vmem:[%s937 + $0x50] sm:$0xf]
        %v944 = vld [vmem:[%s937 + $0x60] sm:$0xf]
        %v945 = vld [vmem:[%s937 + $0x70] sm:$0xf]
        %v946 = vmul.bf16 %v938, 1040203264
        %v947 = vmul.bf16 %v939, 1040203264
        %v948 = vmul.bf16 %v940, 1040203264
        %v949 = vmul.bf16 %v941, 1040203264
        %v950 = vmul.bf16 %v942, 1040203264
        %v951 = vmul.bf16 %v943, 1040203264
        %v952 = vmul.bf16 %v944, 1040203264
        %v953 = vmul.bf16 %v945, 1040203264
        %v954 = vld [vmem:[#allocation2] sm:$0xf]
        %v955 = vld [vmem:[#allocation2 + $0x10] sm:$0xf]
        %v956 = vld [vmem:[#allocation2 + $0x20] sm:$0xf]
        %v957 = vld [vmem:[#allocation2 + $0x30] sm:$0xf]
        %v958 = vld [vmem:[#allocation2 + $0x40] sm:$0xf]
        %v959 = vld [vmem:[#allocation2 + $0x50] sm:$0xf]
        %v960 = vld [vmem:[#allocation2 + $0x60] sm:$0xf]
        %v961 = vld [vmem:[#allocation2 + $0x70] sm:$0xf]
        %v962 = vld [vmem:[#allocation2 + $0x80] sm:$0xf]
        %v963 = vld [vmem:[#allocation2 + $0x90] sm:$0xf]
        %v964 = vld [vmem:[#allocation2 + $0xa0] sm:$0xf]
        %v965 = vld [vmem:[#allocation2 + $0xb0] sm:$0xf]
        %v966 = vld [vmem:[#allocation2 + $0xc0] sm:$0xf]
        %v967 = vld [vmem:[#allocation2 + $0xd0] sm:$0xf]
        %v968 = vld [vmem:[#allocation2 + $0xe0] sm:$0xf]
        %v969 = vld [vmem:[#allocation2 + $0xf0] sm:$0xf]
        %v978 = vunpack.c.l.b16 %v946
        %v979 = vunpack.c.l.b16 %v947
        %v980 = vunpack.c.l.b16 %v948
        %v981 = vunpack.c.l.b16 %v949
        %v982 = vunpack.c.l.b16 %v950
        %v983 = vunpack.c.l.b16 %v951
        %v984 = vunpack.c.l.b16 %v952
        %v985 = vunpack.c.l.b16 %v953
        %v986 = vpack.c.b16 %v979, %v978
        %v987 = vpack.c.b16 %v981, %v980
        %v988 = vpack.c.b16 %v983, %v982
        %v989 = vpack.c.b16 %v985, %v984
        %v1006 = vunpack.c.l.b16 %v954
        %v1007 = vunpack.c.l.b16 %v955
        %v1008 = vunpack.c.l.b16 %v956
        %v1009 = vunpack.c.l.b16 %v957
        %v1010 = vunpack.c.l.b16 %v958
        %v1011 = vunpack.c.l.b16 %v959
        %v1012 = vunpack.c.l.b16 %v960
        %v1013 = vunpack.c.l.b16 %v961
        %v1014 = vunpack.c.l.b16 %v962
        %v1015 = vunpack.c.l.b16 %v963
        %v1016 = vunpack.c.l.b16 %v964
        %v1017 = vunpack.c.l.b16 %v965
        %v1018 = vunpack.c.l.b16 %v966
        %v1019 = vunpack.c.l.b16 %v967
        %v1020 = vunpack.c.l.b16 %v968
        %v1021 = vunpack.c.l.b16 %v969
        %v1022 = vpack.c.b16 %v1007, %v1006
        %v1023 = vpack.c.b16 %v1009, %v1008
        %v1024 = vpack.c.b16 %v1011, %v1010
        %v1025 = vpack.c.b16 %v1013, %v1012
        %v1026 = vpack.c.b16 %v1015, %v1014
        %v1027 = vpack.c.b16 %v1017, %v1016
        %v1028 = vpack.c.b16 %v1019, %v1018
        %v1029 = vpack.c.b16 %v1021, %v1020
        %vm1030 = vcmask 523264
        %v1032 = vsel %vm1030, %v986, 0
        %v1035 = vsel %vm1030, %v987, 0
        %v1038 = vsel %vm1030, %v988, 0
        %v1041 = vsel %vm1030, %v989, 0
        %v1044 = vsel %vm1030, %v1022, 0
        %v1047 = vsel %vm1030, %v1023, 0
        %v1050 = vsel %vm1030, %v1024, 0
        %v1053 = vsel %vm1030, %v1025, 0
        %v1056 = vsel %vm1030, %v1026, 0
        %v1059 = vsel %vm1030, %v1027, 0
        %v1062 = vsel %vm1030, %v1028, 0
        %v1065 = vsel %vm1030, %v1029, 0
        %1067 = vmatprep.subr.bf16.mxu0 0
        %1068 = vmatpush1.bf16.xpose.msra.mxu0 %v1065
        %1069 = vmatprep.subr.bf16.mxu0 0
        %1070 = vmatpush1.bf16.xpose.msra.mxu0 %v1062
        %1071 = vmatprep.subr.bf16.mxu0 0
        %1072 = vmatpush1.bf16.xpose.msra.mxu0 %v1059
        %1073 = vmatprep.subr.bf16.mxu0 0
        %1074 = vmatpush1.bf16.xpose.msra.mxu0 %v1056
        %1075 = vmatprep.subr.bf16.mxu0 0
        %1076 = vmatpush1.bf16.xpose.msra.mxu0 %v1053
        %1077 = vmatprep.subr.bf16.mxu0 0
        %1078 = vmatpush1.bf16.xpose.msra.mxu0 %v1050
        %1079 = vmatprep.subr.bf16.mxu0 0
        %1080 = vmatpush1.bf16.xpose.msra.mxu0 %v1047
        %1081 = vmatprep.subr.bf16.mxu0 0
        %1082 = vmatpush1.bf16.xpose.msra.mxu0 %v1044
        %1083 = vmatprep.subr.bf16.mxu0 0
        %1084 = vmatpush2.bf16.xpose.msra.mxu0 0
        %1085 = vmatprep.subr.bf16.mxu0 0
        %1086 = vmatpush2.bf16.xpose.msra.mxu0 0
        %1087 = vmatprep.subr.bf16.mxu0 0
        %1088 = vmatpush2.bf16.xpose.msra.mxu0 0
        %1089 = vmatprep.subr.bf16.mxu0 0
        %1090 = vmatpush2.bf16.xpose.msra.mxu0 0
        %1091 = vmatprep.subr.bf16.mxu0 0
        %1092 = vmatpush2.bf16.xpose.msra.mxu0 0
        %1093 = vmatprep.subr.bf16.mxu0 0
        %1094 = vmatpush2.bf16.xpose.msra.mxu0 0
        %1095 = vmatprep.subr.bf16.mxu0 0
        %1096 = vmatpush2.bf16.xpose.msra.mxu0 0
        %1097 = vmatprep.subr.bf16.mxu0 0
        %1098 = vmatpush2.bf16.xpose.msra.mxu0 0
        %1099 = vmatprep.mubr.bf16.mxu0 0
        %1100 = vmatmul.mubr.bf16.gmra.mxu0 %v1032
        %v1101 = vpop.f32.mrf.mxu0
        %v1102 = vadd.f32 0.0, %v1101
        %v1103 = vpop.f32.mrf.mxu0
        %v1104 = vpop.f32.mrf.mxu0
        %v1105 = vadd.f32 0.0, %v1104
        %v1106 = vpop.f32.mrf.mxu0
        %1107 = vmatprep.mubr.bf16.mxu0 0
        %1108 = vmatmul.mubr.bf16.gmra.mxu0 %v1035
        %v1109 = vpop.f32.mrf.mxu0
        %v1110 = vadd.f32 0.0, %v1109
        %v1111 = vpop.f32.mrf.mxu0
        %v1112 = vpop.f32.mrf.mxu0
        %v1113 = vadd.f32 0.0, %v1112
        %v1114 = vpop.f32.mrf.mxu0
        %1115 = vmatprep.mubr.bf16.mxu0 0
        %1116 = vmatmul.mubr.bf16.gmra.mxu0 %v1038
        %v1117 = vpop.f32.mrf.mxu0
        %v1118 = vadd.f32 0.0, %v1117
        %v1119 = vpop.f32.mrf.mxu0
        %v1120 = vpop.f32.mrf.mxu0
        %v1121 = vadd.f32 0.0, %v1120
        %v1122 = vpop.f32.mrf.mxu0
        %1123 = vmatprep.mubr.bf16.mxu0 0
        %1124 = vmatmul.mubr.bf16.gmra.mxu0 %v1041
        %v1125 = vpop.f32.mrf.mxu0
        %v1126 = vadd.f32 0.0, %v1125
        %v1127 = vpop.f32.mrf.mxu0
        %v1128 = vpop.f32.mrf.mxu0
        %v1129 = vadd.f32 0.0, %v1128
        %v1130 = vpop.f32.mrf.mxu0
        %1131 = vdwg.mxu0
        %1132 = vmax.xlane.f32.xlu0 %v1102
        %v1133 = vpop.xlane.xlu0 %1132
        %1134 = vmax.xlane.f32.xlu0 %v1105
        %v1135 = vpop.xlane.xlu0 %1134
        %1136 = vmax.xlane.f32.xlu0 %v1110
        %v1137 = vpop.xlane.xlu0 %1136
        %1138 = vmax.xlane.f32.xlu0 %v1113
        %v1139 = vpop.xlane.xlu0 %1138
        %1140 = vmax.xlane.f32.xlu0 %v1118
        %v1141 = vpop.xlane.xlu0 %1140
        %1142 = vmax.xlane.f32.xlu0 %v1121
        %v1143 = vpop.xlane.xlu0 %1142
        %1144 = vmax.xlane.f32.xlu0 %v1126
        %v1145 = vpop.xlane.xlu0 %1144
        %1146 = vmax.xlane.f32.xlu0 %v1129
        %v1147 = vpop.xlane.xlu0 %1146
        %v1148 = vsub.f32 %v1102, %v1133
        %v1149 = vsub.f32 %v1105, %v1135
        %v1150 = vsub.f32 %v1110, %v1137
        %v1151 = vsub.f32 %v1113, %v1139
        %v1152 = vsub.f32 %v1118, %v1141
        %v1153 = vsub.f32 %v1121, %v1143
        %v1154 = vsub.f32 %v1126, %v1145
        %v1155 = vsub.f32 %v1129, %v1147
        %v1156 = vmul.f32 %v1148, 1.442695
        %v1157 = vpow.pop %v1156
        %v1158 = vmul.f32 %v1149, 1.442695
        %v1159 = vpow.pop %v1158
        %v1160 = vmul.f32 %v1150, 1.442695
        %v1161 = vpow.pop %v1160
        %v1162 = vmul.f32 %v1151, 1.442695
        %v1163 = vpow.pop %v1162
        %v1164 = vmul.f32 %v1152, 1.442695
        %v1165 = vpow.pop %v1164
        %v1166 = vmul.f32 %v1153, 1.442695
        %v1167 = vpow.pop %v1166
        %v1168 = vmul.f32 %v1154, 1.442695
        %v1169 = vpow.pop %v1168
        %v1170 = vmul.f32 %v1155, 1.442695
        %v1171 = vpow.pop %v1170
        %1172 = vadd.xlane.f32.xlu0 %v1157
        %v1173 = vpop.xlane.xlu0 %1172
        %1174 = vadd.xlane.f32.xlu0 %v1159
        %v1175 = vpop.xlane.xlu0 %1174
        %1176 = vadd.xlane.f32.xlu0 %v1161
        %v1177 = vpop.xlane.xlu0 %1176
        %1178 = vadd.xlane.f32.xlu0 %v1163
        %v1179 = vpop.xlane.xlu0 %1178
        %1180 = vadd.xlane.f32.xlu0 %v1165
        %v1181 = vpop.xlane.xlu0 %1180
        %1182 = vadd.xlane.f32.xlu0 %v1167
        %v1183 = vpop.xlane.xlu0 %1182
        %1184 = vadd.xlane.f32.xlu0 %v1169
        %v1185 = vpop.xlane.xlu0 %1184
        %1186 = vadd.xlane.f32.xlu0 %v1171
        %v1187 = vpop.xlane.xlu0 %1186
        %v1188 = vpack.c.bf16 %v1159, %v1157
        %v1189 = vpack.c.bf16 %v1163, %v1161
        %v1190 = vpack.c.bf16 %v1167, %v1165
        %v1191 = vpack.c.bf16 %v1171, %v1169
        %1200 = vmatprep.subr.bf16.mxu0 0
        %1201 = vmatpush1.bf16.msra.mxu0 %v1029
        %1202 = vmatprep.subr.bf16.mxu0 0
        %1203 = vmatpush1.bf16.msra.mxu0 %v1028
        %1204 = vmatprep.subr.bf16.mxu0 0
        %1205 = vmatpush1.bf16.msra.mxu0 %v1027
        %1206 = vmatprep.subr.bf16.mxu0 0
        %1207 = vmatpush1.bf16.msra.mxu0 %v1026
        %1208 = vmatprep.subr.bf16.mxu0 0
        %1209 = vmatpush1.bf16.msra.mxu0 %v1025
        %1210 = vmatprep.subr.bf16.mxu0 0
        %1211 = vmatpush1.bf16.msra.mxu0 %v1024
        %1212 = vmatprep.subr.bf16.mxu0 0
        %1213 = vmatpush1.bf16.msra.mxu0 %v1023
        %1214 = vmatprep.subr.bf16.mxu0 0
        %1215 = vmatpush1.bf16.msra.mxu0 %v1022
        %1216 = vmatprep.subr.bf16.mxu0 0
        %1217 = vmatpush2.bf16.msra.mxu0 0
        %1218 = vmatprep.subr.bf16.mxu0 0
        %1219 = vmatpush2.bf16.msra.mxu0 0
        %1220 = vmatprep.subr.bf16.mxu0 0
        %1221 = vmatpush2.bf16.msra.mxu0 0
        %1222 = vmatprep.subr.bf16.mxu0 0
        %1223 = vmatpush2.bf16.msra.mxu0 0
        %1224 = vmatprep.subr.bf16.mxu0 0
        %1225 = vmatpush2.bf16.msra.mxu0 0
        %1226 = vmatprep.subr.bf16.mxu0 0
        %1227 = vmatpush2.bf16.msra.mxu0 0
        %1228 = vmatprep.subr.bf16.mxu0 0
        %1229 = vmatpush2.bf16.msra.mxu0 0
        %1230 = vmatprep.subr.bf16.mxu0 0
        %1231 = vmatpush2.bf16.msra.mxu0 0
        %1232 = vmatprep.mubr.bf16.mxu0 0
        %1233 = vmatmul.mubr.bf16.gmra.mxu0 %v1188
        %v1234 = vpop.f32.mrf.mxu0
        %v1235 = vadd.f32 0.0, %v1234
        %v1236 = vpop.f32.mrf.mxu0
        %v1237 = vpop.f32.mrf.mxu0
        %v1238 = vadd.f32 0.0, %v1237
        %v1239 = vpop.f32.mrf.mxu0
        %1240 = vmatprep.mubr.bf16.mxu0 0
        %1241 = vmatmul.mubr.bf16.gmra.mxu0 %v1189
        %v1242 = vpop.f32.mrf.mxu0
        %v1243 = vadd.f32 0.0, %v1242
        %v1244 = vpop.f32.mrf.mxu0
        %v1245 = vpop.f32.mrf.mxu0
        %v1246 = vadd.f32 0.0, %v1245
        %v1247 = vpop.f32.mrf.mxu0
        %1248 = vmatprep.mubr.bf16.mxu0 0
        %1249 = vmatmul.mubr.bf16.gmra.mxu0 %v1190
        %v1250 = vpop.f32.mrf.mxu0
        %v1251 = vadd.f32 0.0, %v1250
        %v1252 = vpop.f32.mrf.mxu0
        %v1253 = vpop.f32.mrf.mxu0
        %v1254 = vadd.f32 0.0, %v1253
        %v1255 = vpop.f32.mrf.mxu0
        %1256 = vmatprep.mubr.bf16.mxu0 0
        %1257 = vmatmul.mubr.bf16.gmra.mxu0 %v1191
        %v1258 = vpop.f32.mrf.mxu0
        %v1259 = vadd.f32 0.0, %v1258
        %v1260 = vpop.f32.mrf.mxu0
        %v1261 = vpop.f32.mrf.mxu0
        %v1262 = vadd.f32 0.0, %v1261
        %v1263 = vpop.f32.mrf.mxu0
        %1264 = vdwg.mxu0
        %v1265 = vrcp.pop %v1173
        %v1266 = vrcp.pop %v1175
        %v1267 = vrcp.pop %v1177
        %v1268 = vrcp.pop %v1179
        %v1269 = vrcp.pop %v1181
        %v1270 = vrcp.pop %v1183
        %v1271 = vrcp.pop %v1185
        %v1272 = vrcp.pop %v1187
        %v1273 = vmul.f32 %v1235, %v1265
        %v1274 = vmul.f32 %v1238, %v1266
        %v1275 = vmul.f32 %v1243, %v1267
        %v1276 = vmul.f32 %v1246, %v1268
        %v1277 = vmul.f32 %v1251, %v1269
        %v1278 = vmul.f32 %v1254, %v1270
        %v1279 = vmul.f32 %v1259, %v1271
        %v1280 = vmul.f32 %v1262, %v1272
        %v1281 = vpack.c.bf16 %v1274, %v1273
        %v1282 = vpack.c.bf16 %v1276, %v1275
        %v1283 = vpack.c.bf16 %v1278, %v1277
        %v1284 = vpack.c.bf16 %v1280, %v1279
        %v1289 = vunpack.c.l.b16 %v1281
        %v1290 = vunpack.c.h.b16 %v1281
        %v1291 = vunpack.c.l.b16 %v1282
        %v1292 = vunpack.c.h.b16 %v1282
        %v1293 = vunpack.c.l.b16 %v1283
        %v1294 = vunpack.c.h.b16 %v1283
        %v1295 = vunpack.c.l.b16 %v1284
        %v1296 = vunpack.c.h.b16 %v1284
        %v1297 = vpack.c.b16 %v1289, %v1289
        %v1298 = vpack.c.b16 %v1290, %v1290
        %v1299 = vpack.c.b16 %v1291, %v1291
        %v1300 = vpack.c.b16 %v1292, %v1292
        %v1301 = vpack.c.b16 %v1293, %v1293
        %v1302 = vpack.c.b16 %v1294, %v1294
        %v1303 = vpack.c.b16 %v1295, %v1295
        %v1304 = vpack.c.b16 %v1296, %v1296
        %vm1313 = vcmask 519168
        %1314 = vst.msk [vmem:[#allocation3] sm:$0xf] %vm1313, %v1297
        %1315 = vst.msk [vmem:[#allocation3 + $0x10] sm:$0xf] %vm1313, %v1298
        %1316 = vst.msk [vmem:[#allocation3 + $0x20] sm:$0xf] %vm1313, %v1299
        %1317 = vst.msk [vmem:[#allocation3 + $0x30] sm:$0xf] %vm1313, %v1300
        %1318 = vst.msk [vmem:[#allocation3 + $0x40] sm:$0xf] %vm1313, %v1301
        %1319 = vst.msk [vmem:[#allocation3 + $0x50] sm:$0xf] %vm1313, %v1302
        %1320 = vst.msk [vmem:[#allocation3 + $0x60] sm:$0xf] %vm1313, %v1303
        %1321 = vst.msk [vmem:[#allocation3 + $0x70] sm:$0xf] %vm1313, %v1304
        %v1322 = vld [vmem:[%s937] sm:$0xf]
        %v1323 = vld [vmem:[%s937 + $0x10] sm:$0xf]
        %v1324 = vld [vmem:[%s937 + $0x20] sm:$0xf]
        %v1325 = vld [vmem:[%s937 + $0x30] sm:$0xf]
        %v1326 = vld [vmem:[%s937 + $0x40] sm:$0xf]
        %v1327 = vld [vmem:[%s937 + $0x50] sm:$0xf]
        %v1328 = vld [vmem:[%s937 + $0x60] sm:$0xf]
        %v1329 = vld [vmem:[%s937 + $0x70] sm:$0xf]
        %v1330 = vmul.bf16 %v1322, 1040203264
        %v1331 = vmul.bf16 %v1323, 1040203264
        %v1332 = vmul.bf16 %v1324, 1040203264
        %v1333 = vmul.bf16 %v1325, 1040203264
        %v1334 = vmul.bf16 %v1326, 1040203264
        %v1335 = vmul.bf16 %v1327, 1040203264
        %v1336 = vmul.bf16 %v1328, 1040203264
        %v1337 = vmul.bf16 %v1329, 1040203264
        %v1338 = vld [vmem:[#allocation2] sm:$0xf]
        %v1339 = vld [vmem:[#allocation2 + $0x10] sm:$0xf]
        %v1340 = vld [vmem:[#allocation2 + $0x20] sm:$0xf]
        %v1341 = vld [vmem:[#allocation2 + $0x30] sm:$0xf]
        %v1342 = vld [vmem:[#allocation2 + $0x40] sm:$0xf]
        %v1343 = vld [vmem:[#allocation2 + $0x50] sm:$0xf]
        %v1344 = vld [vmem:[#allocation2 + $0x60] sm:$0xf]
        %v1345 = vld [vmem:[#allocation2 + $0x70] sm:$0xf]
        %v1346 = vld [vmem:[#allocation2 + $0x80] sm:$0xf]
        %v1347 = vld [vmem:[#allocation2 + $0x90] sm:$0xf]
        %v1348 = vld [vmem:[#allocation2 + $0xa0] sm:$0xf]
        %v1349 = vld [vmem:[#allocation2 + $0xb0] sm:$0xf]
        %v1350 = vld [vmem:[#allocation2 + $0xc0] sm:$0xf]
        %v1351 = vld [vmem:[#allocation2 + $0xd0] sm:$0xf]
        %v1352 = vld [vmem:[#allocation2 + $0xe0] sm:$0xf]
        %v1353 = vld [vmem:[#allocation2 + $0xf0] sm:$0xf]
        %v1362 = vunpack.c.l.b16 %v1330
        %v1363 = vunpack.c.l.b16 %v1331
        %v1364 = vunpack.c.l.b16 %v1332
        %v1365 = vunpack.c.l.b16 %v1333
        %v1366 = vunpack.c.l.b16 %v1334
        %v1367 = vunpack.c.l.b16 %v1335
        %v1368 = vunpack.c.l.b16 %v1336
        %v1369 = vunpack.c.l.b16 %v1337
        %v1370 = vpack.c.b16 %v1363, %v1362
        %v1371 = vpack.c.b16 %v1365, %v1364
        %v1372 = vpack.c.b16 %v1367, %v1366
        %v1373 = vpack.c.b16 %v1369, %v1368
        %1374 = vrot.lane.b32.xlu0 %v1370, 64
        %v1375 = vpop.permute.xlu0 %1374
        %1376 = vrot.lane.b32.xlu0 %v1371, 64
        %v1377 = vpop.permute.xlu0 %1376
        %1378 = vrot.lane.b32.xlu0 %v1372, 64
        %v1379 = vpop.permute.xlu0 %1378
        %1380 = vrot.lane.b32.xlu0 %v1373, 64
        %v1381 = vpop.permute.xlu0 %1380
        %v1398 = vunpack.c.l.b16 %v1338
        %v1399 = vunpack.c.l.b16 %v1339
        %v1400 = vunpack.c.l.b16 %v1340
        %v1401 = vunpack.c.l.b16 %v1341
        %v1402 = vunpack.c.l.b16 %v1342
        %v1403 = vunpack.c.l.b16 %v1343
        %v1404 = vunpack.c.l.b16 %v1344
        %v1405 = vunpack.c.l.b16 %v1345
        %v1406 = vunpack.c.l.b16 %v1346
        %v1407 = vunpack.c.l.b16 %v1347
        %v1408 = vunpack.c.l.b16 %v1348
        %v1409 = vunpack.c.l.b16 %v1349
        %v1410 = vunpack.c.l.b16 %v1350
        %v1411 = vunpack.c.l.b16 %v1351
        %v1412 = vunpack.c.l.b16 %v1352
        %v1413 = vunpack.c.l.b16 %v1353
        %v1414 = vpack.c.b16 %v1399, %v1398
        %v1415 = vpack.c.b16 %v1401, %v1400
        %v1416 = vpack.c.b16 %v1403, %v1402
        %v1417 = vpack.c.b16 %v1405, %v1404
        %v1418 = vpack.c.b16 %v1407, %v1406
        %v1419 = vpack.c.b16 %v1409, %v1408
        %v1420 = vpack.c.b16 %v1411, %v1410
        %v1421 = vpack.c.b16 %v1413, %v1412
        %1422 = vrot.lane.b32.xlu0 %v1414, 64
        %v1423 = vpop.permute.xlu0 %1422
        %1424 = vrot.lane.b32.xlu0 %v1415, 64
        %v1425 = vpop.permute.xlu0 %1424
        %1426 = vrot.lane.b32.xlu0 %v1416, 64
        %v1427 = vpop.permute.xlu0 %1426
        %1428 = vrot.lane.b32.xlu0 %v1417, 64
        %v1429 = vpop.permute.xlu0 %1428
        %1430 = vrot.lane.b32.xlu0 %v1418, 64
        %v1431 = vpop.permute.xlu0 %1430
        %1432 = vrot.lane.b32.xlu0 %v1419, 64
        %v1433 = vpop.permute.xlu0 %1432
        %1434 = vrot.lane.b32.xlu0 %v1420, 64
        %v1435 = vpop.permute.xlu0 %1434
        %1436 = vrot.lane.b32.xlu0 %v1421, 64
        %v1437 = vpop.permute.xlu0 %1436
        %v1439 = vsel %vm1030, %v1375, 0
        %v1442 = vsel %vm1030, %v1377, 0
        %v1445 = vsel %vm1030, %v1379, 0
        %v1448 = vsel %vm1030, %v1381, 0
        %v1451 = vsel %vm1030, %v1423, 0
        %v1454 = vsel %vm1030, %v1425, 0
        %v1457 = vsel %vm1030, %v1427, 0
        %v1460 = vsel %vm1030, %v1429, 0
        %v1463 = vsel %vm1030, %v1431, 0
        %v1466 = vsel %vm1030, %v1433, 0
        %v1469 = vsel %vm1030, %v1435, 0
        %v1472 = vsel %vm1030, %v1437, 0
        %1474 = vmatprep.subr.bf16.mxu0 0
        %1475 = vmatpush1.bf16.xpose.msra.mxu0 %v1472
        %1476 = vmatprep.subr.bf16.mxu0 0
        %1477 = vmatpush1.bf16.xpose.msra.mxu0 %v1469
        %1478 = vmatprep.subr.bf16.mxu0 0
        %1479 = vmatpush1.bf16.xpose.msra.mxu0 %v1466
        %1480 = vmatprep.subr.bf16.mxu0 0
        %1481 = vmatpush1.bf16.xpose.msra.mxu0 %v1463
        %1482 = vmatprep.subr.bf16.mxu0 0
        %1483 = vmatpush1.bf16.xpose.msra.mxu0 %v1460
        %1484 = vmatprep.subr.bf16.mxu0 0
        %1485 = vmatpush1.bf16.xpose.msra.mxu0 %v1457
        %1486 = vmatprep.subr.bf16.mxu0 0
        %1487 = vmatpush1.bf16.xpose.msra.mxu0 %v1454
        %1488 = vmatprep.subr.bf16.mxu0 0
        %1489 = vmatpush1.bf16.xpose.msra.mxu0 %v1451
        %1490 = vmatprep.subr.bf16.mxu0 0
        %1491 = vmatpush2.bf16.xpose.msra.mxu0 0
        %1492 = vmatprep.subr.bf16.mxu0 0
        %1493 = vmatpush2.bf16.xpose.msra.mxu0 0
        %1494 = vmatprep.subr.bf16.mxu0 0
        %1495 = vmatpush2.bf16.xpose.msra.mxu0 0
        %1496 = vmatprep.subr.bf16.mxu0 0
        %1497 = vmatpush2.bf16.xpose.msra.mxu0 0
        %1498 = vmatprep.subr.bf16.mxu0 0
        %1499 = vmatpush2.bf16.xpose.msra.mxu0 0
        %1500 = vmatprep.subr.bf16.mxu0 0
        %1501 = vmatpush2.bf16.xpose.msra.mxu0 0
        %1502 = vmatprep.subr.bf16.mxu0 0
        %1503 = vmatpush2.bf16.xpose.msra.mxu0 0
        %1504 = vmatprep.subr.bf16.mxu0 0
        %1505 = vmatpush2.bf16.xpose.msra.mxu0 0
        %1506 = vmatprep.mubr.bf16.mxu0 0
        %1507 = vmatmul.mubr.bf16.gmra.mxu0 %v1439
        %v1508 = vpop.f32.mrf.mxu0
        %v1509 = vadd.f32 0.0, %v1508
        %v1510 = vpop.f32.mrf.mxu0
        %v1511 = vpop.f32.mrf.mxu0
        %v1512 = vadd.f32 0.0, %v1511
        %v1513 = vpop.f32.mrf.mxu0
        %1514 = vmatprep.mubr.bf16.mxu0 0
        %1515 = vmatmul.mubr.bf16.gmra.mxu0 %v1442
        %v1516 = vpop.f32.mrf.mxu0
        %v1517 = vadd.f32 0.0, %v1516
        %v1518 = vpop.f32.mrf.mxu0
        %v1519 = vpop.f32.mrf.mxu0
        %v1520 = vadd.f32 0.0, %v1519
        %v1521 = vpop.f32.mrf.mxu0
        %1522 = vmatprep.mubr.bf16.mxu0 0
        %1523 = vmatmul.mubr.bf16.gmra.mxu0 %v1445
        %v1524 = vpop.f32.mrf.mxu0
        %v1525 = vadd.f32 0.0, %v1524
        %v1526 = vpop.f32.mrf.mxu0
        %v1527 = vpop.f32.mrf.mxu0
        %v1528 = vadd.f32 0.0, %v1527
        %v1529 = vpop.f32.mrf.mxu0
        %1530 = vmatprep.mubr.bf16.mxu0 0
        %1531 = vmatmul.mubr.bf16.gmra.mxu0 %v1448
        %v1532 = vpop.f32.mrf.mxu0
        %v1533 = vadd.f32 0.0, %v1532
        %v1534 = vpop.f32.mrf.mxu0
        %v1535 = vpop.f32.mrf.mxu0
        %v1536 = vadd.f32 0.0, %v1535
        %v1537 = vpop.f32.mrf.mxu0
        %1538 = vdwg.mxu0
        %1539 = vmax.xlane.f32.xlu0 %v1509
        %v1540 = vpop.xlane.xlu0 %1539
        %1541 = vmax.xlane.f32.xlu0 %v1512
        %v1542 = vpop.xlane.xlu0 %1541
        %1543 = vmax.xlane.f32.xlu0 %v1517
        %v1544 = vpop.xlane.xlu0 %1543
        %1545 = vmax.xlane.f32.xlu0 %v1520
        %v1546 = vpop.xlane.xlu0 %1545
        %1547 = vmax.xlane.f32.xlu0 %v1525
        %v1548 = vpop.xlane.xlu0 %1547
        %1549 = vmax.xlane.f32.xlu0 %v1528
        %v1550 = vpop.xlane.xlu0 %1549
        %1551 = vmax.xlane.f32.xlu0 %v1533
        %v1552 = vpop.xlane.xlu0 %1551
        %1553 = vmax.xlane.f32.xlu0 %v1536
        %v1554 = vpop.xlane.xlu0 %1553
        %v1555 = vsub.f32 %v1509, %v1540
        %v1556 = vsub.f32 %v1512, %v1542
        %v1557 = vsub.f32 %v1517, %v1544
        %v1558 = vsub.f32 %v1520, %v1546
        %v1559 = vsub.f32 %v1525, %v1548
        %v1560 = vsub.f32 %v1528, %v1550
        %v1561 = vsub.f32 %v1533, %v1552
        %v1562 = vsub.f32 %v1536, %v1554
        %v1563 = vmul.f32 %v1555, 1.442695
        %v1564 = vpow.pop %v1563
        %v1565 = vmul.f32 %v1556, 1.442695
        %v1566 = vpow.pop %v1565
        %v1567 = vmul.f32 %v1557, 1.442695
        %v1568 = vpow.pop %v1567
        %v1569 = vmul.f32 %v1558, 1.442695
        %v1570 = vpow.pop %v1569
        %v1571 = vmul.f32 %v1559, 1.442695
        %v1572 = vpow.pop %v1571
        %v1573 = vmul.f32 %v1560, 1.442695
        %v1574 = vpow.pop %v1573
        %v1575 = vmul.f32 %v1561, 1.442695
        %v1576 = vpow.pop %v1575
        %v1577 = vmul.f32 %v1562, 1.442695
        %v1578 = vpow.pop %v1577
        %1579 = vadd.xlane.f32.xlu0 %v1564
        %v1580 = vpop.xlane.xlu0 %1579
        %1581 = vadd.xlane.f32.xlu0 %v1566
        %v1582 = vpop.xlane.xlu0 %1581
        %1583 = vadd.xlane.f32.xlu0 %v1568
        %v1584 = vpop.xlane.xlu0 %1583
        %1585 = vadd.xlane.f32.xlu0 %v1570
        %v1586 = vpop.xlane.xlu0 %1585
        %1587 = vadd.xlane.f32.xlu0 %v1572
        %v1588 = vpop.xlane.xlu0 %1587
        %1589 = vadd.xlane.f32.xlu0 %v1574
        %v1590 = vpop.xlane.xlu0 %1589
        %1591 = vadd.xlane.f32.xlu0 %v1576
        %v1592 = vpop.xlane.xlu0 %1591
        %1593 = vadd.xlane.f32.xlu0 %v1578
        %v1594 = vpop.xlane.xlu0 %1593
        %v1595 = vpack.c.bf16 %v1566, %v1564
        %v1596 = vpack.c.bf16 %v1570, %v1568
        %v1597 = vpack.c.bf16 %v1574, %v1572
        %v1598 = vpack.c.bf16 %v1578, %v1576
        %1607 = vmatprep.subr.bf16.mxu0 0
        %1608 = vmatpush1.bf16.msra.mxu0 %v1437
        %1609 = vmatprep.subr.bf16.mxu0 0
        %1610 = vmatpush1.bf16.msra.mxu0 %v1435
        %1611 = vmatprep.subr.bf16.mxu0 0
        %1612 = vmatpush1.bf16.msra.mxu0 %v1433
        %1613 = vmatprep.subr.bf16.mxu0 0
        %1614 = vmatpush1.bf16.msra.mxu0 %v1431
        %1615 = vmatprep.subr.bf16.mxu0 0
        %1616 = vmatpush1.bf16.msra.mxu0 %v1429
        %1617 = vmatprep.subr.bf16.mxu0 0
        %1618 = vmatpush1.bf16.msra.mxu0 %v1427
        %1619 = vmatprep.subr.bf16.mxu0 0
        %1620 = vmatpush1.bf16.msra.mxu0 %v1425
        %1621 = vmatprep.subr.bf16.mxu0 0
        %1622 = vmatpush1.bf16.msra.mxu0 %v1423
        %1623 = vmatprep.subr.bf16.mxu0 0
        %1624 = vmatpush2.bf16.msra.mxu0 0
        %1625 = vmatprep.subr.bf16.mxu0 0
        %1626 = vmatpush2.bf16.msra.mxu0 0
        %1627 = vmatprep.subr.bf16.mxu0 0
        %1628 = vmatpush2.bf16.msra.mxu0 0
        %1629 = vmatprep.subr.bf16.mxu0 0
        %1630 = vmatpush2.bf16.msra.mxu0 0
        %1631 = vmatprep.subr.bf16.mxu0 0
        %1632 = vmatpush2.bf16.msra.mxu0 0
        %1633 = vmatprep.subr.bf16.mxu0 0
        %1634 = vmatpush2.bf16.msra.mxu0 0
        %1635 = vmatprep.subr.bf16.mxu0 0
        %1636 = vmatpush2.bf16.msra.mxu0 0
        %1637 = vmatprep.subr.bf16.mxu0 0
        %1638 = vmatpush2.bf16.msra.mxu0 0
        %1639 = vmatprep.mubr.bf16.mxu0 0
        %1640 = vmatmul.mubr.bf16.gmra.mxu0 %v1595
        %v1641 = vpop.f32.mrf.mxu0
        %v1642 = vadd.f32 0.0, %v1641
        %v1643 = vpop.f32.mrf.mxu0
        %v1644 = vpop.f32.mrf.mxu0
        %v1645 = vadd.f32 0.0, %v1644
        %v1646 = vpop.f32.mrf.mxu0
        %1647 = vmatprep.mubr.bf16.mxu0 0
        %1648 = vmatmul.mubr.bf16.gmra.mxu0 %v1596
        %v1649 = vpop.f32.mrf.mxu0
        %v1650 = vadd.f32 0.0, %v1649
        %v1651 = vpop.f32.mrf.mxu0
        %v1652 = vpop.f32.mrf.mxu0
        %v1653 = vadd.f32 0.0, %v1652
        %v1654 = vpop.f32.mrf.mxu0
        %1655 = vmatprep.mubr.bf16.mxu0 0
        %1656 = vmatmul.mubr.bf16.gmra.mxu0 %v1597
        %v1657 = vpop.f32.mrf.mxu0
        %v1658 = vadd.f32 0.0, %v1657
        %v1659 = vpop.f32.mrf.mxu0
        %v1660 = vpop.f32.mrf.mxu0
        %v1661 = vadd.f32 0.0, %v1660
        %v1662 = vpop.f32.mrf.mxu0
        %1663 = vmatprep.mubr.bf16.mxu0 0
        %1664 = vmatmul.mubr.bf16.gmra.mxu0 %v1598
        %v1665 = vpop.f32.mrf.mxu0
        %v1666 = vadd.f32 0.0, %v1665
        %v1667 = vpop.f32.mrf.mxu0
        %v1668 = vpop.f32.mrf.mxu0
        %v1669 = vadd.f32 0.0, %v1668
        %v1670 = vpop.f32.mrf.mxu0
        %1671 = vdwg.mxu0
        %v1672 = vrcp.pop %v1580
        %v1673 = vrcp.pop %v1582
        %v1674 = vrcp.pop %v1584
        %v1675 = vrcp.pop %v1586
        %v1676 = vrcp.pop %v1588
        %v1677 = vrcp.pop %v1590
        %v1678 = vrcp.pop %v1592
        %v1679 = vrcp.pop %v1594
        %v1680 = vmul.f32 %v1642, %v1672
        %v1681 = vmul.f32 %v1645, %v1673
        %v1682 = vmul.f32 %v1650, %v1674
        %v1683 = vmul.f32 %v1653, %v1675
        %v1684 = vmul.f32 %v1658, %v1676
        %v1685 = vmul.f32 %v1661, %v1677
        %v1686 = vmul.f32 %v1666, %v1678
        %v1687 = vmul.f32 %v1669, %v1679
        %v1688 = vpack.c.bf16 %v1681, %v1680
        %v1689 = vpack.c.bf16 %v1683, %v1682
        %v1690 = vpack.c.bf16 %v1685, %v1684
        %v1691 = vpack.c.bf16 %v1687, %v1686
        %v1696 = vunpack.c.l.b16 %v1688
        %v1697 = vunpack.c.h.b16 %v1688
        %v1698 = vunpack.c.l.b16 %v1689
        %v1699 = vunpack.c.h.b16 %v1689
        %v1700 = vunpack.c.l.b16 %v1690
        %v1701 = vunpack.c.h.b16 %v1690
        %v1702 = vunpack.c.l.b16 %v1691
        %v1703 = vunpack.c.h.b16 %v1691
        %v1704 = vpack.c.b16 %v1696, %v1696
        %v1705 = vpack.c.b16 %v1697, %v1697
        %v1706 = vpack.c.b16 %v1698, %v1698
        %v1707 = vpack.c.b16 %v1699, %v1699
        %v1708 = vpack.c.b16 %v1700, %v1700
        %v1709 = vpack.c.b16 %v1701, %v1701
        %v1710 = vpack.c.b16 %v1702, %v1702
        %v1711 = vpack.c.b16 %v1703, %v1703
        %1712 = vrot.lane.b32.xlu0 %v1704, 64
        %v1713 = vpop.permute.xlu0 %1712
        %1714 = vrot.lane.b32.xlu0 %v1705, 64
        %v1715 = vpop.permute.xlu0 %1714
        %1716 = vrot.lane.b32.xlu0 %v1706, 64
        %v1717 = vpop.permute.xlu0 %1716
        %1718 = vrot.lane.b32.xlu0 %v1707, 64
        %v1719 = vpop.permute.xlu0 %1718
        %1720 = vrot.lane.b32.xlu0 %v1708, 64
        %v1721 = vpop.permute.xlu0 %1720
        %1722 = vrot.lane.b32.xlu0 %v1709, 64
        %v1723 = vpop.permute.xlu0 %1722
        %1724 = vrot.lane.b32.xlu0 %v1710, 64
        %v1725 = vpop.permute.xlu0 %1724
        %1726 = vrot.lane.b32.xlu0 %v1711, 64
        %v1727 = vpop.permute.xlu0 %1726
        %vm1736 = vcmask 1043968
        %1737 = vst.msk [vmem:[#allocation3] sm:$0xf] %vm1736, %v1713
        %1738 = vst.msk [vmem:[#allocation3 + $0x10] sm:$0xf] %vm1736, %v1715
        %1739 = vst.msk [vmem:[#allocation3 + $0x20] sm:$0xf] %vm1736, %v1717
        %1740 = vst.msk [vmem:[#allocation3 + $0x30] sm:$0xf] %vm1736, %v1719
        %1741 = vst.msk [vmem:[#allocation3 + $0x40] sm:$0xf] %vm1736, %v1721
        %1742 = vst.msk [vmem:[#allocation3 + $0x50] sm:$0xf] %vm1736, %v1723
        %1743 = vst.msk [vmem:[#allocation3 + $0x60] sm:$0xf] %vm1736, %v1725
        %1744 = vst.msk [vmem:[#allocation3 + $0x70] sm:$0xf] %vm1736, %v1727
        %v1745 = vld [vmem:[%s937 + $0x4] sm:$0xf]
        %v1746 = vld [vmem:[%s937 + $0x14] sm:$0xf]
        %v1747 = vld [vmem:[%s937 + $0x24] sm:$0xf]
        %v1748 = vld [vmem:[%s937 + $0x34] sm:$0xf]
        %v1749 = vld [vmem:[%s937 + $0x44] sm:$0xf]
        %v1750 = vld [vmem:[%s937 + $0x54] sm:$0xf]
        %v1751 = vld [vmem:[%s937 + $0x64] sm:$0xf]
        %v1752 = vld [vmem:[%s937 + $0x74] sm:$0xf]
        %v1753 = vmul.bf16 %v1745, 1040203264
        %v1754 = vmul.bf16 %v1746, 1040203264
        %v1755 = vmul.bf16 %v1747, 1040203264
        %v1756 = vmul.bf16 %v1748, 1040203264
        %v1757 = vmul.bf16 %v1749, 1040203264
        %v1758 = vmul.bf16 %v1750, 1040203264
        %v1759 = vmul.bf16 %v1751, 1040203264
        %v1760 = vmul.bf16 %v1752, 1040203264
        %v1761 = vld [vmem:[#allocation2 + $0x4] sm:$0xf]
        %v1762 = vld [vmem:[#allocation2 + $0x14] sm:$0xf]
        %v1763 = vld [vmem:[#allocation2 + $0x24] sm:$0xf]
        %v1764 = vld [vmem:[#allocation2 + $0x34] sm:$0xf]
        %v1765 = vld [vmem:[#allocation2 + $0x44] sm:$0xf]
        %v1766 = vld [vmem:[#allocation2 + $0x54] sm:$0xf]
        %v1767 = vld [vmem:[#allocation2 + $0x64] sm:$0xf]
        %v1768 = vld [vmem:[#allocation2 + $0x74] sm:$0xf]
        %v1769 = vld [vmem:[#allocation2 + $0x84] sm:$0xf]
        %v1770 = vld [vmem:[#allocation2 + $0x94] sm:$0xf]
        %v1771 = vld [vmem:[#allocation2 + $0xa4] sm:$0xf]
        %v1772 = vld [vmem:[#allocation2 + $0xb4] sm:$0xf]
        %v1773 = vld [vmem:[#allocation2 + $0xc4] sm:$0xf]
        %v1774 = vld [vmem:[#allocation2 + $0xd4] sm:$0xf]
        %v1775 = vld [vmem:[#allocation2 + $0xe4] sm:$0xf]
        %v1776 = vld [vmem:[#allocation2 + $0xf4] sm:$0xf]
        %v1785 = vunpack.c.l.b16 %v1753
        %v1786 = vunpack.c.l.b16 %v1754
        %v1787 = vunpack.c.l.b16 %v1755
        %v1788 = vunpack.c.l.b16 %v1756
        %v1789 = vunpack.c.l.b16 %v1757
        %v1790 = vunpack.c.l.b16 %v1758
        %v1791 = vunpack.c.l.b16 %v1759
        %v1792 = vunpack.c.l.b16 %v1760
        %v1793 = vpack.c.b16 %v1786, %v1785
        %v1794 = vpack.c.b16 %v1788, %v1787
        %v1795 = vpack.c.b16 %v1790, %v1789
        %v1796 = vpack.c.b16 %v1792, %v1791
        %v1813 = vunpack.c.l.b16 %v1761
        %v1814 = vunpack.c.l.b16 %v1762
        %v1815 = vunpack.c.l.b16 %v1763
        %v1816 = vunpack.c.l.b16 %v1764
        %v1817 = vunpack.c.l.b16 %v1765
        %v1818 = vunpack.c.l.b16 %v1766
        %v1819 = vunpack.c.l.b16 %v1767
        %v1820 = vunpack.c.l.b16 %v1768
        %v1821 = vunpack.c.l.b16 %v1769
        %v1822 = vunpack.c.l.b16 %v1770
        %v1823 = vunpack.c.l.b16 %v1771
        %v1824 = vunpack.c.l.b16 %v1772
        %v1825 = vunpack.c.l.b16 %v1773
        %v1826 = vunpack.c.l.b16 %v1774
        %v1827 = vunpack.c.l.b16 %v1775
        %v1828 = vunpack.c.l.b16 %v1776
        %v1829 = vpack.c.b16 %v1814, %v1813
        %v1830 = vpack.c.b16 %v1816, %v1815
        %v1831 = vpack.c.b16 %v1818, %v1817
        %v1832 = vpack.c.b16 %v1820, %v1819
        %v1833 = vpack.c.b16 %v1822, %v1821
        %v1834 = vpack.c.b16 %v1824, %v1823
        %v1835 = vpack.c.b16 %v1826, %v1825
        %v1836 = vpack.c.b16 %v1828, %v1827
        %v1838 = vsel %vm1030, %v1793, 0
        %v1841 = vsel %vm1030, %v1794, 0
        %v1844 = vsel %vm1030, %v1795, 0
        %v1847 = vsel %vm1030, %v1796, 0
        %v1850 = vsel %vm1030, %v1829, 0
        %v1853 = vsel %vm1030, %v1830, 0
        %v1856 = vsel %vm1030, %v1831, 0
        %v1859 = vsel %vm1030, %v1832, 0
        %v1862 = vsel %vm1030, %v1833, 0
        %v1865 = vsel %vm1030, %v1834, 0
        %v1868 = vsel %vm1030, %v1835, 0
        %v1871 = vsel %vm1030, %v1836, 0
        %1873 = vmatprep.subr.bf16.mxu0 0
        %1874 = vmatpush1.bf16.xpose.msra.mxu0 %v1871
        %1875 = vmatprep.subr.bf16.mxu0 0
        %1876 = vmatpush1.bf16.xpose.msra.mxu0 %v1868
        %1877 = vmatprep.subr.bf16.mxu0 0
        %1878 = vmatpush1.bf16.xpose.msra.mxu0 %v1865
        %1879 = vmatprep.subr.bf16.mxu0 0
        %1880 = vmatpush1.bf16.xpose.msra.mxu0 %v1862
        %1881 = vmatprep.subr.bf16.mxu0 0
        %1882 = vmatpush1.bf16.xpose.msra.mxu0 %v1859
        %1883 = vmatprep.subr.bf16.mxu0 0
        %1884 = vmatpush1.bf16.xpose.msra.mxu0 %v1856
        %1885 = vmatprep.subr.bf16.mxu0 0
        %1886 = vmatpush1.bf16.xpose.msra.mxu0 %v1853
        %1887 = vmatprep.subr.bf16.mxu0 0
        %1888 = vmatpush1.bf16.xpose.msra.mxu0 %v1850
        %1889 = vmatprep.subr.bf16.mxu0 0
        %1890 = vmatpush2.bf16.xpose.msra.mxu0 0
        %1891 = vmatprep.subr.bf16.mxu0 0
        %1892 = vmatpush2.bf16.xpose.msra.mxu0 0
        %1893 = vmatprep.subr.bf16.mxu0 0
        %1894 = vmatpush2.bf16.xpose.msra.mxu0 0
        %1895 = vmatprep.subr.bf16.mxu0 0
        %1896 = vmatpush2.bf16.xpose.msra.mxu0 0
        %1897 = vmatprep.subr.bf16.mxu0 0
        %1898 = vmatpush2.bf16.xpose.msra.mxu0 0
        %1899 = vmatprep.subr.bf16.mxu0 0
        %1900 = vmatpush2.bf16.xpose.msra.mxu0 0
        %1901 = vmatprep.subr.bf16.mxu0 0
        %1902 = vmatpush2.bf16.xpose.msra.mxu0 0
        %1903 = vmatprep.subr.bf16.mxu0 0
        %1904 = vmatpush2.bf16.xpose.msra.mxu0 0
        %1905 = vmatprep.mubr.bf16.mxu0 0
        %1906 = vmatmul.mubr.bf16.gmra.mxu0 %v1838
        %v1907 = vpop.f32.mrf.mxu0
        %v1908 = vadd.f32 0.0, %v1907
        %v1909 = vpop.f32.mrf.mxu0
        %v1910 = vpop.f32.mrf.mxu0
        %v1911 = vadd.f32 0.0, %v1910
        %v1912 = vpop.f32.mrf.mxu0
        %1913 = vmatprep.mubr.bf16.mxu0 0
        %1914 = vmatmul.mubr.bf16.gmra.mxu0 %v1841
        %v1915 = vpop.f32.mrf.mxu0
        %v1916 = vadd.f32 0.0, %v1915
        %v1917 = vpop.f32.mrf.mxu0
        %v1918 = vpop.f32.mrf.mxu0
        %v1919 = vadd.f32 0.0, %v1918
        %v1920 = vpop.f32.mrf.mxu0
        %1921 = vmatprep.mubr.bf16.mxu0 0
        %1922 = vmatmul.mubr.bf16.gmra.mxu0 %v1844
        %v1923 = vpop.f32.mrf.mxu0
        %v1924 = vadd.f32 0.0, %v1923
        %v1925 = vpop.f32.mrf.mxu0
        %v1926 = vpop.f32.mrf.mxu0
        %v1927 = vadd.f32 0.0, %v1926
        %v1928 = vpop.f32.mrf.mxu0
        %1929 = vmatprep.mubr.bf16.mxu0 0
        %1930 = vmatmul.mubr.bf16.gmra.mxu0 %v1847
        %v1931 = vpop.f32.mrf.mxu0
        %v1932 = vadd.f32 0.0, %v1931
        %v1933 = vpop.f32.mrf.mxu0
        %v1934 = vpop.f32.mrf.mxu0
        %v1935 = vadd.f32 0.0, %v1934
        %v1936 = vpop.f32.mrf.mxu0
        %1937 = vdwg.mxu0
        %1938 = vmax.xlane.f32.xlu0 %v1908
        %v1939 = vpop.xlane.xlu0 %1938
        %1940 = vmax.xlane.f32.xlu0 %v1911
        %v1941 = vpop.xlane.xlu0 %1940
        %1942 = vmax.xlane.f32.xlu0 %v1916
        %v1943 = vpop.xlane.xlu0 %1942
        %1944 = vmax.xlane.f32.xlu0 %v1919
        %v1945 = vpop.xlane.xlu0 %1944
        %1946 = vmax.xlane.f32.xlu0 %v1924
        %v1947 = vpop.xlane.xlu0 %1946
        %1948 = vmax.xlane.f32.xlu0 %v1927
        %v1949 = vpop.xlane.xlu0 %1948
        %1950 = vmax.xlane.f32.xlu0 %v1932
        %v1951 = vpop.xlane.xlu0 %1950
        %1952 = vmax.xlane.f32.xlu0 %v1935
        %v1953 = vpop.xlane.xlu0 %1952
        %v1954 = vsub.f32 %v1908, %v1939
        %v1955 = vsub.f32 %v1911, %v1941
        %v1956 = vsub.f32 %v1916, %v1943
        %v1957 = vsub.f32 %v1919, %v1945
        %v1958 = vsub.f32 %v1924, %v1947
        %v1959 = vsub.f32 %v1927, %v1949
        %v1960 = vsub.f32 %v1932, %v1951
        %v1961 = vsub.f32 %v1935, %v1953
        %v1962 = vmul.f32 %v1954, 1.442695
        %v1963 = vpow.pop %v1962
        %v1964 = vmul.f32 %v1955, 1.442695
        %v1965 = vpow.pop %v1964
        %v1966 = vmul.f32 %v1956, 1.442695
        %v1967 = vpow.pop %v1966
        %v1968 = vmul.f32 %v1957, 1.442695
        %v1969 = vpow.pop %v1968
        %v1970 = vmul.f32 %v1958, 1.442695
        %v1971 = vpow.pop %v1970
        %v1972 = vmul.f32 %v1959, 1.442695
        %v1973 = vpow.pop %v1972
        %v1974 = vmul.f32 %v1960, 1.442695
        %v1975 = vpow.pop %v1974
        %v1976 = vmul.f32 %v1961, 1.442695
        %v1977 = vpow.pop %v1976
        %1978 = vadd.xlane.f32.xlu0 %v1963
        %v1979 = vpop.xlane.xlu0 %1978
        %1980 = vadd.xlane.f32.xlu0 %v1965
        %v1981 = vpop.xlane.xlu0 %1980
        %1982 = vadd.xlane.f32.xlu0 %v1967
        %v1983 = vpop.xlane.xlu0 %1982
        %1984 = vadd.xlane.f32.xlu0 %v1969
        %v1985 = vpop.xlane.xlu0 %1984
        %1986 = vadd.xlane.f32.xlu0 %v1971
        %v1987 = vpop.xlane.xlu0 %1986
        %1988 = vadd.xlane.f32.xlu0 %v1973
        %v1989 = vpop.xlane.xlu0 %1988
        %1990 = vadd.xlane.f32.xlu0 %v1975
        %v1991 = vpop.xlane.xlu0 %1990
        %1992 = vadd.xlane.f32.xlu0 %v1977
        %v1993 = vpop.xlane.xlu0 %1992
        %v1994 = vpack.c.bf16 %v1965, %v1963
        %v1995 = vpack.c.bf16 %v1969, %v1967
        %v1996 = vpack.c.bf16 %v1973, %v1971
        %v1997 = vpack.c.bf16 %v1977, %v1975
        %2006 = vmatprep.subr.bf16.mxu0 0
        %2007 = vmatpush1.bf16.msra.mxu0 %v1836
        %2008 = vmatprep.subr.bf16.mxu0 0
        %2009 = vmatpush1.bf16.msra.mxu0 %v1835
        %2010 = vmatprep.subr.bf16.mxu0 0
        %2011 = vmatpush1.bf16.msra.mxu0 %v1834
        %2012 = vmatprep.subr.bf16.mxu0 0
        %2013 = vmatpush1.bf16.msra.mxu0 %v1833
        %2014 = vmatprep.subr.bf16.mxu0 0
        %2015 = vmatpush1.bf16.msra.mxu0 %v1832
        %2016 = vmatprep.subr.bf16.mxu0 0
        %2017 = vmatpush1.bf16.msra.mxu0 %v1831
        %2018 = vmatprep.subr.bf16.mxu0 0
        %2019 = vmatpush1.bf16.msra.mxu0 %v1830
        %2020 = vmatprep.subr.bf16.mxu0 0
        %2021 = vmatpush1.bf16.msra.mxu0 %v1829
        %2022 = vmatprep.subr.bf16.mxu0 0
        %2023 = vmatpush2.bf16.msra.mxu0 0
        %2024 = vmatprep.subr.bf16.mxu0 0
        %2025 = vmatpush2.bf16.msra.mxu0 0
        %2026 = vmatprep.subr.bf16.mxu0 0
        %2027 = vmatpush2.bf16.msra.mxu0 0
        %2028 = vmatprep.subr.bf16.mxu0 0
        %2029 = vmatpush2.bf16.msra.mxu0 0
        %2030 = vmatprep.subr.bf16.mxu0 0
        %2031 = vmatpush2.bf16.msra.mxu0 0
        %2032 = vmatprep.subr.bf16.mxu0 0
        %2033 = vmatpush2.bf16.msra.mxu0 0
        %2034 = vmatprep.subr.bf16.mxu0 0
        %2035 = vmatpush2.bf16.msra.mxu0 0
        %2036 = vmatprep.subr.bf16.mxu0 0
        %2037 = vmatpush2.bf16.msra.mxu0 0
        %2038 = vmatprep.mubr.bf16.mxu0 0
        %2039 = vmatmul.mubr.bf16.gmra.mxu0 %v1994
        %v2040 = vpop.f32.mrf.mxu0
        %v2041 = vadd.f32 0.0, %v2040
        %v2042 = vpop.f32.mrf.mxu0
        %v2043 = vpop.f32.mrf.mxu0
        %v2044 = vadd.f32 0.0, %v2043
        %v2045 = vpop.f32.mrf.mxu0
        %2046 = vmatprep.mubr.bf16.mxu0 0
        %2047 = vmatmul.mubr.bf16.gmra.mxu0 %v1995
        %v2048 = vpop.f32.mrf.mxu0
        %v2049 = vadd.f32 0.0, %v2048
        %v2050 = vpop.f32.mrf.mxu0
        %v2051 = vpop.f32.mrf.mxu0
        %v2052 = vadd.f32 0.0, %v2051
        %v2053 = vpop.f32.mrf.mxu0
        %2054 = vmatprep.mubr.bf16.mxu0 0
        %2055 = vmatmul.mubr.bf16.gmra.mxu0 %v1996
        %v2056 = vpop.f32.mrf.mxu0
        %v2057 = vadd.f32 0.0, %v2056
        %v2058 = vpop.f32.mrf.mxu0
        %v2059 = vpop.f32.mrf.mxu0
        %v2060 = vadd.f32 0.0, %v2059
        %v2061 = vpop.f32.mrf.mxu0
        %2062 = vmatprep.mubr.bf16.mxu0 0
        %2063 = vmatmul.mubr.bf16.gmra.mxu0 %v1997
        %v2064 = vpop.f32.mrf.mxu0
        %v2065 = vadd.f32 0.0, %v2064
        %v2066 = vpop.f32.mrf.mxu0
        %v2067 = vpop.f32.mrf.mxu0
        %v2068 = vadd.f32 0.0, %v2067
        %v2069 = vpop.f32.mrf.mxu0
        %2070 = vdwg.mxu0
        %v2071 = vrcp.pop %v1979
        %v2072 = vrcp.pop %v1981
        %v2073 = vrcp.pop %v1983
        %v2074 = vrcp.pop %v1985
        %v2075 = vrcp.pop %v1987
        %v2076 = vrcp.pop %v1989
        %v2077 = vrcp.pop %v1991
        %v2078 = vrcp.pop %v1993
        %v2079 = vmul.f32 %v2041, %v2071
        %v2080 = vmul.f32 %v2044, %v2072
        %v2081 = vmul.f32 %v2049, %v2073
        %v2082 = vmul.f32 %v2052, %v2074
        %v2083 = vmul.f32 %v2057, %v2075
        %v2084 = vmul.f32 %v2060, %v2076
        %v2085 = vmul.f32 %v2065, %v2077
        %v2086 = vmul.f32 %v2068, %v2078
        %v2087 = vpack.c.bf16 %v2080, %v2079
        %v2088 = vpack.c.bf16 %v2082, %v2081
        %v2089 = vpack.c.bf16 %v2084, %v2083
        %v2090 = vpack.c.bf16 %v2086, %v2085
        %v2095 = vunpack.c.l.b16 %v2087
        %v2096 = vunpack.c.h.b16 %v2087
        %v2097 = vunpack.c.l.b16 %v2088
        %v2098 = vunpack.c.h.b16 %v2088
        %v2099 = vunpack.c.l.b16 %v2089
        %v2100 = vunpack.c.h.b16 %v2089
        %v2101 = vunpack.c.l.b16 %v2090
        %v2102 = vunpack.c.h.b16 %v2090
        %v2103 = vpack.c.b16 %v2095, %v2095
        %v2104 = vpack.c.b16 %v2096, %v2096
        %v2105 = vpack.c.b16 %v2097, %v2097
        %v2106 = vpack.c.b16 %v2098, %v2098
        %v2107 = vpack.c.b16 %v2099, %v2099
        %v2108 = vpack.c.b16 %v2100, %v2100
        %v2109 = vpack.c.b16 %v2101, %v2101
        %v2110 = vpack.c.b16 %v2102, %v2102
        %2119 = vst.msk [vmem:[#allocation3 + $0x4] sm:$0xf] %vm1313, %v2103
        %2120 = vst.msk [vmem:[#allocation3 + $0x14] sm:$0xf] %vm1313, %v2104
        %2121 = vst.msk [vmem:[#allocation3 + $0x24] sm:$0xf] %vm1313, %v2105
        %2122 = vst.msk [vmem:[#allocation3 + $0x34] sm:$0xf] %vm1313, %v2106
        %2123 = vst.msk [vmem:[#allocation3 + $0x44] sm:$0xf] %vm1313, %v2107
        %2124 = vst.msk [vmem:[#allocation3 + $0x54] sm:$0xf] %vm1313, %v2108
        %2125 = vst.msk [vmem:[#allocation3 + $0x64] sm:$0xf] %vm1313, %v2109
        %2126 = vst.msk [vmem:[#allocation3 + $0x74] sm:$0xf] %vm1313, %v2110
        %v2127 = vld [vmem:[%s937 + $0x4] sm:$0xf]
        %v2128 = vld [vmem:[%s937 + $0x14] sm:$0xf]
        %v2129 = vld [vmem:[%s937 + $0x24] sm:$0xf]
        %v2130 = vld [vmem:[%s937 + $0x34] sm:$0xf]
        %v2131 = vld [vmem:[%s937 + $0x44] sm:$0xf]
        %v2132 = vld [vmem:[%s937 + $0x54] sm:$0xf]
        %v2133 = vld [vmem:[%s937 + $0x64] sm:$0xf]
        %v2134 = vld [vmem:[%s937 + $0x74] sm:$0xf]
        %v2135 = vmul.bf16 %v2127, 1040203264
        %v2136 = vmul.bf16 %v2128, 1040203264
        %v2137 = vmul.bf16 %v2129, 1040203264
        %v2138 = vmul.bf16 %v2130, 1040203264
        %v2139 = vmul.bf16 %v2131, 1040203264
        %v2140 = vmul.bf16 %v2132, 1040203264
        %v2141 = vmul.bf16 %v2133, 1040203264
        %v2142 = vmul.bf16 %v2134, 1040203264
        %v2143 = vld [vmem:[#allocation2 + $0x4] sm:$0xf]
        %v2144 = vld [vmem:[#allocation2 + $0x14] sm:$0xf]
        %v2145 = vld [vmem:[#allocation2 + $0x24] sm:$0xf]
        %v2146 = vld [vmem:[#allocation2 + $0x34] sm:$0xf]
        %v2147 = vld [vmem:[#allocation2 + $0x44] sm:$0xf]
        %v2148 = vld [vmem:[#allocation2 + $0x54] sm:$0xf]
        %v2149 = vld [vmem:[#allocation2 + $0x64] sm:$0xf]
        %v2150 = vld [vmem:[#allocation2 + $0x74] sm:$0xf]
        %v2151 = vld [vmem:[#allocation2 + $0x84] sm:$0xf]
        %v2152 = vld [vmem:[#allocation2 + $0x94] sm:$0xf]
        %v2153 = vld [vmem:[#allocation2 + $0xa4] sm:$0xf]
        %v2154 = vld [vmem:[#allocation2 + $0xb4] sm:$0xf]
        %v2155 = vld [vmem:[#allocation2 + $0xc4] sm:$0xf]
        %v2156 = vld [vmem:[#allocation2 + $0xd4] sm:$0xf]
        %v2157 = vld [vmem:[#allocation2 + $0xe4] sm:$0xf]
        %v2158 = vld [vmem:[#allocation2 + $0xf4] sm:$0xf]
        %v2167 = vunpack.c.l.b16 %v2135
        %v2168 = vunpack.c.l.b16 %v2136
        %v2169 = vunpack.c.l.b16 %v2137
        %v2170 = vunpack.c.l.b16 %v2138
        %v2171 = vunpack.c.l.b16 %v2139
        %v2172 = vunpack.c.l.b16 %v2140
        %v2173 = vunpack.c.l.b16 %v2141
        %v2174 = vunpack.c.l.b16 %v2142
        %v2175 = vpack.c.b16 %v2168, %v2167
        %v2176 = vpack.c.b16 %v2170, %v2169
        %v2177 = vpack.c.b16 %v2172, %v2171
        %v2178 = vpack.c.b16 %v2174, %v2173
        %2179 = vrot.lane.b32.xlu0 %v2175, 64
        %v2180 = vpop.permute.xlu0 %2179
        %2181 = vrot.lane.b32.xlu0 %v2176, 64
        %v2182 = vpop.permute.xlu0 %2181
        %2183 = vrot.lane.b32.xlu0 %v2177, 64
        %v2184 = vpop.permute.xlu0 %2183
        %2185 = vrot.lane.b32.xlu0 %v2178, 64
        %v2186 = vpop.permute.xlu0 %2185
        %v2203 = vunpack.c.l.b16 %v2143
        %v2204 = vunpack.c.l.b16 %v2144
        %v2205 = vunpack.c.l.b16 %v2145
        %v2206 = vunpack.c.l.b16 %v2146
        %v2207 = vunpack.c.l.b16 %v2147
        %v2208 = vunpack.c.l.b16 %v2148
        %v2209 = vunpack.c.l.b16 %v2149
        %v2210 = vunpack.c.l.b16 %v2150
        %v2211 = vunpack.c.l.b16 %v2151
        %v2212 = vunpack.c.l.b16 %v2152
        %v2213 = vunpack.c.l.b16 %v2153
        %v2214 = vunpack.c.l.b16 %v2154
        %v2215 = vunpack.c.l.b16 %v2155
        %v2216 = vunpack.c.l.b16 %v2156
        %v2217 = vunpack.c.l.b16 %v2157
        %v2218 = vunpack.c.l.b16 %v2158
        %v2219 = vpack.c.b16 %v2204, %v2203
        %v2220 = vpack.c.b16 %v2206, %v2205
        %v2221 = vpack.c.b16 %v2208, %v2207
        %v2222 = vpack.c.b16 %v2210, %v2209
        %v2223 = vpack.c.b16 %v2212, %v2211
        %v2224 = vpack.c.b16 %v2214, %v2213
        %v2225 = vpack.c.b16 %v2216, %v2215
        %v2226 = vpack.c.b16 %v2218, %v2217
        %2227 = vrot.lane.b32.xlu0 %v2219, 64
        %v2228 = vpop.permute.xlu0 %2227
        %2229 = vrot.lane.b32.xlu0 %v2220, 64
        %v2230 = vpop.permute.xlu0 %2229
        %2231 = vrot.lane.b32.xlu0 %v2221, 64
        %v2232 = vpop.permute.xlu0 %2231
        %2233 = vrot.lane.b32.xlu0 %v2222, 64
        %v2234 = vpop.permute.xlu0 %2233
        %2235 = vrot.lane.b32.xlu0 %v2223, 64
        %v2236 = vpop.permute.xlu0 %2235
        %2237 = vrot.lane.b32.xlu0 %v2224, 64
        %v2238 = vpop.permute.xlu0 %2237
        %2239 = vrot.lane.b32.xlu0 %v2225, 64
        %v2240 = vpop.permute.xlu0 %2239
        %2241 = vrot.lane.b32.xlu0 %v2226, 64
        %v2242 = vpop.permute.xlu0 %2241
        %v2244 = vsel %vm1030, %v2180, 0
        %v2247 = vsel %vm1030, %v2182, 0
        %v2250 = vsel %vm1030, %v2184, 0
        %v2253 = vsel %vm1030, %v2186, 0
        %v2256 = vsel %vm1030, %v2228, 0
        %v2259 = vsel %vm1030, %v2230, 0
        %v2262 = vsel %vm1030, %v2232, 0
        %v2265 = vsel %vm1030, %v2234, 0
        %v2268 = vsel %vm1030, %v2236, 0
        %v2271 = vsel %vm1030, %v2238, 0
        %v2274 = vsel %vm1030, %v2240, 0
        %v2277 = vsel %vm1030, %v2242, 0
        %2279 = vmatprep.subr.bf16.mxu0 0
        %2280 = vmatpush1.bf16.xpose.msra.mxu0 %v2277
        %2281 = vmatprep.subr.bf16.mxu0 0
        %2282 = vmatpush1.bf16.xpose.msra.mxu0 %v2274
        %2283 = vmatprep.subr.bf16.mxu0 0
        %2284 = vmatpush1.bf16.xpose.msra.mxu0 %v2271
        %2285 = vmatprep.subr.bf16.mxu0 0
        %2286 = vmatpush1.bf16.xpose.msra.mxu0 %v2268
        %2287 = vmatprep.subr.bf16.mxu0 0
        %2288 = vmatpush1.bf16.xpose.msra.mxu0 %v2265
        %2289 = vmatprep.subr.bf16.mxu0 0
        %2290 = vmatpush1.bf16.xpose.msra.mxu0 %v2262
        %2291 = vmatprep.subr.bf16.mxu0 0
        %2292 = vmatpush1.bf16.xpose.msra.mxu0 %v2259
        %2293 = vmatprep.subr.bf16.mxu0 0
        %2294 = vmatpush1.bf16.xpose.msra.mxu0 %v2256
        %2295 = vmatprep.subr.bf16.mxu0 0
        %2296 = vmatpush2.bf16.xpose.msra.mxu0 0
        %2297 = vmatprep.subr.bf16.mxu0 0
        %2298 = vmatpush2.bf16.xpose.msra.mxu0 0
        %2299 = vmatprep.subr.bf16.mxu0 0
        %2300 = vmatpush2.bf16.xpose.msra.mxu0 0
        %2301 = vmatprep.subr.bf16.mxu0 0
        %2302 = vmatpush2.bf16.xpose.msra.mxu0 0
        %2303 = vmatprep.subr.bf16.mxu0 0
        %2304 = vmatpush2.bf16.xpose.msra.mxu0 0
        %2305 = vmatprep.subr.bf16.mxu0 0
        %2306 = vmatpush2.bf16.xpose.msra.mxu0 0
        %2307 = vmatprep.subr.bf16.mxu0 0
        %2308 = vmatpush2.bf16.xpose.msra.mxu0 0
        %2309 = vmatprep.subr.bf16.mxu0 0
        %2310 = vmatpush2.bf16.xpose.msra.mxu0 0
        %2311 = vmatprep.mubr.bf16.mxu0 0
        %2312 = vmatmul.mubr.bf16.gmra.mxu0 %v2244
        %v2313 = vpop.f32.mrf.mxu0
        %v2314 = vadd.f32 0.0, %v2313
        %v2315 = vpop.f32.mrf.mxu0
        %v2316 = vpop.f32.mrf.mxu0
        %v2317 = vadd.f32 0.0, %v2316
        %v2318 = vpop.f32.mrf.mxu0
        %2319 = vmatprep.mubr.bf16.mxu0 0
        %2320 = vmatmul.mubr.bf16.gmra.mxu0 %v2247
        %v2321 = vpop.f32.mrf.mxu0
        %v2322 = vadd.f32 0.0, %v2321
        %v2323 = vpop.f32.mrf.mxu0
        %v2324 = vpop.f32.mrf.mxu0
        %v2325 = vadd.f32 0.0, %v2324
        %v2326 = vpop.f32.mrf.mxu0
        %2327 = vmatprep.mubr.bf16.mxu0 0
        %2328 = vmatmul.mubr.bf16.gmra.mxu0 %v2250
        %v2329 = vpop.f32.mrf.mxu0
        %v2330 = vadd.f32 0.0, %v2329
        %v2331 = vpop.f32.mrf.mxu0
        %v2332 = vpop.f32.mrf.mxu0
        %v2333 = vadd.f32 0.0, %v2332
        %v2334 = vpop.f32.mrf.mxu0
        %2335 = vmatprep.mubr.bf16.mxu0 0
        %2336 = vmatmul.mubr.bf16.gmra.mxu0 %v2253
        %v2337 = vpop.f32.mrf.mxu0
        %v2338 = vadd.f32 0.0, %v2337
        %v2339 = vpop.f32.mrf.mxu0
        %v2340 = vpop.f32.mrf.mxu0
        %v2341 = vadd.f32 0.0, %v2340
        %v2342 = vpop.f32.mrf.mxu0
        %2343 = vdwg.mxu0
        %2344 = vmax.xlane.f32.xlu0 %v2314
        %v2345 = vpop.xlane.xlu0 %2344
        %2346 = vmax.xlane.f32.xlu0 %v2317
        %v2347 = vpop.xlane.xlu0 %2346
        %2348 = vmax.xlane.f32.xlu0 %v2322
        %v2349 = vpop.xlane.xlu0 %2348
        %2350 = vmax.xlane.f32.xlu0 %v2325
        %v2351 = vpop.xlane.xlu0 %2350
        %2352 = vmax.xlane.f32.xlu0 %v2330
        %v2353 = vpop.xlane.xlu0 %2352
        %2354 = vmax.xlane.f32.xlu0 %v2333
        %v2355 = vpop.xlane.xlu0 %2354
        %2356 = vmax.xlane.f32.xlu0 %v2338
        %v2357 = vpop.xlane.xlu0 %2356
        %2358 = vmax.xlane.f32.xlu0 %v2341
        %v2359 = vpop.xlane.xlu0 %2358
        %v2360 = vsub.f32 %v2314, %v2345
        %v2361 = vsub.f32 %v2317, %v2347
        %v2362 = vsub.f32 %v2322, %v2349
        %v2363 = vsub.f32 %v2325, %v2351
        %v2364 = vsub.f32 %v2330, %v2353
        %v2365 = vsub.f32 %v2333, %v2355
        %v2366 = vsub.f32 %v2338, %v2357
        %v2367 = vsub.f32 %v2341, %v2359
        %v2368 = vmul.f32 %v2360, 1.442695
        %v2369 = vpow.pop %v2368
        %v2370 = vmul.f32 %v2361, 1.442695
        %v2371 = vpow.pop %v2370
        %v2372 = vmul.f32 %v2362, 1.442695
        %v2373 = vpow.pop %v2372
        %v2374 = vmul.f32 %v2363, 1.442695
        %v2375 = vpow.pop %v2374
        %v2376 = vmul.f32 %v2364, 1.442695
        %v2377 = vpow.pop %v2376
        %v2378 = vmul.f32 %v2365, 1.442695
        %v2379 = vpow.pop %v2378
        %v2380 = vmul.f32 %v2366, 1.442695
        %v2381 = vpow.pop %v2380
        %v2382 = vmul.f32 %v2367, 1.442695
        %v2383 = vpow.pop %v2382
        %2384 = vadd.xlane.f32.xlu0 %v2369
        %v2385 = vpop.xlane.xlu0 %2384
        %2386 = vadd.xlane.f32.xlu0 %v2371
        %v2387 = vpop.xlane.xlu0 %2386
        %2388 = vadd.xlane.f32.xlu0 %v2373
        %v2389 = vpop.xlane.xlu0 %2388
        %2390 = vadd.xlane.f32.xlu0 %v2375
        %v2391 = vpop.xlane.xlu0 %2390
        %2392 = vadd.xlane.f32.xlu0 %v2377
        %v2393 = vpop.xlane.xlu0 %2392
        %2394 = vadd.xlane.f32.xlu0 %v2379
        %v2395 = vpop.xlane.xlu0 %2394
        %2396 = vadd.xlane.f32.xlu0 %v2381
        %v2397 = vpop.xlane.xlu0 %2396
        %2398 = vadd.xlane.f32.xlu0 %v2383
        %v2399 = vpop.xlane.xlu0 %2398
        %v2400 = vpack.c.bf16 %v2371, %v2369
        %v2401 = vpack.c.bf16 %v2375, %v2373
        %v2402 = vpack.c.bf16 %v2379, %v2377
        %v2403 = vpack.c.bf16 %v2383, %v2381
        %2412 = vmatprep.subr.bf16.mxu0 0
        %2413 = vmatpush1.bf16.msra.mxu0 %v2242
        %2414 = vmatprep.subr.bf16.mxu0 0
        %2415 = vmatpush1.bf16.msra.mxu0 %v2240
        %2416 = vmatprep.subr.bf16.mxu0 0
        %2417 = vmatpush1.bf16.msra.mxu0 %v2238
        %2418 = vmatprep.subr.bf16.mxu0 0
        %2419 = vmatpush1.bf16.msra.mxu0 %v2236
        %2420 = vmatprep.subr.bf16.mxu0 0
        %2421 = vmatpush1.bf16.msra.mxu0 %v2234
        %2422 = vmatprep.subr.bf16.mxu0 0
        %2423 = vmatpush1.bf16.msra.mxu0 %v2232
        %2424 = vmatprep.subr.bf16.mxu0 0
        %2425 = vmatpush1.bf16.msra.mxu0 %v2230
        %2426 = vmatprep.subr.bf16.mxu0 0
        %2427 = vmatpush1.bf16.msra.mxu0 %v2228
        %2428 = vmatprep.subr.bf16.mxu0 0
        %2429 = vmatpush2.bf16.msra.mxu0 0
        %2430 = vmatprep.subr.bf16.mxu0 0
        %2431 = vmatpush2.bf16.msra.mxu0 0
        %2432 = vmatprep.subr.bf16.mxu0 0
        %2433 = vmatpush2.bf16.msra.mxu0 0
        %2434 = vmatprep.subr.bf16.mxu0 0
        %2435 = vmatpush2.bf16.msra.mxu0 0
        %2436 = vmatprep.subr.bf16.mxu0 0
        %2437 = vmatpush2.bf16.msra.mxu0 0
        %2438 = vmatprep.subr.bf16.mxu0 0
        %2439 = vmatpush2.bf16.msra.mxu0 0
        %2440 = vmatprep.subr.bf16.mxu0 0
        %2441 = vmatpush2.bf16.msra.mxu0 0
        %2442 = vmatprep.subr.bf16.mxu0 0
        %2443 = vmatpush2.bf16.msra.mxu0 0
        %2444 = vmatprep.mubr.bf16.mxu0 0
        %2445 = vmatmul.mubr.bf16.gmra.mxu0 %v2400
        %v2446 = vpop.f32.mrf.mxu0
        %v2447 = vadd.f32 0.0, %v2446
        %v2448 = vpop.f32.mrf.mxu0
        %v2449 = vpop.f32.mrf.mxu0
        %v2450 = vadd.f32 0.0, %v2449
        %v2451 = vpop.f32.mrf.mxu0
        %2452 = vmatprep.mubr.bf16.mxu0 0
        %2453 = vmatmul.mubr.bf16.gmra.mxu0 %v2401
        %v2454 = vpop.f32.mrf.mxu0
        %v2455 = vadd.f32 0.0, %v2454
        %v2456 = vpop.f32.mrf.mxu0
        %v2457 = vpop.f32.mrf.mxu0
        %v2458 = vadd.f32 0.0, %v2457
        %v2459 = vpop.f32.mrf.mxu0
        %2460 = vmatprep.mubr.bf16.mxu0 0
        %2461 = vmatmul.mubr.bf16.gmra.mxu0 %v2402
        %v2462 = vpop.f32.mrf.mxu0
        %v2463 = vadd.f32 0.0, %v2462
        %v2464 = vpop.f32.mrf.mxu0
        %v2465 = vpop.f32.mrf.mxu0
        %v2466 = vadd.f32 0.0, %v2465
        %v2467 = vpop.f32.mrf.mxu0
        %2468 = vmatprep.mubr.bf16.mxu0 0
        %2469 = vmatmul.mubr.bf16.gmra.mxu0 %v2403
        %v2470 = vpop.f32.mrf.mxu0
        %v2471 = vadd.f32 0.0, %v2470
        %v2472 = vpop.f32.mrf.mxu0
        %v2473 = vpop.f32.mrf.mxu0
        %v2474 = vadd.f32 0.0, %v2473
        %v2475 = vpop.f32.mrf.mxu0
        %2476 = vdwg.mxu0
        %v2477 = vrcp.pop %v2385
        %v2478 = vrcp.pop %v2387
        %v2479 = vrcp.pop %v2389
        %v2480 = vrcp.pop %v2391
        %v2481 = vrcp.pop %v2393
        %v2482 = vrcp.pop %v2395
        %v2483 = vrcp.pop %v2397
        %v2484 = vrcp.pop %v2399
        %v2485 = vmul.f32 %v2447, %v2477
        %v2486 = vmul.f32 %v2450, %v2478
        %v2487 = vmul.f32 %v2455, %v2479
        %v2488 = vmul.f32 %v2458, %v2480
        %v2489 = vmul.f32 %v2463, %v2481
        %v2490 = vmul.f32 %v2466, %v2482
        %v2491 = vmul.f32 %v2471, %v2483
        %v2492 = vmul.f32 %v2474, %v2484
        %v2493 = vpack.c.bf16 %v2486, %v2485
        %v2494 = vpack.c.bf16 %v2488, %v2487
        %v2495 = vpack.c.bf16 %v2490, %v2489
        %v2496 = vpack.c.bf16 %v2492, %v2491
        %v2501 = vunpack.c.l.b16 %v2493
        %v2502 = vunpack.c.h.b16 %v2493
        %v2503 = vunpack.c.l.b16 %v2494
        %v2504 = vunpack.c.h.b16 %v2494
        %v2505 = vunpack.c.l.b16 %v2495
        %v2506 = vunpack.c.h.b16 %v2495
        %v2507 = vunpack.c.l.b16 %v2496
        %v2508 = vunpack.c.h.b16 %v2496
        %v2509 = vpack.c.b16 %v2501, %v2501
        %v2510 = vpack.c.b16 %v2502, %v2502
        %v2511 = vpack.c.b16 %v2503, %v2503
        %v2512 = vpack.c.b16 %v2504, %v2504
        %v2513 = vpack.c.b16 %v2505, %v2505
        %v2514 = vpack.c.b16 %v2506, %v2506
        %v2515 = vpack.c.b16 %v2507, %v2507
        %v2516 = vpack.c.b16 %v2508, %v2508
        %2517 = vrot.lane.b32.xlu0 %v2509, 64
        %v2518 = vpop.permute.xlu0 %2517
        %2519 = vrot.lane.b32.xlu0 %v2510, 64
        %v2520 = vpop.permute.xlu0 %2519
        %2521 = vrot.lane.b32.xlu0 %v2511, 64
        %v2522 = vpop.permute.xlu0 %2521
        %2523 = vrot.lane.b32.xlu0 %v2512, 64
        %v2524 = vpop.permute.xlu0 %2523
        %2525 = vrot.lane.b32.xlu0 %v2513, 64
        %v2526 = vpop.permute.xlu0 %2525
        %2527 = vrot.lane.b32.xlu0 %v2514, 64
        %v2528 = vpop.permute.xlu0 %2527
        %2529 = vrot.lane.b32.xlu0 %v2515, 64
        %v2530 = vpop.permute.xlu0 %2529
        %2531 = vrot.lane.b32.xlu0 %v2516, 64
        %v2532 = vpop.permute.xlu0 %2531
        %2541 = vst.msk [vmem:[#allocation3 + $0x4] sm:$0xf] %vm1736, %v2518
        %2542 = vst.msk [vmem:[#allocation3 + $0x14] sm:$0xf] %vm1736, %v2520
        %2543 = vst.msk [vmem:[#allocation3 + $0x24] sm:$0xf] %vm1736, %v2522
        %2544 = vst.msk [vmem:[#allocation3 + $0x34] sm:$0xf] %vm1736, %v2524
        %2545 = vst.msk [vmem:[#allocation3 + $0x44] sm:$0xf] %vm1736, %v2526
        %2546 = vst.msk [vmem:[#allocation3 + $0x54] sm:$0xf] %vm1736, %v2528
        %2547 = vst.msk [vmem:[#allocation3 + $0x64] sm:$0xf] %vm1736, %v2530
        %2548 = vst.msk [vmem:[#allocation3 + $0x74] sm:$0xf] %vm1736, %v2532
        %v2549 = vld [vmem:[%s937 + $0x8] sm:$0xf]
        %v2550 = vld [vmem:[%s937 + $0x18] sm:$0xf]
        %v2551 = vld [vmem:[%s937 + $0x28] sm:$0xf]
        %v2552 = vld [vmem:[%s937 + $0x38] sm:$0xf]
        %v2553 = vld [vmem:[%s937 + $0x48] sm:$0xf]
        %v2554 = vld [vmem:[%s937 + $0x58] sm:$0xf]
        %v2555 = vld [vmem:[%s937 + $0x68] sm:$0xf]
        %v2556 = vld [vmem:[%s937 + $0x78] sm:$0xf]
        %v2557 = vmul.bf16 %v2549, 1040203264
        %v2558 = vmul.bf16 %v2550, 1040203264
        %v2559 = vmul.bf16 %v2551, 1040203264
        %v2560 = vmul.bf16 %v2552, 1040203264
        %v2561 = vmul.bf16 %v2553, 1040203264
        %v2562 = vmul.bf16 %v2554, 1040203264
        %v2563 = vmul.bf16 %v2555, 1040203264
        %v2564 = vmul.bf16 %v2556, 1040203264
        %v2565 = vld [vmem:[#allocation2 + $0x8] sm:$0xf]
        %v2566 = vld [vmem:[#allocation2 + $0x18] sm:$0xf]
        %v2567 = vld [vmem:[#allocation2 + $0x28] sm:$0xf]
        %v2568 = vld [vmem:[#allocation2 + $0x38] sm:$0xf]
        %v2569 = vld [vmem:[#allocation2 + $0x48] sm:$0xf]
        %v2570 = vld [vmem:[#allocation2 + $0x58] sm:$0xf]
        %v2571 = vld [vmem:[#allocation2 + $0x68] sm:$0xf]
        %v2572 = vld [vmem:[#allocation2 + $0x78] sm:$0xf]
        %v2573 = vld [vmem:[#allocation2 + $0x88] sm:$0xf]
        %v2574 = vld [vmem:[#allocation2 + $0x98] sm:$0xf]
        %v2575 = vld [vmem:[#allocation2 + $0xa8] sm:$0xf]
        %v2576 = vld [vmem:[#allocation2 + $0xb8] sm:$0xf]
        %v2577 = vld [vmem:[#allocation2 + $0xc8] sm:$0xf]
        %v2578 = vld [vmem:[#allocation2 + $0xd8] sm:$0xf]
        %v2579 = vld [vmem:[#allocation2 + $0xe8] sm:$0xf]
        %v2580 = vld [vmem:[#allocation2 + $0xf8] sm:$0xf]
        %v2589 = vunpack.c.l.b16 %v2557
        %v2590 = vunpack.c.l.b16 %v2558
        %v2591 = vunpack.c.l.b16 %v2559
        %v2592 = vunpack.c.l.b16 %v2560
        %v2593 = vunpack.c.l.b16 %v2561
        %v2594 = vunpack.c.l.b16 %v2562
        %v2595 = vunpack.c.l.b16 %v2563
        %v2596 = vunpack.c.l.b16 %v2564
        %v2597 = vpack.c.b16 %v2590, %v2589
        %v2598 = vpack.c.b16 %v2592, %v2591
        %v2599 = vpack.c.b16 %v2594, %v2593
        %v2600 = vpack.c.b16 %v2596, %v2595
        %v2617 = vunpack.c.l.b16 %v2565
        %v2618 = vunpack.c.l.b16 %v2566
        %v2619 = vunpack.c.l.b16 %v2567
        %v2620 = vunpack.c.l.b16 %v2568
        %v2621 = vunpack.c.l.b16 %v2569
        %v2622 = vunpack.c.l.b16 %v2570
        %v2623 = vunpack.c.l.b16 %v2571
        %v2624 = vunpack.c.l.b16 %v2572
        %v2625 = vunpack.c.l.b16 %v2573
        %v2626 = vunpack.c.l.b16 %v2574
        %v2627 = vunpack.c.l.b16 %v2575
        %v2628 = vunpack.c.l.b16 %v2576
        %v2629 = vunpack.c.l.b16 %v2577
        %v2630 = vunpack.c.l.b16 %v2578
        %v2631 = vunpack.c.l.b16 %v2579
        %v2632 = vunpack.c.l.b16 %v2580
        %v2633 = vpack.c.b16 %v2618, %v2617
        %v2634 = vpack.c.b16 %v2620, %v2619
        %v2635 = vpack.c.b16 %v2622, %v2621
        %v2636 = vpack.c.b16 %v2624, %v2623
        %v2637 = vpack.c.b16 %v2626, %v2625
        %v2638 = vpack.c.b16 %v2628, %v2627
        %v2639 = vpack.c.b16 %v2630, %v2629
        %v2640 = vpack.c.b16 %v2632, %v2631
        %v2642 = vsel %vm1030, %v2597, 0
        %v2645 = vsel %vm1030, %v2598, 0
        %v2648 = vsel %vm1030, %v2599, 0
        %v2651 = vsel %vm1030, %v2600, 0
        %v2654 = vsel %vm1030, %v2633, 0
        %v2657 = vsel %vm1030, %v2634, 0
        %v2660 = vsel %vm1030, %v2635, 0
        %v2663 = vsel %vm1030, %v2636, 0
        %v2666 = vsel %vm1030, %v2637, 0
        %v2669 = vsel %vm1030, %v2638, 0
        %v2672 = vsel %vm1030, %v2639, 0
        %v2675 = vsel %vm1030, %v2640, 0
        %2677 = vmatprep.subr.bf16.mxu0 0
        %2678 = vmatpush1.bf16.xpose.msra.mxu0 %v2675
        %2679 = vmatprep.subr.bf16.mxu0 0
        %2680 = vmatpush1.bf16.xpose.msra.mxu0 %v2672
        %2681 = vmatprep.subr.bf16.mxu0 0
        %2682 = vmatpush1.bf16.xpose.msra.mxu0 %v2669
        %2683 = vmatprep.subr.bf16.mxu0 0
        %2684 = vmatpush1.bf16.xpose.msra.mxu0 %v2666
        %2685 = vmatprep.subr.bf16.mxu0 0
        %2686 = vmatpush1.bf16.xpose.msra.mxu0 %v2663
        %2687 = vmatprep.subr.bf16.mxu0 0
        %2688 = vmatpush1.bf16.xpose.msra.mxu0 %v2660
        %2689 = vmatprep.subr.bf16.mxu0 0
        %2690 = vmatpush1.bf16.xpose.msra.mxu0 %v2657
        %2691 = vmatprep.subr.bf16.mxu0 0
        %2692 = vmatpush1.bf16.xpose.msra.mxu0 %v2654
        %2693 = vmatprep.subr.bf16.mxu0 0
        %2694 = vmatpush2.bf16.xpose.msra.mxu0 0
        %2695 = vmatprep.subr.bf16.mxu0 0
        %2696 = vmatpush2.bf16.xpose.msra.mxu0 0
        %2697 = vmatprep.subr.bf16.mxu0 0
        %2698 = vmatpush2.bf16.xpose.msra.mxu0 0
        %2699 = vmatprep.subr.bf16.mxu0 0
        %2700 = vmatpush2.bf16.xpose.msra.mxu0 0
        %2701 = vmatprep.subr.bf16.mxu0 0
        %2702 = vmatpush2.bf16.xpose.msra.mxu0 0
        %2703 = vmatprep.subr.bf16.mxu0 0
        %2704 = vmatpush2.bf16.xpose.msra.mxu0 0
        %2705 = vmatprep.subr.bf16.mxu0 0
        %2706 = vmatpush2.bf16.xpose.msra.mxu0 0
        %2707 = vmatprep.subr.bf16.mxu0 0
        %2708 = vmatpush2.bf16.xpose.msra.mxu0 0
        %2709 = vmatprep.mubr.bf16.mxu0 0
        %2710 = vmatmul.mubr.bf16.gmra.mxu0 %v2642
        %v2711 = vpop.f32.mrf.mxu0
        %v2712 = vadd.f32 0.0, %v2711
        %v2713 = vpop.f32.mrf.mxu0
        %v2714 = vpop.f32.mrf.mxu0
        %v2715 = vadd.f32 0.0, %v2714
        %v2716 = vpop.f32.mrf.mxu0
        %2717 = vmatprep.mubr.bf16.mxu0 0
        %2718 = vmatmul.mubr.bf16.gmra.mxu0 %v2645
        %v2719 = vpop.f32.mrf.mxu0
        %v2720 = vadd.f32 0.0, %v2719
        %v2721 = vpop.f32.mrf.mxu0
        %v2722 = vpop.f32.mrf.mxu0
        %v2723 = vadd.f32 0.0, %v2722
        %v2724 = vpop.f32.mrf.mxu0
        %2725 = vmatprep.mubr.bf16.mxu0 0
        %2726 = vmatmul.mubr.bf16.gmra.mxu0 %v2648
        %v2727 = vpop.f32.mrf.mxu0
        %v2728 = vadd.f32 0.0, %v2727
        %v2729 = vpop.f32.mrf.mxu0
        %v2730 = vpop.f32.mrf.mxu0
        %v2731 = vadd.f32 0.0, %v2730
        %v2732 = vpop.f32.mrf.mxu0
        %2733 = vmatprep.mubr.bf16.mxu0 0
        %2734 = vmatmul.mubr.bf16.gmra.mxu0 %v2651
        %v2735 = vpop.f32.mrf.mxu0
        %v2736 = vadd.f32 0.0, %v2735
        %v2737 = vpop.f32.mrf.mxu0
        %v2738 = vpop.f32.mrf.mxu0
        %v2739 = vadd.f32 0.0, %v2738
        %v2740 = vpop.f32.mrf.mxu0
        %2741 = vdwg.mxu0
        %2742 = vmax.xlane.f32.xlu0 %v2712
        %v2743 = vpop.xlane.xlu0 %2742
        %2744 = vmax.xlane.f32.xlu0 %v2715
        %v2745 = vpop.xlane.xlu0 %2744
        %2746 = vmax.xlane.f32.xlu0 %v2720
        %v2747 = vpop.xlane.xlu0 %2746
        %2748 = vmax.xlane.f32.xlu0 %v2723
        %v2749 = vpop.xlane.xlu0 %2748
        %2750 = vmax.xlane.f32.xlu0 %v2728
        %v2751 = vpop.xlane.xlu0 %2750
        %2752 = vmax.xlane.f32.xlu0 %v2731
        %v2753 = vpop.xlane.xlu0 %2752
        %2754 = vmax.xlane.f32.xlu0 %v2736
        %v2755 = vpop.xlane.xlu0 %2754
        %2756 = vmax.xlane.f32.xlu0 %v2739
        %v2757 = vpop.xlane.xlu0 %2756
        %v2758 = vsub.f32 %v2712, %v2743
        %v2759 = vsub.f32 %v2715, %v2745
        %v2760 = vsub.f32 %v2720, %v2747
        %v2761 = vsub.f32 %v2723, %v2749
        %v2762 = vsub.f32 %v2728, %v2751
        %v2763 = vsub.f32 %v2731, %v2753
        %v2764 = vsub.f32 %v2736, %v2755
        %v2765 = vsub.f32 %v2739, %v2757
        %v2766 = vmul.f32 %v2758, 1.442695
        %v2767 = vpow.pop %v2766
        %v2768 = vmul.f32 %v2759, 1.442695
        %v2769 = vpow.pop %v2768
        %v2770 = vmul.f32 %v2760, 1.442695
        %v2771 = vpow.pop %v2770
        %v2772 = vmul.f32 %v2761, 1.442695
        %v2773 = vpow.pop %v2772
        %v2774 = vmul.f32 %v2762, 1.442695
        %v2775 = vpow.pop %v2774
        %v2776 = vmul.f32 %v2763, 1.442695
        %v2777 = vpow.pop %v2776
        %v2778 = vmul.f32 %v2764, 1.442695
        %v2779 = vpow.pop %v2778
        %v2780 = vmul.f32 %v2765, 1.442695
        %v2781 = vpow.pop %v2780
        %2782 = vadd.xlane.f32.xlu0 %v2767
        %v2783 = vpop.xlane.xlu0 %2782
        %2784 = vadd.xlane.f32.xlu0 %v2769
        %v2785 = vpop.xlane.xlu0 %2784
        %2786 = vadd.xlane.f32.xlu0 %v2771
        %v2787 = vpop.xlane.xlu0 %2786
        %2788 = vadd.xlane.f32.xlu0 %v2773
        %v2789 = vpop.xlane.xlu0 %2788
        %2790 = vadd.xlane.f32.xlu0 %v2775
        %v2791 = vpop.xlane.xlu0 %2790
        %2792 = vadd.xlane.f32.xlu0 %v2777
        %v2793 = vpop.xlane.xlu0 %2792
        %2794 = vadd.xlane.f32.xlu0 %v2779
        %v2795 = vpop.xlane.xlu0 %2794
        %2796 = vadd.xlane.f32.xlu0 %v2781
        %v2797 = vpop.xlane.xlu0 %2796
        %v2798 = vpack.c.bf16 %v2769, %v2767
        %v2799 = vpack.c.bf16 %v2773, %v2771
        %v2800 = vpack.c.bf16 %v2777, %v2775
        %v2801 = vpack.c.bf16 %v2781, %v2779
        %2810 = vmatprep.subr.bf16.mxu0 0
        %2811 = vmatpush1.bf16.msra.mxu0 %v2640
        %2812 = vmatprep.subr.bf16.mxu0 0
        %2813 = vmatpush1.bf16.msra.mxu0 %v2639
        %2814 = vmatprep.subr.bf16.mxu0 0
        %2815 = vmatpush1.bf16.msra.mxu0 %v2638
        %2816 = vmatprep.subr.bf16.mxu0 0
        %2817 = vmatpush1.bf16.msra.mxu0 %v2637
        %2818 = vmatprep.subr.bf16.mxu0 0
        %2819 = vmatpush1.bf16.msra.mxu0 %v2636
        %2820 = vmatprep.subr.bf16.mxu0 0
        %2821 = vmatpush1.bf16.msra.mxu0 %v2635
        %2822 = vmatprep.subr.bf16.mxu0 0
        %2823 = vmatpush1.bf16.msra.mxu0 %v2634
        %2824 = vmatprep.subr.bf16.mxu0 0
        %2825 = vmatpush1.bf16.msra.mxu0 %v2633
        %2826 = vmatprep.subr.bf16.mxu0 0
        %2827 = vmatpush2.bf16.msra.mxu0 0
        %2828 = vmatprep.subr.bf16.mxu0 0
        %2829 = vmatpush2.bf16.msra.mxu0 0
        %2830 = vmatprep.subr.bf16.mxu0 0
        %2831 = vmatpush2.bf16.msra.mxu0 0
        %2832 = vmatprep.subr.bf16.mxu0 0
        %2833 = vmatpush2.bf16.msra.mxu0 0
        %2834 = vmatprep.subr.bf16.mxu0 0
        %2835 = vmatpush2.bf16.msra.mxu0 0
        %2836 = vmatprep.subr.bf16.mxu0 0
        %2837 = vmatpush2.bf16.msra.mxu0 0
        %2838 = vmatprep.subr.bf16.mxu0 0
        %2839 = vmatpush2.bf16.msra.mxu0 0
        %2840 = vmatprep.subr.bf16.mxu0 0
        %2841 = vmatpush2.bf16.msra.mxu0 0
        %2842 = vmatprep.mubr.bf16.mxu0 0
        %2843 = vmatmul.mubr.bf16.gmra.mxu0 %v2798
        %v2844 = vpop.f32.mrf.mxu0
        %v2845 = vadd.f32 0.0, %v2844
        %v2846 = vpop.f32.mrf.mxu0
        %v2847 = vpop.f32.mrf.mxu0
        %v2848 = vadd.f32 0.0, %v2847
        %v2849 = vpop.f32.mrf.mxu0
        %2850 = vmatprep.mubr.bf16.mxu0 0
        %2851 = vmatmul.mubr.bf16.gmra.mxu0 %v2799
        %v2852 = vpop.f32.mrf.mxu0
        %v2853 = vadd.f32 0.0, %v2852
        %v2854 = vpop.f32.mrf.mxu0
        %v2855 = vpop.f32.mrf.mxu0
        %v2856 = vadd.f32 0.0, %v2855
        %v2857 = vpop.f32.mrf.mxu0
        %2858 = vmatprep.mubr.bf16.mxu0 0
        %2859 = vmatmul.mubr.bf16.gmra.mxu0 %v2800
        %v2860 = vpop.f32.mrf.mxu0
        %v2861 = vadd.f32 0.0, %v2860
        %v2862 = vpop.f32.mrf.mxu0
        %v2863 = vpop.f32.mrf.mxu0
        %v2864 = vadd.f32 0.0, %v2863
        %v2865 = vpop.f32.mrf.mxu0
        %2866 = vmatprep.mubr.bf16.mxu0 0
        %2867 = vmatmul.mubr.bf16.gmra.mxu0 %v2801
        %v2868 = vpop.f32.mrf.mxu0
        %v2869 = vadd.f32 0.0, %v2868
        %v2870 = vpop.f32.mrf.mxu0
        %v2871 = vpop.f32.mrf.mxu0
        %v2872 = vadd.f32 0.0, %v2871
        %v2873 = vpop.f32.mrf.mxu0
        %2874 = vdwg.mxu0
        %v2875 = vrcp.pop %v2783
        %v2876 = vrcp.pop %v2785
        %v2877 = vrcp.pop %v2787
        %v2878 = vrcp.pop %v2789
        %v2879 = vrcp.pop %v2791
        %v2880 = vrcp.pop %v2793
        %v2881 = vrcp.pop %v2795
        %v2882 = vrcp.pop %v2797
        %v2883 = vmul.f32 %v2845, %v2875
        %v2884 = vmul.f32 %v2848, %v2876
        %v2885 = vmul.f32 %v2853, %v2877
        %v2886 = vmul.f32 %v2856, %v2878
        %v2887 = vmul.f32 %v2861, %v2879
        %v2888 = vmul.f32 %v2864, %v2880
        %v2889 = vmul.f32 %v2869, %v2881
        %v2890 = vmul.f32 %v2872, %v2882
        %v2891 = vpack.c.bf16 %v2884, %v2883
        %v2892 = vpack.c.bf16 %v2886, %v2885
        %v2893 = vpack.c.bf16 %v2888, %v2887
        %v2894 = vpack.c.bf16 %v2890, %v2889
        %v2899 = vunpack.c.l.b16 %v2891
        %v2900 = vunpack.c.h.b16 %v2891
        %v2901 = vunpack.c.l.b16 %v2892
        %v2902 = vunpack.c.h.b16 %v2892
        %v2903 = vunpack.c.l.b16 %v2893
        %v2904 = vunpack.c.h.b16 %v2893
        %v2905 = vunpack.c.l.b16 %v2894
        %v2906 = vunpack.c.h.b16 %v2894
        %v2907 = vpack.c.b16 %v2899, %v2899
        %v2908 = vpack.c.b16 %v2900, %v2900
        %v2909 = vpack.c.b16 %v2901, %v2901
        %v2910 = vpack.c.b16 %v2902, %v2902
        %v2911 = vpack.c.b16 %v2903, %v2903
        %v2912 = vpack.c.b16 %v2904, %v2904
        %v2913 = vpack.c.b16 %v2905, %v2905
        %v2914 = vpack.c.b16 %v2906, %v2906
        %2923 = vst.msk [vmem:[#allocation3 + $0x8] sm:$0xf] %vm1313, %v2907
        %2924 = vst.msk [vmem:[#allocation3 + $0x18] sm:$0xf] %vm1313, %v2908
        %2925 = vst.msk [vmem:[#allocation3 + $0x28] sm:$0xf] %vm1313, %v2909
        %2926 = vst.msk [vmem:[#allocation3 + $0x38] sm:$0xf] %vm1313, %v2910
        %2927 = vst.msk [vmem:[#allocation3 + $0x48] sm:$0xf] %vm1313, %v2911
        %2928 = vst.msk [vmem:[#allocation3 + $0x58] sm:$0xf] %vm1313, %v2912
        %2929 = vst.msk [vmem:[#allocation3 + $0x68] sm:$0xf] %vm1313, %v2913
        %2930 = vst.msk [vmem:[#allocation3 + $0x78] sm:$0xf] %vm1313, %v2914
        %v2931 = vld [vmem:[%s937 + $0x8] sm:$0xf]
        %v2932 = vld [vmem:[%s937 + $0x18] sm:$0xf]
        %v2933 = vld [vmem:[%s937 + $0x28] sm:$0xf]
        %v2934 = vld [vmem:[%s937 + $0x38] sm:$0xf]
        %v2935 = vld [vmem:[%s937 + $0x48] sm:$0xf]
        %v2936 = vld [vmem:[%s937 + $0x58] sm:$0xf]
        %v2937 = vld [vmem:[%s937 + $0x68] sm:$0xf]
        %v2938 = vld [vmem:[%s937 + $0x78] sm:$0xf]
        %v2939 = vmul.bf16 %v2931, 1040203264
        %v2940 = vmul.bf16 %v2932, 1040203264
        %v2941 = vmul.bf16 %v2933, 1040203264
        %v2942 = vmul.bf16 %v2934, 1040203264
        %v2943 = vmul.bf16 %v2935, 1040203264
        %v2944 = vmul.bf16 %v2936, 1040203264
        %v2945 = vmul.bf16 %v2937, 1040203264
        %v2946 = vmul.bf16 %v2938, 1040203264
        %v2947 = vld [vmem:[#allocation2 + $0x8] sm:$0xf]
        %v2948 = vld [vmem:[#allocation2 + $0x18] sm:$0xf]
        %v2949 = vld [vmem:[#allocation2 + $0x28] sm:$0xf]
        %v2950 = vld [vmem:[#allocation2 + $0x38] sm:$0xf]
        %v2951 = vld [vmem:[#allocation2 + $0x48] sm:$0xf]
        %v2952 = vld [vmem:[#allocation2 + $0x58] sm:$0xf]
        %v2953 = vld [vmem:[#allocation2 + $0x68] sm:$0xf]
        %v2954 = vld [vmem:[#allocation2 + $0x78] sm:$0xf]
        %v2955 = vld [vmem:[#allocation2 + $0x88] sm:$0xf]
        %v2956 = vld [vmem:[#allocation2 + $0x98] sm:$0xf]
        %v2957 = vld [vmem:[#allocation2 + $0xa8] sm:$0xf]
        %v2958 = vld [vmem:[#allocation2 + $0xb8] sm:$0xf]
        %v2959 = vld [vmem:[#allocation2 + $0xc8] sm:$0xf]
        %v2960 = vld [vmem:[#allocation2 + $0xd8] sm:$0xf]
        %v2961 = vld [vmem:[#allocation2 + $0xe8] sm:$0xf]
        %v2962 = vld [vmem:[#allocation2 + $0xf8] sm:$0xf]
        %v2971 = vunpack.c.l.b16 %v2939
        %v2972 = vunpack.c.l.b16 %v2940
        %v2973 = vunpack.c.l.b16 %v2941
        %v2974 = vunpack.c.l.b16 %v2942
        %v2975 = vunpack.c.l.b16 %v2943
        %v2976 = vunpack.c.l.b16 %v2944
        %v2977 = vunpack.c.l.b16 %v2945
        %v2978 = vunpack.c.l.b16 %v2946
        %v2979 = vpack.c.b16 %v2972, %v2971
        %v2980 = vpack.c.b16 %v2974, %v2973
        %v2981 = vpack.c.b16 %v2976, %v2975
        %v2982 = vpack.c.b16 %v2978, %v2977
        %2983 = vrot.lane.b32.xlu0 %v2979, 64
        %v2984 = vpop.permute.xlu0 %2983
        %2985 = vrot.lane.b32.xlu0 %v2980, 64
        %v2986 = vpop.permute.xlu0 %2985
        %2987 = vrot.lane.b32.xlu0 %v2981, 64
        %v2988 = vpop.permute.xlu0 %2987
        %2989 = vrot.lane.b32.xlu0 %v2982, 64
        %v2990 = vpop.permute.xlu0 %2989
        %v3007 = vunpack.c.l.b16 %v2947
        %v3008 = vunpack.c.l.b16 %v2948
        %v3009 = vunpack.c.l.b16 %v2949
        %v3010 = vunpack.c.l.b16 %v2950
        %v3011 = vunpack.c.l.b16 %v2951
        %v3012 = vunpack.c.l.b16 %v2952
        %v3013 = vunpack.c.l.b16 %v2953
        %v3014 = vunpack.c.l.b16 %v2954
        %v3015 = vunpack.c.l.b16 %v2955
        %v3016 = vunpack.c.l.b16 %v2956
        %v3017 = vunpack.c.l.b16 %v2957
        %v3018 = vunpack.c.l.b16 %v2958
        %v3019 = vunpack.c.l.b16 %v2959
        %v3020 = vunpack.c.l.b16 %v2960
        %v3021 = vunpack.c.l.b16 %v2961
        %v3022 = vunpack.c.l.b16 %v2962
        %v3023 = vpack.c.b16 %v3008, %v3007
        %v3024 = vpack.c.b16 %v3010, %v3009
        %v3025 = vpack.c.b16 %v3012, %v3011
        %v3026 = vpack.c.b16 %v3014, %v3013
        %v3027 = vpack.c.b16 %v3016, %v3015
        %v3028 = vpack.c.b16 %v3018, %v3017
        %v3029 = vpack.c.b16 %v3020, %v3019
        %v3030 = vpack.c.b16 %v3022, %v3021
        %3031 = vrot.lane.b32.xlu0 %v3023, 64
        %v3032 = vpop.permute.xlu0 %3031
        %3033 = vrot.lane.b32.xlu0 %v3024, 64
        %v3034 = vpop.permute.xlu0 %3033
        %3035 = vrot.lane.b32.xlu0 %v3025, 64
        %v3036 = vpop.permute.xlu0 %3035
        %3037 = vrot.lane.b32.xlu0 %v3026, 64
        %v3038 = vpop.permute.xlu0 %3037
        %3039 = vrot.lane.b32.xlu0 %v3027, 64
        %v3040 = vpop.permute.xlu0 %3039
        %3041 = vrot.lane.b32.xlu0 %v3028, 64
        %v3042 = vpop.permute.xlu0 %3041
        %3043 = vrot.lane.b32.xlu0 %v3029, 64
        %v3044 = vpop.permute.xlu0 %3043
        %3045 = vrot.lane.b32.xlu0 %v3030, 64
        %v3046 = vpop.permute.xlu0 %3045
        %v3048 = vsel %vm1030, %v2984, 0
        %v3051 = vsel %vm1030, %v2986, 0
        %v3054 = vsel %vm1030, %v2988, 0
        %v3057 = vsel %vm1030, %v2990, 0
        %v3060 = vsel %vm1030, %v3032, 0
        %v3063 = vsel %vm1030, %v3034, 0
        %v3066 = vsel %vm1030, %v3036, 0
        %v3069 = vsel %vm1030, %v3038, 0
        %v3072 = vsel %vm1030, %v3040, 0
        %v3075 = vsel %vm1030, %v3042, 0
        %v3078 = vsel %vm1030, %v3044, 0
        %v3081 = vsel %vm1030, %v3046, 0
        %3083 = vmatprep.subr.bf16.mxu0 0
        %3084 = vmatpush1.bf16.xpose.msra.mxu0 %v3081
        %3085 = vmatprep.subr.bf16.mxu0 0
        %3086 = vmatpush1.bf16.xpose.msra.mxu0 %v3078
        %3087 = vmatprep.subr.bf16.mxu0 0
        %3088 = vmatpush1.bf16.xpose.msra.mxu0 %v3075
        %3089 = vmatprep.subr.bf16.mxu0 0
        %3090 = vmatpush1.bf16.xpose.msra.mxu0 %v3072
        %3091 = vmatprep.subr.bf16.mxu0 0
        %3092 = vmatpush1.bf16.xpose.msra.mxu0 %v3069
        %3093 = vmatprep.subr.bf16.mxu0 0
        %3094 = vmatpush1.bf16.xpose.msra.mxu0 %v3066
        %3095 = vmatprep.subr.bf16.mxu0 0
        %3096 = vmatpush1.bf16.xpose.msra.mxu0 %v3063
        %3097 = vmatprep.subr.bf16.mxu0 0
        %3098 = vmatpush1.bf16.xpose.msra.mxu0 %v3060
        %3099 = vmatprep.subr.bf16.mxu0 0
        %3100 = vmatpush2.bf16.xpose.msra.mxu0 0
        %3101 = vmatprep.subr.bf16.mxu0 0
        %3102 = vmatpush2.bf16.xpose.msra.mxu0 0
        %3103 = vmatprep.subr.bf16.mxu0 0
        %3104 = vmatpush2.bf16.xpose.msra.mxu0 0
        %3105 = vmatprep.subr.bf16.mxu0 0
        %3106 = vmatpush2.bf16.xpose.msra.mxu0 0
        %3107 = vmatprep.subr.bf16.mxu0 0
        %3108 = vmatpush2.bf16.xpose.msra.mxu0 0
        %3109 = vmatprep.subr.bf16.mxu0 0
        %3110 = vmatpush2.bf16.xpose.msra.mxu0 0
        %3111 = vmatprep.subr.bf16.mxu0 0
        %3112 = vmatpush2.bf16.xpose.msra.mxu0 0
        %3113 = vmatprep.subr.bf16.mxu0 0
        %3114 = vmatpush2.bf16.xpose.msra.mxu0 0
        %3115 = vmatprep.mubr.bf16.mxu0 0
        %3116 = vmatmul.mubr.bf16.gmra.mxu0 %v3048
        %v3117 = vpop.f32.mrf.mxu0
        %v3118 = vadd.f32 0.0, %v3117
        %v3119 = vpop.f32.mrf.mxu0
        %v3120 = vpop.f32.mrf.mxu0
        %v3121 = vadd.f32 0.0, %v3120
        %v3122 = vpop.f32.mrf.mxu0
        %3123 = vmatprep.mubr.bf16.mxu0 0
        %3124 = vmatmul.mubr.bf16.gmra.mxu0 %v3051
        %v3125 = vpop.f32.mrf.mxu0
        %v3126 = vadd.f32 0.0, %v3125
        %v3127 = vpop.f32.mrf.mxu0
        %v3128 = vpop.f32.mrf.mxu0
        %v3129 = vadd.f32 0.0, %v3128
        %v3130 = vpop.f32.mrf.mxu0
        %3131 = vmatprep.mubr.bf16.mxu0 0
        %3132 = vmatmul.mubr.bf16.gmra.mxu0 %v3054
        %v3133 = vpop.f32.mrf.mxu0
        %v3134 = vadd.f32 0.0, %v3133
        %v3135 = vpop.f32.mrf.mxu0
        %v3136 = vpop.f32.mrf.mxu0
        %v3137 = vadd.f32 0.0, %v3136
        %v3138 = vpop.f32.mrf.mxu0
        %3139 = vmatprep.mubr.bf16.mxu0 0
        %3140 = vmatmul.mubr.bf16.gmra.mxu0 %v3057
        %v3141 = vpop.f32.mrf.mxu0
        %v3142 = vadd.f32 0.0, %v3141
        %v3143 = vpop.f32.mrf.mxu0
        %v3144 = vpop.f32.mrf.mxu0
        %v3145 = vadd.f32 0.0, %v3144
        %v3146 = vpop.f32.mrf.mxu0
        %3147 = vdwg.mxu0
        %3148 = vmax.xlane.f32.xlu0 %v3118
        %v3149 = vpop.xlane.xlu0 %3148
        %3150 = vmax.xlane.f32.xlu0 %v3121
        %v3151 = vpop.xlane.xlu0 %3150
        %3152 = vmax.xlane.f32.xlu0 %v3126
        %v3153 = vpop.xlane.xlu0 %3152
        %3154 = vmax.xlane.f32.xlu0 %v3129
        %v3155 = vpop.xlane.xlu0 %3154
        %3156 = vmax.xlane.f32.xlu0 %v3134
        %v3157 = vpop.xlane.xlu0 %3156
        %3158 = vmax.xlane.f32.xlu0 %v3137
        %v3159 = vpop.xlane.xlu0 %3158
        %3160 = vmax.xlane.f32.xlu0 %v3142
        %v3161 = vpop.xlane.xlu0 %3160
        %3162 = vmax.xlane.f32.xlu0 %v3145
        %v3163 = vpop.xlane.xlu0 %3162
        %v3164 = vsub.f32 %v3118, %v3149
        %v3165 = vsub.f32 %v3121, %v3151
        %v3166 = vsub.f32 %v3126, %v3153
        %v3167 = vsub.f32 %v3129, %v3155
        %v3168 = vsub.f32 %v3134, %v3157
        %v3169 = vsub.f32 %v3137, %v3159
        %v3170 = vsub.f32 %v3142, %v3161
        %v3171 = vsub.f32 %v3145, %v3163
        %v3172 = vmul.f32 %v3164, 1.442695
        %v3173 = vpow.pop %v3172
        %v3174 = vmul.f32 %v3165, 1.442695
        %v3175 = vpow.pop %v3174
        %v3176 = vmul.f32 %v3166, 1.442695
        %v3177 = vpow.pop %v3176
        %v3178 = vmul.f32 %v3167, 1.442695
        %v3179 = vpow.pop %v3178
        %v3180 = vmul.f32 %v3168, 1.442695
        %v3181 = vpow.pop %v3180
        %v3182 = vmul.f32 %v3169, 1.442695
        %v3183 = vpow.pop %v3182
        %v3184 = vmul.f32 %v3170, 1.442695
        %v3185 = vpow.pop %v3184
        %v3186 = vmul.f32 %v3171, 1.442695
        %v3187 = vpow.pop %v3186
        %3188 = vadd.xlane.f32.xlu0 %v3173
        %v3189 = vpop.xlane.xlu0 %3188
        %3190 = vadd.xlane.f32.xlu0 %v3175
        %v3191 = vpop.xlane.xlu0 %3190
        %3192 = vadd.xlane.f32.xlu0 %v3177
        %v3193 = vpop.xlane.xlu0 %3192
        %3194 = vadd.xlane.f32.xlu0 %v3179
        %v3195 = vpop.xlane.xlu0 %3194
        %3196 = vadd.xlane.f32.xlu0 %v3181
        %v3197 = vpop.xlane.xlu0 %3196
        %3198 = vadd.xlane.f32.xlu0 %v3183
        %v3199 = vpop.xlane.xlu0 %3198
        %3200 = vadd.xlane.f32.xlu0 %v3185
        %v3201 = vpop.xlane.xlu0 %3200
        %3202 = vadd.xlane.f32.xlu0 %v3187
        %v3203 = vpop.xlane.xlu0 %3202
        %v3204 = vpack.c.bf16 %v3175, %v3173
        %v3205 = vpack.c.bf16 %v3179, %v3177
        %v3206 = vpack.c.bf16 %v3183, %v3181
        %v3207 = vpack.c.bf16 %v3187, %v3185
        %3216 = vmatprep.subr.bf16.mxu0 0
        %3217 = vmatpush1.bf16.msra.mxu0 %v3046
        %3218 = vmatprep.subr.bf16.mxu0 0
        %3219 = vmatpush1.bf16.msra.mxu0 %v3044
        %3220 = vmatprep.subr.bf16.mxu0 0
        %3221 = vmatpush1.bf16.msra.mxu0 %v3042
        %3222 = vmatprep.subr.bf16.mxu0 0
        %3223 = vmatpush1.bf16.msra.mxu0 %v3040
        %3224 = vmatprep.subr.bf16.mxu0 0
        %3225 = vmatpush1.bf16.msra.mxu0 %v3038
        %3226 = vmatprep.subr.bf16.mxu0 0
        %3227 = vmatpush1.bf16.msra.mxu0 %v3036
        %3228 = vmatprep.subr.bf16.mxu0 0
        %3229 = vmatpush1.bf16.msra.mxu0 %v3034
        %3230 = vmatprep.subr.bf16.mxu0 0
        %3231 = vmatpush1.bf16.msra.mxu0 %v3032
        %3232 = vmatprep.subr.bf16.mxu0 0
        %3233 = vmatpush2.bf16.msra.mxu0 0
        %3234 = vmatprep.subr.bf16.mxu0 0
        %3235 = vmatpush2.bf16.msra.mxu0 0
        %3236 = vmatprep.subr.bf16.mxu0 0
        %3237 = vmatpush2.bf16.msra.mxu0 0
        %3238 = vmatprep.subr.bf16.mxu0 0
        %3239 = vmatpush2.bf16.msra.mxu0 0
        %3240 = vmatprep.subr.bf16.mxu0 0
        %3241 = vmatpush2.bf16.msra.mxu0 0
        %3242 = vmatprep.subr.bf16.mxu0 0
        %3243 = vmatpush2.bf16.msra.mxu0 0
        %3244 = vmatprep.subr.bf16.mxu0 0
        %3245 = vmatpush2.bf16.msra.mxu0 0
        %3246 = vmatprep.subr.bf16.mxu0 0
        %3247 = vmatpush2.bf16.msra.mxu0 0
        %3248 = vmatprep.mubr.bf16.mxu0 0
        %3249 = vmatmul.mubr.bf16.gmra.mxu0 %v3204
        %v3250 = vpop.f32.mrf.mxu0
        %v3251 = vadd.f32 0.0, %v3250
        %v3252 = vpop.f32.mrf.mxu0
        %v3253 = vpop.f32.mrf.mxu0
        %v3254 = vadd.f32 0.0, %v3253
        %v3255 = vpop.f32.mrf.mxu0
        %3256 = vmatprep.mubr.bf16.mxu0 0
        %3257 = vmatmul.mubr.bf16.gmra.mxu0 %v3205
        %v3258 = vpop.f32.mrf.mxu0
        %v3259 = vadd.f32 0.0, %v3258
        %v3260 = vpop.f32.mrf.mxu0
        %v3261 = vpop.f32.mrf.mxu0
        %v3262 = vadd.f32 0.0, %v3261
        %v3263 = vpop.f32.mrf.mxu0
        %3264 = vmatprep.mubr.bf16.mxu0 0
        %3265 = vmatmul.mubr.bf16.gmra.mxu0 %v3206
        %v3266 = vpop.f32.mrf.mxu0
        %v3267 = vadd.f32 0.0, %v3266
        %v3268 = vpop.f32.mrf.mxu0
        %v3269 = vpop.f32.mrf.mxu0
        %v3270 = vadd.f32 0.0, %v3269
        %v3271 = vpop.f32.mrf.mxu0
        %3272 = vmatprep.mubr.bf16.mxu0 0
        %3273 = vmatmul.mubr.bf16.gmra.mxu0 %v3207
        %v3274 = vpop.f32.mrf.mxu0
        %v3275 = vadd.f32 0.0, %v3274
        %v3276 = vpop.f32.mrf.mxu0
        %v3277 = vpop.f32.mrf.mxu0
        %v3278 = vadd.f32 0.0, %v3277
        %v3279 = vpop.f32.mrf.mxu0
        %3280 = vdwg.mxu0
        %v3281 = vrcp.pop %v3189
        %v3282 = vrcp.pop %v3191
        %v3283 = vrcp.pop %v3193
        %v3284 = vrcp.pop %v3195
        %v3285 = vrcp.pop %v3197
        %v3286 = vrcp.pop %v3199
        %v3287 = vrcp.pop %v3201
        %v3288 = vrcp.pop %v3203
        %v3289 = vmul.f32 %v3251, %v3281
        %v3290 = vmul.f32 %v3254, %v3282
        %v3291 = vmul.f32 %v3259, %v3283
        %v3292 = vmul.f32 %v3262, %v3284
        %v3293 = vmul.f32 %v3267, %v3285
        %v3294 = vmul.f32 %v3270, %v3286
        %v3295 = vmul.f32 %v3275, %v3287
        %v3296 = vmul.f32 %v3278, %v3288
        %v3297 = vpack.c.bf16 %v3290, %v3289
        %v3298 = vpack.c.bf16 %v3292, %v3291
        %v3299 = vpack.c.bf16 %v3294, %v3293
        %v3300 = vpack.c.bf16 %v3296, %v3295
        %v3305 = vunpack.c.l.b16 %v3297
        %v3306 = vunpack.c.h.b16 %v3297
        %v3307 = vunpack.c.l.b16 %v3298
        %v3308 = vunpack.c.h.b16 %v3298
        %v3309 = vunpack.c.l.b16 %v3299
        %v3310 = vunpack.c.h.b16 %v3299
        %v3311 = vunpack.c.l.b16 %v3300
        %v3312 = vunpack.c.h.b16 %v3300
        %v3313 = vpack.c.b16 %v3305, %v3305
        %v3314 = vpack.c.b16 %v3306, %v3306
        %v3315 = vpack.c.b16 %v3307, %v3307
        %v3316 = vpack.c.b16 %v3308, %v3308
        %v3317 = vpack.c.b16 %v3309, %v3309
        %v3318 = vpack.c.b16 %v3310, %v3310
        %v3319 = vpack.c.b16 %v3311, %v3311
        %v3320 = vpack.c.b16 %v3312, %v3312
        %3321 = vrot.lane.b32.xlu0 %v3313, 64
        %v3322 = vpop.permute.xlu0 %3321
        %3323 = vrot.lane.b32.xlu0 %v3314, 64
        %v3324 = vpop.permute.xlu0 %3323
        %3325 = vrot.lane.b32.xlu0 %v3315, 64
        %v3326 = vpop.permute.xlu0 %3325
        %3327 = vrot.lane.b32.xlu0 %v3316, 64
        %v3328 = vpop.permute.xlu0 %3327
        %3329 = vrot.lane.b32.xlu0 %v3317, 64
        %v3330 = vpop.permute.xlu0 %3329
        %3331 = vrot.lane.b32.xlu0 %v3318, 64
        %v3332 = vpop.permute.xlu0 %3331
        %3333 = vrot.lane.b32.xlu0 %v3319, 64
        %v3334 = vpop.permute.xlu0 %3333
        %3335 = vrot.lane.b32.xlu0 %v3320, 64
        %v3336 = vpop.permute.xlu0 %3335
        %3345 = vst.msk [vmem:[#allocation3 + $0x8] sm:$0xf] %vm1736, %v3322
        %3346 = vst.msk [vmem:[#allocation3 + $0x18] sm:$0xf] %vm1736, %v3324
        %3347 = vst.msk [vmem:[#allocation3 + $0x28] sm:$0xf] %vm1736, %v3326
        %3348 = vst.msk [vmem:[#allocation3 + $0x38] sm:$0xf] %vm1736, %v3328
        %3349 = vst.msk [vmem:[#allocation3 + $0x48] sm:$0xf] %vm1736, %v3330
        %3350 = vst.msk [vmem:[#allocation3 + $0x58] sm:$0xf] %vm1736, %v3332
        %3351 = vst.msk [vmem:[#allocation3 + $0x68] sm:$0xf] %vm1736, %v3334
        %3352 = vst.msk [vmem:[#allocation3 + $0x78] sm:$0xf] %vm1736, %v3336
        %v3353 = vld [vmem:[%s937 + $0xc] sm:$0xf]
        %v3354 = vld [vmem:[%s937 + $0x1c] sm:$0xf]
        %v3355 = vld [vmem:[%s937 + $0x2c] sm:$0xf]
        %v3356 = vld [vmem:[%s937 + $0x3c] sm:$0xf]
        %v3357 = vld [vmem:[%s937 + $0x4c] sm:$0xf]
        %v3358 = vld [vmem:[%s937 + $0x5c] sm:$0xf]
        %v3359 = vld [vmem:[%s937 + $0x6c] sm:$0xf]
        %v3360 = vld [vmem:[%s937 + $0x7c] sm:$0xf]
        %v3361 = vmul.bf16 %v3353, 1040203264
        %v3362 = vmul.bf16 %v3354, 1040203264
        %v3363 = vmul.bf16 %v3355, 1040203264
        %v3364 = vmul.bf16 %v3356, 1040203264
        %v3365 = vmul.bf16 %v3357, 1040203264
        %v3366 = vmul.bf16 %v3358, 1040203264
        %v3367 = vmul.bf16 %v3359, 1040203264
        %v3368 = vmul.bf16 %v3360, 1040203264
        %v3369 = vld [vmem:[#allocation2 + $0xc] sm:$0xf]
        %v3370 = vld [vmem:[#allocation2 + $0x1c] sm:$0xf]
        %v3371 = vld [vmem:[#allocation2 + $0x2c] sm:$0xf]
        %v3372 = vld [vmem:[#allocation2 + $0x3c] sm:$0xf]
        %v3373 = vld [vmem:[#allocation2 + $0x4c] sm:$0xf]
        %v3374 = vld [vmem:[#allocation2 + $0x5c] sm:$0xf]
        %v3375 = vld [vmem:[#allocation2 + $0x6c] sm:$0xf]
        %v3376 = vld [vmem:[#allocation2 + $0x7c] sm:$0xf]
        %v3377 = vld [vmem:[#allocation2 + $0x8c] sm:$0xf]
        %v3378 = vld [vmem:[#allocation2 + $0x9c] sm:$0xf]
        %v3379 = vld [vmem:[#allocation2 + $0xac] sm:$0xf]
        %v3380 = vld [vmem:[#allocation2 + $0xbc] sm:$0xf]
        %v3381 = vld [vmem:[#allocation2 + $0xcc] sm:$0xf]
        %v3382 = vld [vmem:[#allocation2 + $0xdc] sm:$0xf]
        %v3383 = vld [vmem:[#allocation2 + $0xec] sm:$0xf]
        %v3384 = vld [vmem:[#allocation2 + $0xfc] sm:$0xf]
        %v3393 = vunpack.c.l.b16 %v3361
        %v3394 = vunpack.c.l.b16 %v3362
        %v3395 = vunpack.c.l.b16 %v3363
        %v3396 = vunpack.c.l.b16 %v3364
        %v3397 = vunpack.c.l.b16 %v3365
        %v3398 = vunpack.c.l.b16 %v3366
        %v3399 = vunpack.c.l.b16 %v3367
        %v3400 = vunpack.c.l.b16 %v3368
        %v3401 = vpack.c.b16 %v3394, %v3393
        %v3402 = vpack.c.b16 %v3396, %v3395
        %v3403 = vpack.c.b16 %v3398, %v3397
        %v3404 = vpack.c.b16 %v3400, %v3399
        %v3421 = vunpack.c.l.b16 %v3369
        %v3422 = vunpack.c.l.b16 %v3370
        %v3423 = vunpack.c.l.b16 %v3371
        %v3424 = vunpack.c.l.b16 %v3372
        %v3425 = vunpack.c.l.b16 %v3373
        %v3426 = vunpack.c.l.b16 %v3374
        %v3427 = vunpack.c.l.b16 %v3375
        %v3428 = vunpack.c.l.b16 %v3376
        %v3429 = vunpack.c.l.b16 %v3377
        %v3430 = vunpack.c.l.b16 %v3378
        %v3431 = vunpack.c.l.b16 %v3379
        %v3432 = vunpack.c.l.b16 %v3380
        %v3433 = vunpack.c.l.b16 %v3381
        %v3434 = vunpack.c.l.b16 %v3382
        %v3435 = vunpack.c.l.b16 %v3383
        %v3436 = vunpack.c.l.b16 %v3384
        %v3437 = vpack.c.b16 %v3422, %v3421
        %v3438 = vpack.c.b16 %v3424, %v3423
        %v3439 = vpack.c.b16 %v3426, %v3425
        %v3440 = vpack.c.b16 %v3428, %v3427
        %v3441 = vpack.c.b16 %v3430, %v3429
        %v3442 = vpack.c.b16 %v3432, %v3431
        %v3443 = vpack.c.b16 %v3434, %v3433
        %v3444 = vpack.c.b16 %v3436, %v3435
        %v3446 = vsel %vm1030, %v3401, 0
        %v3449 = vsel %vm1030, %v3402, 0
        %v3452 = vsel %vm1030, %v3403, 0
        %v3455 = vsel %vm1030, %v3404, 0
        %v3458 = vsel %vm1030, %v3437, 0
        %v3461 = vsel %vm1030, %v3438, 0
        %v3464 = vsel %vm1030, %v3439, 0
        %v3467 = vsel %vm1030, %v3440, 0
        %v3470 = vsel %vm1030, %v3441, 0
        %v3473 = vsel %vm1030, %v3442, 0
        %v3476 = vsel %vm1030, %v3443, 0
        %v3479 = vsel %vm1030, %v3444, 0
        %3481 = vmatprep.subr.bf16.mxu0 0
        %3482 = vmatpush1.bf16.xpose.msra.mxu0 %v3479
        %3483 = vmatprep.subr.bf16.mxu0 0
        %3484 = vmatpush1.bf16.xpose.msra.mxu0 %v3476
        %3485 = vmatprep.subr.bf16.mxu0 0
        %3486 = vmatpush1.bf16.xpose.msra.mxu0 %v3473
        %3487 = vmatprep.subr.bf16.mxu0 0
        %3488 = vmatpush1.bf16.xpose.msra.mxu0 %v3470
        %3489 = vmatprep.subr.bf16.mxu0 0
        %3490 = vmatpush1.bf16.xpose.msra.mxu0 %v3467
        %3491 = vmatprep.subr.bf16.mxu0 0
        %3492 = vmatpush1.bf16.xpose.msra.mxu0 %v3464
        %3493 = vmatprep.subr.bf16.mxu0 0
        %3494 = vmatpush1.bf16.xpose.msra.mxu0 %v3461
        %3495 = vmatprep.subr.bf16.mxu0 0
        %3496 = vmatpush1.bf16.xpose.msra.mxu0 %v3458
        %3497 = vmatprep.subr.bf16.mxu0 0
        %3498 = vmatpush2.bf16.xpose.msra.mxu0 0
        %3499 = vmatprep.subr.bf16.mxu0 0
        %3500 = vmatpush2.bf16.xpose.msra.mxu0 0
        %3501 = vmatprep.subr.bf16.mxu0 0
        %3502 = vmatpush2.bf16.xpose.msra.mxu0 0
        %3503 = vmatprep.subr.bf16.mxu0 0
        %3504 = vmatpush2.bf16.xpose.msra.mxu0 0
        %3505 = vmatprep.subr.bf16.mxu0 0
        %3506 = vmatpush2.bf16.xpose.msra.mxu0 0
        %3507 = vmatprep.subr.bf16.mxu0 0
        %3508 = vmatpush2.bf16.xpose.msra.mxu0 0
        %3509 = vmatprep.subr.bf16.mxu0 0
        %3510 = vmatpush2.bf16.xpose.msra.mxu0 0
        %3511 = vmatprep.subr.bf16.mxu0 0
        %3512 = vmatpush2.bf16.xpose.msra.mxu0 0
        %3513 = vmatprep.mubr.bf16.mxu0 0
        %3514 = vmatmul.mubr.bf16.gmra.mxu0 %v3446
        %v3515 = vpop.f32.mrf.mxu0
        %v3516 = vadd.f32 0.0, %v3515
        %v3517 = vpop.f32.mrf.mxu0
        %v3518 = vpop.f32.mrf.mxu0
        %v3519 = vadd.f32 0.0, %v3518
        %v3520 = vpop.f32.mrf.mxu0
        %3521 = vmatprep.mubr.bf16.mxu0 0
        %3522 = vmatmul.mubr.bf16.gmra.mxu0 %v3449
        %v3523 = vpop.f32.mrf.mxu0
        %v3524 = vadd.f32 0.0, %v3523
        %v3525 = vpop.f32.mrf.mxu0
        %v3526 = vpop.f32.mrf.mxu0
        %v3527 = vadd.f32 0.0, %v3526
        %v3528 = vpop.f32.mrf.mxu0
        %3529 = vmatprep.mubr.bf16.mxu0 0
        %3530 = vmatmul.mubr.bf16.gmra.mxu0 %v3452
        %v3531 = vpop.f32.mrf.mxu0
        %v3532 = vadd.f32 0.0, %v3531
        %v3533 = vpop.f32.mrf.mxu0
        %v3534 = vpop.f32.mrf.mxu0
        %v3535 = vadd.f32 0.0, %v3534
        %v3536 = vpop.f32.mrf.mxu0
        %3537 = vmatprep.mubr.bf16.mxu0 0
        %3538 = vmatmul.mubr.bf16.gmra.mxu0 %v3455
        %v3539 = vpop.f32.mrf.mxu0
        %v3540 = vadd.f32 0.0, %v3539
        %v3541 = vpop.f32.mrf.mxu0
        %v3542 = vpop.f32.mrf.mxu0
        %v3543 = vadd.f32 0.0, %v3542
        %v3544 = vpop.f32.mrf.mxu0
        %3545 = vdwg.mxu0
        %3546 = vmax.xlane.f32.xlu0 %v3516
        %v3547 = vpop.xlane.xlu0 %3546
        %3548 = vmax.xlane.f32.xlu0 %v3519
        %v3549 = vpop.xlane.xlu0 %3548
        %3550 = vmax.xlane.f32.xlu0 %v3524
        %v3551 = vpop.xlane.xlu0 %3550
        %3552 = vmax.xlane.f32.xlu0 %v3527
        %v3553 = vpop.xlane.xlu0 %3552
        %3554 = vmax.xlane.f32.xlu0 %v3532
        %v3555 = vpop.xlane.xlu0 %3554
        %3556 = vmax.xlane.f32.xlu0 %v3535
        %v3557 = vpop.xlane.xlu0 %3556
        %3558 = vmax.xlane.f32.xlu0 %v3540
        %v3559 = vpop.xlane.xlu0 %3558
        %3560 = vmax.xlane.f32.xlu0 %v3543
        %v3561 = vpop.xlane.xlu0 %3560
        %v3562 = vsub.f32 %v3516, %v3547
        %v3563 = vsub.f32 %v3519, %v3549
        %v3564 = vsub.f32 %v3524, %v3551
        %v3565 = vsub.f32 %v3527, %v3553
        %v3566 = vsub.f32 %v3532, %v3555
        %v3567 = vsub.f32 %v3535, %v3557
        %v3568 = vsub.f32 %v3540, %v3559
        %v3569 = vsub.f32 %v3543, %v3561
        %v3570 = vmul.f32 %v3562, 1.442695
        %v3571 = vpow.pop %v3570
        %v3572 = vmul.f32 %v3563, 1.442695
        %v3573 = vpow.pop %v3572
        %v3574 = vmul.f32 %v3564, 1.442695
        %v3575 = vpow.pop %v3574
        %v3576 = vmul.f32 %v3565, 1.442695
        %v3577 = vpow.pop %v3576
        %v3578 = vmul.f32 %v3566, 1.442695
        %v3579 = vpow.pop %v3578
        %v3580 = vmul.f32 %v3567, 1.442695
        %v3581 = vpow.pop %v3580
        %v3582 = vmul.f32 %v3568, 1.442695
        %v3583 = vpow.pop %v3582
        %v3584 = vmul.f32 %v3569, 1.442695
        %v3585 = vpow.pop %v3584
        %3586 = vadd.xlane.f32.xlu0 %v3571
        %v3587 = vpop.xlane.xlu0 %3586
        %3588 = vadd.xlane.f32.xlu0 %v3573
        %v3589 = vpop.xlane.xlu0 %3588
        %3590 = vadd.xlane.f32.xlu0 %v3575
        %v3591 = vpop.xlane.xlu0 %3590
        %3592 = vadd.xlane.f32.xlu0 %v3577
        %v3593 = vpop.xlane.xlu0 %3592
        %3594 = vadd.xlane.f32.xlu0 %v3579
        %v3595 = vpop.xlane.xlu0 %3594
        %3596 = vadd.xlane.f32.xlu0 %v3581
        %v3597 = vpop.xlane.xlu0 %3596
        %3598 = vadd.xlane.f32.xlu0 %v3583
        %v3599 = vpop.xlane.xlu0 %3598
        %3600 = vadd.xlane.f32.xlu0 %v3585
        %v3601 = vpop.xlane.xlu0 %3600
        %v3602 = vpack.c.bf16 %v3573, %v3571
        %v3603 = vpack.c.bf16 %v3577, %v3575
        %v3604 = vpack.c.bf16 %v3581, %v3579
        %v3605 = vpack.c.bf16 %v3585, %v3583
        %3614 = vmatprep.subr.bf16.mxu0 0
        %3615 = vmatpush1.bf16.msra.mxu0 %v3444
        %3616 = vmatprep.subr.bf16.mxu0 0
        %3617 = vmatpush1.bf16.msra.mxu0 %v3443
        %3618 = vmatprep.subr.bf16.mxu0 0
        %3619 = vmatpush1.bf16.msra.mxu0 %v3442
        %3620 = vmatprep.subr.bf16.mxu0 0
        %3621 = vmatpush1.bf16.msra.mxu0 %v3441
        %3622 = vmatprep.subr.bf16.mxu0 0
        %3623 = vmatpush1.bf16.msra.mxu0 %v3440
        %3624 = vmatprep.subr.bf16.mxu0 0
        %3625 = vmatpush1.bf16.msra.mxu0 %v3439
        %3626 = vmatprep.subr.bf16.mxu0 0
        %3627 = vmatpush1.bf16.msra.mxu0 %v3438
        %3628 = vmatprep.subr.bf16.mxu0 0
        %3629 = vmatpush1.bf16.msra.mxu0 %v3437
        %3630 = vmatprep.subr.bf16.mxu0 0
        %3631 = vmatpush2.bf16.msra.mxu0 0
        %3632 = vmatprep.subr.bf16.mxu0 0
        %3633 = vmatpush2.bf16.msra.mxu0 0
        %3634 = vmatprep.subr.bf16.mxu0 0
        %3635 = vmatpush2.bf16.msra.mxu0 0
        %3636 = vmatprep.subr.bf16.mxu0 0
        %3637 = vmatpush2.bf16.msra.mxu0 0
        %3638 = vmatprep.subr.bf16.mxu0 0
        %3639 = vmatpush2.bf16.msra.mxu0 0
        %3640 = vmatprep.subr.bf16.mxu0 0
        %3641 = vmatpush2.bf16.msra.mxu0 0
        %3642 = vmatprep.subr.bf16.mxu0 0
        %3643 = vmatpush2.bf16.msra.mxu0 0
        %3644 = vmatprep.subr.bf16.mxu0 0
        %3645 = vmatpush2.bf16.msra.mxu0 0
        %3646 = vmatprep.mubr.bf16.mxu0 0
        %3647 = vmatmul.mubr.bf16.gmra.mxu0 %v3602
        %v3648 = vpop.f32.mrf.mxu0
        %v3649 = vadd.f32 0.0, %v3648
        %v3650 = vpop.f32.mrf.mxu0
        %v3651 = vpop.f32.mrf.mxu0
        %v3652 = vadd.f32 0.0, %v3651
        %v3653 = vpop.f32.mrf.mxu0
        %3654 = vmatprep.mubr.bf16.mxu0 0
        %3655 = vmatmul.mubr.bf16.gmra.mxu0 %v3603
        %v3656 = vpop.f32.mrf.mxu0
        %v3657 = vadd.f32 0.0, %v3656
        %v3658 = vpop.f32.mrf.mxu0
        %v3659 = vpop.f32.mrf.mxu0
        %v3660 = vadd.f32 0.0, %v3659
        %v3661 = vpop.f32.mrf.mxu0
        %3662 = vmatprep.mubr.bf16.mxu0 0
        %3663 = vmatmul.mubr.bf16.gmra.mxu0 %v3604
        %v3664 = vpop.f32.mrf.mxu0
        %v3665 = vadd.f32 0.0, %v3664
        %v3666 = vpop.f32.mrf.mxu0
        %v3667 = vpop.f32.mrf.mxu0
        %v3668 = vadd.f32 0.0, %v3667
        %v3669 = vpop.f32.mrf.mxu0
        %3670 = vmatprep.mubr.bf16.mxu0 0
        %3671 = vmatmul.mubr.bf16.gmra.mxu0 %v3605
        %v3672 = vpop.f32.mrf.mxu0
        %v3673 = vadd.f32 0.0, %v3672
        %v3674 = vpop.f32.mrf.mxu0
        %v3675 = vpop.f32.mrf.mxu0
        %v3676 = vadd.f32 0.0, %v3675
        %v3677 = vpop.f32.mrf.mxu0
        %3678 = vdwg.mxu0
        %v3679 = vrcp.pop %v3587
        %v3680 = vrcp.pop %v3589
        %v3681 = vrcp.pop %v3591
        %v3682 = vrcp.pop %v3593
        %v3683 = vrcp.pop %v3595
        %v3684 = vrcp.pop %v3597
        %v3685 = vrcp.pop %v3599
        %v3686 = vrcp.pop %v3601
        %v3687 = vmul.f32 %v3649, %v3679
        %v3688 = vmul.f32 %v3652, %v3680
        %v3689 = vmul.f32 %v3657, %v3681
        %v3690 = vmul.f32 %v3660, %v3682
        %v3691 = vmul.f32 %v3665, %v3683
        %v3692 = vmul.f32 %v3668, %v3684
        %v3693 = vmul.f32 %v3673, %v3685
        %v3694 = vmul.f32 %v3676, %v3686
        %v3695 = vpack.c.bf16 %v3688, %v3687
        %v3696 = vpack.c.bf16 %v3690, %v3689
        %v3697 = vpack.c.bf16 %v3692, %v3691
        %v3698 = vpack.c.bf16 %v3694, %v3693
        %v3703 = vunpack.c.l.b16 %v3695
        %v3704 = vunpack.c.h.b16 %v3695
        %v3705 = vunpack.c.l.b16 %v3696
        %v3706 = vunpack.c.h.b16 %v3696
        %v3707 = vunpack.c.l.b16 %v3697
        %v3708 = vunpack.c.h.b16 %v3697
        %v3709 = vunpack.c.l.b16 %v3698
        %v3710 = vunpack.c.h.b16 %v3698
        %v3711 = vpack.c.b16 %v3703, %v3703
        %v3712 = vpack.c.b16 %v3704, %v3704
        %v3713 = vpack.c.b16 %v3705, %v3705
        %v3714 = vpack.c.b16 %v3706, %v3706
        %v3715 = vpack.c.b16 %v3707, %v3707
        %v3716 = vpack.c.b16 %v3708, %v3708
        %v3717 = vpack.c.b16 %v3709, %v3709
        %v3718 = vpack.c.b16 %v3710, %v3710
        %3727 = vst.msk [vmem:[#allocation3 + $0xc] sm:$0xf] %vm1313, %v3711
        %3728 = vst.msk [vmem:[#allocation3 + $0x1c] sm:$0xf] %vm1313, %v3712
        %3729 = vst.msk [vmem:[#allocation3 + $0x2c] sm:$0xf] %vm1313, %v3713
        %3730 = vst.msk [vmem:[#allocation3 + $0x3c] sm:$0xf] %vm1313, %v3714
        %3731 = vst.msk [vmem:[#allocation3 + $0x4c] sm:$0xf] %vm1313, %v3715
        %3732 = vst.msk [vmem:[#allocation3 + $0x5c] sm:$0xf] %vm1313, %v3716
        %3733 = vst.msk [vmem:[#allocation3 + $0x6c] sm:$0xf] %vm1313, %v3717
        %3734 = vst.msk [vmem:[#allocation3 + $0x7c] sm:$0xf] %vm1313, %v3718
        %v3735 = vld [vmem:[%s937 + $0xc] sm:$0xf]
        %v3736 = vld [vmem:[%s937 + $0x1c] sm:$0xf]
        %v3737 = vld [vmem:[%s937 + $0x2c] sm:$0xf]
        %v3738 = vld [vmem:[%s937 + $0x3c] sm:$0xf]
        %v3739 = vld [vmem:[%s937 + $0x4c] sm:$0xf]
        %v3740 = vld [vmem:[%s937 + $0x5c] sm:$0xf]
        %v3741 = vld [vmem:[%s937 + $0x6c] sm:$0xf]
        %v3742 = vld [vmem:[%s937 + $0x7c] sm:$0xf]
        %v3743 = vmul.bf16 %v3735, 1040203264
        %v3744 = vmul.bf16 %v3736, 1040203264
        %v3745 = vmul.bf16 %v3737, 1040203264
        %v3746 = vmul.bf16 %v3738, 1040203264
        %v3747 = vmul.bf16 %v3739, 1040203264
        %v3748 = vmul.bf16 %v3740, 1040203264
        %v3749 = vmul.bf16 %v3741, 1040203264
        %v3750 = vmul.bf16 %v3742, 1040203264
        %v3751 = vld [vmem:[#allocation2 + $0xc] sm:$0xf]
        %v3752 = vld [vmem:[#allocation2 + $0x1c] sm:$0xf]
        %v3753 = vld [vmem:[#allocation2 + $0x2c] sm:$0xf]
        %v3754 = vld [vmem:[#allocation2 + $0x3c] sm:$0xf]
        %v3755 = vld [vmem:[#allocation2 + $0x4c] sm:$0xf]
        %v3756 = vld [vmem:[#allocation2 + $0x5c] sm:$0xf]
        %v3757 = vld [vmem:[#allocation2 + $0x6c] sm:$0xf]
        %v3758 = vld [vmem:[#allocation2 + $0x7c] sm:$0xf]
        %v3759 = vld [vmem:[#allocation2 + $0x8c] sm:$0xf]
        %v3760 = vld [vmem:[#allocation2 + $0x9c] sm:$0xf]
        %v3761 = vld [vmem:[#allocation2 + $0xac] sm:$0xf]
        %v3762 = vld [vmem:[#allocation2 + $0xbc] sm:$0xf]
        %v3763 = vld [vmem:[#allocation2 + $0xcc] sm:$0xf]
        %v3764 = vld [vmem:[#allocation2 + $0xdc] sm:$0xf]
        %v3765 = vld [vmem:[#allocation2 + $0xec] sm:$0xf]
        %v3766 = vld [vmem:[#allocation2 + $0xfc] sm:$0xf]
        %v3775 = vunpack.c.l.b16 %v3743
        %v3776 = vunpack.c.l.b16 %v3744
        %v3777 = vunpack.c.l.b16 %v3745
        %v3778 = vunpack.c.l.b16 %v3746
        %v3779 = vunpack.c.l.b16 %v3747
        %v3780 = vunpack.c.l.b16 %v3748
        %v3781 = vunpack.c.l.b16 %v3749
        %v3782 = vunpack.c.l.b16 %v3750
        %v3783 = vpack.c.b16 %v3776, %v3775
        %v3784 = vpack.c.b16 %v3778, %v3777
        %v3785 = vpack.c.b16 %v3780, %v3779
        %v3786 = vpack.c.b16 %v3782, %v3781
        %3787 = vrot.lane.b32.xlu0 %v3783, 64
        %v3788 = vpop.permute.xlu0 %3787
        %3789 = vrot.lane.b32.xlu0 %v3784, 64
        %v3790 = vpop.permute.xlu0 %3789
        %3791 = vrot.lane.b32.xlu0 %v3785, 64
        %v3792 = vpop.permute.xlu0 %3791
        %3793 = vrot.lane.b32.xlu0 %v3786, 64
        %v3794 = vpop.permute.xlu0 %3793
        %v3811 = vunpack.c.l.b16 %v3751
        %v3812 = vunpack.c.l.b16 %v3752
        %v3813 = vunpack.c.l.b16 %v3753
        %v3814 = vunpack.c.l.b16 %v3754
        %v3815 = vunpack.c.l.b16 %v3755
        %v3816 = vunpack.c.l.b16 %v3756
        %v3817 = vunpack.c.l.b16 %v3757
        %v3818 = vunpack.c.l.b16 %v3758
        %v3819 = vunpack.c.l.b16 %v3759
        %v3820 = vunpack.c.l.b16 %v3760
        %v3821 = vunpack.c.l.b16 %v3761
        %v3822 = vunpack.c.l.b16 %v3762
        %v3823 = vunpack.c.l.b16 %v3763
        %v3824 = vunpack.c.l.b16 %v3764
        %v3825 = vunpack.c.l.b16 %v3765
        %v3826 = vunpack.c.l.b16 %v3766
        %v3827 = vpack.c.b16 %v3812, %v3811
        %v3828 = vpack.c.b16 %v3814, %v3813
        %v3829 = vpack.c.b16 %v3816, %v3815
        %v3830 = vpack.c.b16 %v3818, %v3817
        %v3831 = vpack.c.b16 %v3820, %v3819
        %v3832 = vpack.c.b16 %v3822, %v3821
        %v3833 = vpack.c.b16 %v3824, %v3823
        %v3834 = vpack.c.b16 %v3826, %v3825
        %3835 = vrot.lane.b32.xlu0 %v3827, 64
        %v3836 = vpop.permute.xlu0 %3835
        %3837 = vrot.lane.b32.xlu0 %v3828, 64
        %v3838 = vpop.permute.xlu0 %3837
        %3839 = vrot.lane.b32.xlu0 %v3829, 64
        %v3840 = vpop.permute.xlu0 %3839
        %3841 = vrot.lane.b32.xlu0 %v3830, 64
        %v3842 = vpop.permute.xlu0 %3841
        %3843 = vrot.lane.b32.xlu0 %v3831, 64
        %v3844 = vpop.permute.xlu0 %3843
        %3845 = vrot.lane.b32.xlu0 %v3832, 64
        %v3846 = vpop.permute.xlu0 %3845
        %3847 = vrot.lane.b32.xlu0 %v3833, 64
        %v3848 = vpop.permute.xlu0 %3847
        %3849 = vrot.lane.b32.xlu0 %v3834, 64
        %v3850 = vpop.permute.xlu0 %3849
        %v3852 = vsel %vm1030, %v3788, 0
        %v3855 = vsel %vm1030, %v3790, 0
        %v3858 = vsel %vm1030, %v3792, 0
        %v3861 = vsel %vm1030, %v3794, 0
        %v3864 = vsel %vm1030, %v3836, 0
        %v3867 = vsel %vm1030, %v3838, 0
        %v3870 = vsel %vm1030, %v3840, 0
        %v3873 = vsel %vm1030, %v3842, 0
        %v3876 = vsel %vm1030, %v3844, 0
        %v3879 = vsel %vm1030, %v3846, 0
        %v3882 = vsel %vm1030, %v3848, 0
        %v3885 = vsel %vm1030, %v3850, 0
        %3887 = vmatprep.subr.bf16.mxu0 0
        %3888 = vmatpush1.bf16.xpose.msra.mxu0 %v3885
        %3889 = vmatprep.subr.bf16.mxu0 0
        %3890 = vmatpush1.bf16.xpose.msra.mxu0 %v3882
        %3891 = vmatprep.subr.bf16.mxu0 0
        %3892 = vmatpush1.bf16.xpose.msra.mxu0 %v3879
        %3893 = vmatprep.subr.bf16.mxu0 0
        %3894 = vmatpush1.bf16.xpose.msra.mxu0 %v3876
        %3895 = vmatprep.subr.bf16.mxu0 0
        %3896 = vmatpush1.bf16.xpose.msra.mxu0 %v3873
        %3897 = vmatprep.subr.bf16.mxu0 0
        %3898 = vmatpush1.bf16.xpose.msra.mxu0 %v3870
        %3899 = vmatprep.subr.bf16.mxu0 0
        %3900 = vmatpush1.bf16.xpose.msra.mxu0 %v3867
        %3901 = vmatprep.subr.bf16.mxu0 0
        %3902 = vmatpush1.bf16.xpose.msra.mxu0 %v3864
        %3903 = vmatprep.subr.bf16.mxu0 0
        %3904 = vmatpush2.bf16.xpose.msra.mxu0 0
        %3905 = vmatprep.subr.bf16.mxu0 0
        %3906 = vmatpush2.bf16.xpose.msra.mxu0 0
        %3907 = vmatprep.subr.bf16.mxu0 0
        %3908 = vmatpush2.bf16.xpose.msra.mxu0 0
        %3909 = vmatprep.subr.bf16.mxu0 0
        %3910 = vmatpush2.bf16.xpose.msra.mxu0 0
        %3911 = vmatprep.subr.bf16.mxu0 0
        %3912 = vmatpush2.bf16.xpose.msra.mxu0 0
        %3913 = vmatprep.subr.bf16.mxu0 0
        %3914 = vmatpush2.bf16.xpose.msra.mxu0 0
        %3915 = vmatprep.subr.bf16.mxu0 0
        %3916 = vmatpush2.bf16.xpose.msra.mxu0 0
        %3917 = vmatprep.subr.bf16.mxu0 0
        %3918 = vmatpush2.bf16.xpose.msra.mxu0 0
        %3919 = vmatprep.mubr.bf16.mxu0 0
        %3920 = vmatmul.mubr.bf16.gmra.mxu0 %v3852
        %v3921 = vpop.f32.mrf.mxu0
        %v3922 = vadd.f32 0.0, %v3921
        %v3923 = vpop.f32.mrf.mxu0
        %v3924 = vpop.f32.mrf.mxu0
        %v3925 = vadd.f32 0.0, %v3924
        %v3926 = vpop.f32.mrf.mxu0
        %3927 = vmatprep.mubr.bf16.mxu0 0
        %3928 = vmatmul.mubr.bf16.gmra.mxu0 %v3855
        %v3929 = vpop.f32.mrf.mxu0
        %v3930 = vadd.f32 0.0, %v3929
        %v3931 = vpop.f32.mrf.mxu0
        %v3932 = vpop.f32.mrf.mxu0
        %v3933 = vadd.f32 0.0, %v3932
        %v3934 = vpop.f32.mrf.mxu0
        %3935 = vmatprep.mubr.bf16.mxu0 0
        %3936 = vmatmul.mubr.bf16.gmra.mxu0 %v3858
        %v3937 = vpop.f32.mrf.mxu0
        %v3938 = vadd.f32 0.0, %v3937
        %v3939 = vpop.f32.mrf.mxu0
        %v3940 = vpop.f32.mrf.mxu0
        %v3941 = vadd.f32 0.0, %v3940
        %v3942 = vpop.f32.mrf.mxu0
        %3943 = vmatprep.mubr.bf16.mxu0 0
        %3944 = vmatmul.mubr.bf16.gmra.mxu0 %v3861
        %v3945 = vpop.f32.mrf.mxu0
        %v3946 = vadd.f32 0.0, %v3945
        %v3947 = vpop.f32.mrf.mxu0
        %v3948 = vpop.f32.mrf.mxu0
        %v3949 = vadd.f32 0.0, %v3948
        %v3950 = vpop.f32.mrf.mxu0
        %3951 = vdwg.mxu0
        %3952 = vmax.xlane.f32.xlu0 %v3922
        %v3953 = vpop.xlane.xlu0 %3952
        %3954 = vmax.xlane.f32.xlu0 %v3925
        %v3955 = vpop.xlane.xlu0 %3954
        %3956 = vmax.xlane.f32.xlu0 %v3930
        %v3957 = vpop.xlane.xlu0 %3956
        %3958 = vmax.xlane.f32.xlu0 %v3933
        %v3959 = vpop.xlane.xlu0 %3958
        %3960 = vmax.xlane.f32.xlu0 %v3938
        %v3961 = vpop.xlane.xlu0 %3960
        %3962 = vmax.xlane.f32.xlu0 %v3941
        %v3963 = vpop.xlane.xlu0 %3962
        %3964 = vmax.xlane.f32.xlu0 %v3946
        %v3965 = vpop.xlane.xlu0 %3964
        %3966 = vmax.xlane.f32.xlu0 %v3949
        %v3967 = vpop.xlane.xlu0 %3966
        %v3968 = vsub.f32 %v3922, %v3953
        %v3969 = vsub.f32 %v3925, %v3955
        %v3970 = vsub.f32 %v3930, %v3957
        %v3971 = vsub.f32 %v3933, %v3959
        %v3972 = vsub.f32 %v3938, %v3961
        %v3973 = vsub.f32 %v3941, %v3963
        %v3974 = vsub.f32 %v3946, %v3965
        %v3975 = vsub.f32 %v3949, %v3967
        %v3976 = vmul.f32 %v3968, 1.442695
        %v3977 = vpow.pop %v3976
        %v3978 = vmul.f32 %v3969, 1.442695
        %v3979 = vpow.pop %v3978
        %v3980 = vmul.f32 %v3970, 1.442695
        %v3981 = vpow.pop %v3980
        %v3982 = vmul.f32 %v3971, 1.442695
        %v3983 = vpow.pop %v3982
        %v3984 = vmul.f32 %v3972, 1.442695
        %v3985 = vpow.pop %v3984
        %v3986 = vmul.f32 %v3973, 1.442695
        %v3987 = vpow.pop %v3986
        %v3988 = vmul.f32 %v3974, 1.442695
        %v3989 = vpow.pop %v3988
        %v3990 = vmul.f32 %v3975, 1.442695
        %v3991 = vpow.pop %v3990
        %3992 = vadd.xlane.f32.xlu0 %v3977
        %v3993 = vpop.xlane.xlu0 %3992
        %3994 = vadd.xlane.f32.xlu0 %v3979
        %v3995 = vpop.xlane.xlu0 %3994
        %3996 = vadd.xlane.f32.xlu0 %v3981
        %v3997 = vpop.xlane.xlu0 %3996
        %3998 = vadd.xlane.f32.xlu0 %v3983
        %v3999 = vpop.xlane.xlu0 %3998
        %4000 = vadd.xlane.f32.xlu0 %v3985
        %v4001 = vpop.xlane.xlu0 %4000
        %4002 = vadd.xlane.f32.xlu0 %v3987
        %v4003 = vpop.xlane.xlu0 %4002
        %4004 = vadd.xlane.f32.xlu0 %v3989
        %v4005 = vpop.xlane.xlu0 %4004
        %4006 = vadd.xlane.f32.xlu0 %v3991
        %v4007 = vpop.xlane.xlu0 %4006
        %v4008 = vpack.c.bf16 %v3979, %v3977
        %v4009 = vpack.c.bf16 %v3983, %v3981
        %v4010 = vpack.c.bf16 %v3987, %v3985
        %v4011 = vpack.c.bf16 %v3991, %v3989
        %4020 = vmatprep.subr.bf16.mxu0 0
        %4021 = vmatpush1.bf16.msra.mxu0 %v3850
        %4022 = vmatprep.subr.bf16.mxu0 0
        %4023 = vmatpush1.bf16.msra.mxu0 %v3848
        %4024 = vmatprep.subr.bf16.mxu0 0
        %4025 = vmatpush1.bf16.msra.mxu0 %v3846
        %4026 = vmatprep.subr.bf16.mxu0 0
        %4027 = vmatpush1.bf16.msra.mxu0 %v3844
        %4028 = vmatprep.subr.bf16.mxu0 0
        %4029 = vmatpush1.bf16.msra.mxu0 %v3842
        %4030 = vmatprep.subr.bf16.mxu0 0
        %4031 = vmatpush1.bf16.msra.mxu0 %v3840
        %4032 = vmatprep.subr.bf16.mxu0 0
        %4033 = vmatpush1.bf16.msra.mxu0 %v3838
        %4034 = vmatprep.subr.bf16.mxu0 0
        %4035 = vmatpush1.bf16.msra.mxu0 %v3836
        %4036 = vmatprep.subr.bf16.mxu0 0
        %4037 = vmatpush2.bf16.msra.mxu0 0
        %4038 = vmatprep.subr.bf16.mxu0 0
        %4039 = vmatpush2.bf16.msra.mxu0 0
        %4040 = vmatprep.subr.bf16.mxu0 0
        %4041 = vmatpush2.bf16.msra.mxu0 0
        %4042 = vmatprep.subr.bf16.mxu0 0
        %4043 = vmatpush2.bf16.msra.mxu0 0
        %4044 = vmatprep.subr.bf16.mxu0 0
        %4045 = vmatpush2.bf16.msra.mxu0 0
        %4046 = vmatprep.subr.bf16.mxu0 0
        %4047 = vmatpush2.bf16.msra.mxu0 0
        %4048 = vmatprep.subr.bf16.mxu0 0
        %4049 = vmatpush2.bf16.msra.mxu0 0
        %4050 = vmatprep.subr.bf16.mxu0 0
        %4051 = vmatpush2.bf16.msra.mxu0 0
        %4052 = vmatprep.mubr.bf16.mxu0 0
        %4053 = vmatmul.mubr.bf16.gmra.mxu0 %v4008
        %v4054 = vpop.f32.mrf.mxu0
        %v4055 = vadd.f32 0.0, %v4054
        %v4056 = vpop.f32.mrf.mxu0
        %v4057 = vpop.f32.mrf.mxu0
        %v4058 = vadd.f32 0.0, %v4057
        %v4059 = vpop.f32.mrf.mxu0
        %4060 = vmatprep.mubr.bf16.mxu0 0
        %4061 = vmatmul.mubr.bf16.gmra.mxu0 %v4009
        %v4062 = vpop.f32.mrf.mxu0
        %v4063 = vadd.f32 0.0, %v4062
        %v4064 = vpop.f32.mrf.mxu0
        %v4065 = vpop.f32.mrf.mxu0
        %v4066 = vadd.f32 0.0, %v4065
        %v4067 = vpop.f32.mrf.mxu0
        %4068 = vmatprep.mubr.bf16.mxu0 0
        %4069 = vmatmul.mubr.bf16.gmra.mxu0 %v4010
        %v4070 = vpop.f32.mrf.mxu0
        %v4071 = vadd.f32 0.0, %v4070
        %v4072 = vpop.f32.mrf.mxu0
        %v4073 = vpop.f32.mrf.mxu0
        %v4074 = vadd.f32 0.0, %v4073
        %v4075 = vpop.f32.mrf.mxu0
        %4076 = vmatprep.mubr.bf16.mxu0 0
        %4077 = vmatmul.mubr.bf16.gmra.mxu0 %v4011
        %v4078 = vpop.f32.mrf.mxu0
        %v4079 = vadd.f32 0.0, %v4078
        %v4080 = vpop.f32.mrf.mxu0
        %v4081 = vpop.f32.mrf.mxu0
        %v4082 = vadd.f32 0.0, %v4081
        %v4083 = vpop.f32.mrf.mxu0
        %4084 = vdwg.mxu0
        %v4085 = vrcp.pop %v3993
        %v4086 = vrcp.pop %v3995
        %v4087 = vrcp.pop %v3997
        %v4088 = vrcp.pop %v3999
        %v4089 = vrcp.pop %v4001
        %v4090 = vrcp.pop %v4003
        %v4091 = vrcp.pop %v4005
        %v4092 = vrcp.pop %v4007
        %v4093 = vmul.f32 %v4055, %v4085
        %v4094 = vmul.f32 %v4058, %v4086
        %v4095 = vmul.f32 %v4063, %v4087
        %v4096 = vmul.f32 %v4066, %v4088
        %v4097 = vmul.f32 %v4071, %v4089
        %v4098 = vmul.f32 %v4074, %v4090
        %v4099 = vmul.f32 %v4079, %v4091
        %v4100 = vmul.f32 %v4082, %v4092
        %v4101 = vpack.c.bf16 %v4094, %v4093
        %v4102 = vpack.c.bf16 %v4096, %v4095
        %v4103 = vpack.c.bf16 %v4098, %v4097
        %v4104 = vpack.c.bf16 %v4100, %v4099
        %v4109 = vunpack.c.l.b16 %v4101
        %v4110 = vunpack.c.h.b16 %v4101
        %v4111 = vunpack.c.l.b16 %v4102
        %v4112 = vunpack.c.h.b16 %v4102
        %v4113 = vunpack.c.l.b16 %v4103
        %v4114 = vunpack.c.h.b16 %v4103
        %v4115 = vunpack.c.l.b16 %v4104
        %v4116 = vunpack.c.h.b16 %v4104
        %v4117 = vpack.c.b16 %v4109, %v4109
        %v4118 = vpack.c.b16 %v4110, %v4110
        %v4119 = vpack.c.b16 %v4111, %v4111
        %v4120 = vpack.c.b16 %v4112, %v4112
        %v4121 = vpack.c.b16 %v4113, %v4113
        %v4122 = vpack.c.b16 %v4114, %v4114
        %v4123 = vpack.c.b16 %v4115, %v4115
        %v4124 = vpack.c.b16 %v4116, %v4116
        %4125 = vrot.lane.b32.xlu0 %v4117, 64
        %v4126 = vpop.permute.xlu0 %4125
        %4127 = vrot.lane.b32.xlu0 %v4118, 64
        %v4128 = vpop.permute.xlu0 %4127
        %4129 = vrot.lane.b32.xlu0 %v4119, 64
        %v4130 = vpop.permute.xlu0 %4129
        %4131 = vrot.lane.b32.xlu0 %v4120, 64
        %v4132 = vpop.permute.xlu0 %4131
        %4133 = vrot.lane.b32.xlu0 %v4121, 64
        %v4134 = vpop.permute.xlu0 %4133
        %4135 = vrot.lane.b32.xlu0 %v4122, 64
        %v4136 = vpop.permute.xlu0 %4135
        %4137 = vrot.lane.b32.xlu0 %v4123, 64
        %v4138 = vpop.permute.xlu0 %4137
        %4139 = vrot.lane.b32.xlu0 %v4124, 64
        %v4140 = vpop.permute.xlu0 %4139
        %4149 = vst.msk [vmem:[#allocation3 + $0xc] sm:$0xf] %vm1736, %v4126
        %4150 = vst.msk [vmem:[#allocation3 + $0x1c] sm:$0xf] %vm1736, %v4128
        %4151 = vst.msk [vmem:[#allocation3 + $0x2c] sm:$0xf] %vm1736, %v4130
        %4152 = vst.msk [vmem:[#allocation3 + $0x3c] sm:$0xf] %vm1736, %v4132
        %4153 = vst.msk [vmem:[#allocation3 + $0x4c] sm:$0xf] %vm1736, %v4134
        %4154 = vst.msk [vmem:[#allocation3 + $0x5c] sm:$0xf] %vm1736, %v4136
        %4155 = vst.msk [vmem:[#allocation3 + $0x6c] sm:$0xf] %vm1736, %v4138
        %4156 = vst.msk [vmem:[#allocation3 + $0x7c] sm:$0xf] %vm1736, %v4140
        %v4157 = vld [vmem:[#allocation3] sm:$0xff]
        %v4158 = vld [vmem:[#allocation3 + $0x8] sm:$0xff]
        %v4159 = vld [vmem:[#allocation3 + $0x10] sm:$0xff]
        %v4160 = vld [vmem:[#allocation3 + $0x18] sm:$0xff]
        %v4161 = vld [vmem:[#allocation3 + $0x20] sm:$0xff]
        %v4162 = vld [vmem:[#allocation3 + $0x28] sm:$0xff]
        %v4163 = vld [vmem:[#allocation3 + $0x30] sm:$0xff]
        %v4164 = vld [vmem:[#allocation3 + $0x38] sm:$0xff]
        %v4165 = vld [vmem:[#allocation3 + $0x40] sm:$0xff]
        %v4166 = vld [vmem:[#allocation3 + $0x48] sm:$0xff]
        %v4167 = vld [vmem:[#allocation3 + $0x50] sm:$0xff]
        %v4168 = vld [vmem:[#allocation3 + $0x58] sm:$0xff]
        %v4169 = vld [vmem:[#allocation3 + $0x60] sm:$0xff]
        %v4170 = vld [vmem:[#allocation3 + $0x68] sm:$0xff]
        %v4171 = vld [vmem:[#allocation3 + $0x70] sm:$0xff]
        %v4172 = vld [vmem:[#allocation3 + $0x78] sm:$0xff]
        %v4173 = vld [vmem:[#allocation9] sm:$0xf]
        %v4174 = vld [vmem:[#allocation9 + $0x4] sm:$0xf]
        %v4175 = vld [vmem:[#allocation9 + $0x8] sm:$0xf]
        %v4176 = vld [vmem:[#allocation9 + $0xc] sm:$0xf]
        %v4177 = vld [vmem:[#allocation9 + $0x10] sm:$0xf]
        %v4178 = vld [vmem:[#allocation9 + $0x14] sm:$0xf]
        %v4179 = vld [vmem:[#allocation9 + $0x18] sm:$0xf]
        %v4180 = vld [vmem:[#allocation9 + $0x1c] sm:$0xf]
        %v4181 = vld [vmem:[#allocation9 + $0x20] sm:$0xf]
        %v4182 = vld [vmem:[#allocation9 + $0x24] sm:$0xf]
        %v4183 = vld [vmem:[#allocation9 + $0x28] sm:$0xf]
        %v4184 = vld [vmem:[#allocation9 + $0x2c] sm:$0xf]
        %v4185 = vld [vmem:[#allocation9 + $0x30] sm:$0xf]
        %v4186 = vld [vmem:[#allocation9 + $0x34] sm:$0xf]
        %v4187 = vld [vmem:[#allocation9 + $0x38] sm:$0xf]
        %v4188 = vld [vmem:[#allocation9 + $0x3c] sm:$0xf]
        %v4189 = vld [vmem:[#allocation9 + $0x40] sm:$0xf]
        %v4190 = vld [vmem:[#allocation9 + $0x44] sm:$0xf]
        %v4191 = vld [vmem:[#allocation9 + $0x48] sm:$0xf]
        %v4192 = vld [vmem:[#allocation9 + $0x4c] sm:$0xf]
        %v4193 = vld [vmem:[#allocation9 + $0x50] sm:$0xf]
        %v4194 = vld [vmem:[#allocation9 + $0x54] sm:$0xf]
        %v4195 = vld [vmem:[#allocation9 + $0x58] sm:$0xf]
        %v4196 = vld [vmem:[#allocation9 + $0x5c] sm:$0xf]
        %v4197 = vld [vmem:[#allocation9 + $0x60] sm:$0xf]
        %v4198 = vld [vmem:[#allocation9 + $0x64] sm:$0xf]
        %v4199 = vld [vmem:[#allocation9 + $0x68] sm:$0xf]
        %v4200 = vld [vmem:[#allocation9 + $0x6c] sm:$0xf]
        %v4201 = vld [vmem:[#allocation9 + $0x70] sm:$0xf]
        %v4202 = vld [vmem:[#allocation9 + $0x74] sm:$0xf]
        %v4203 = vld [vmem:[#allocation9 + $0x78] sm:$0xf]
        %v4204 = vld [vmem:[#allocation9 + $0x7c] sm:$0xf]
        %v4205 = vld [vmem:[#allocation9 + $0x80] sm:$0xf]
        %v4206 = vld [vmem:[#allocation9 + $0x84] sm:$0xf]
        %v4207 = vld [vmem:[#allocation9 + $0x88] sm:$0xf]
        %v4208 = vld [vmem:[#allocation9 + $0x8c] sm:$0xf]
        %v4209 = vld [vmem:[#allocation9 + $0x90] sm:$0xf]
        %v4210 = vld [vmem:[#allocation9 + $0x94] sm:$0xf]
        %v4211 = vld [vmem:[#allocation9 + $0x98] sm:$0xf]
        %v4212 = vld [vmem:[#allocation9 + $0x9c] sm:$0xf]
        %v4213 = vld [vmem:[#allocation9 + $0xa0] sm:$0xf]
        %v4214 = vld [vmem:[#allocation9 + $0xa4] sm:$0xf]
        %v4215 = vld [vmem:[#allocation9 + $0xa8] sm:$0xf]
        %v4216 = vld [vmem:[#allocation9 + $0xac] sm:$0xf]
        %v4217 = vld [vmem:[#allocation9 + $0xb0] sm:$0xf]
        %v4218 = vld [vmem:[#allocation9 + $0xb4] sm:$0xf]
        %v4219 = vld [vmem:[#allocation9 + $0xb8] sm:$0xf]
        %v4220 = vld [vmem:[#allocation9 + $0xbc] sm:$0xf]
        %v4221 = vld [vmem:[#allocation9 + $0xc0] sm:$0xf]
        %v4222 = vld [vmem:[#allocation9 + $0xc4] sm:$0xf]
        %v4223 = vld [vmem:[#allocation9 + $0xc8] sm:$0xf]
        %v4224 = vld [vmem:[#allocation9 + $0xcc] sm:$0xf]
        %v4225 = vld [vmem:[#allocation9 + $0xd0] sm:$0xf]
        %v4226 = vld [vmem:[#allocation9 + $0xd4] sm:$0xf]
        %v4227 = vld [vmem:[#allocation9 + $0xd8] sm:$0xf]
        %v4228 = vld [vmem:[#allocation9 + $0xdc] sm:$0xf]
        %v4229 = vld [vmem:[#allocation9 + $0xe0] sm:$0xf]
        %v4230 = vld [vmem:[#allocation9 + $0xe4] sm:$0xf]
        %v4231 = vld [vmem:[#allocation9 + $0xe8] sm:$0xf]
        %v4232 = vld [vmem:[#allocation9 + $0xec] sm:$0xf]
        %v4233 = vld [vmem:[#allocation9 + $0xf0] sm:$0xf]
        %v4234 = vld [vmem:[#allocation9 + $0xf4] sm:$0xf]
        %v4235 = vld [vmem:[#allocation9 + $0xf8] sm:$0xf]
        %v4236 = vld [vmem:[#allocation9 + $0xfc] sm:$0xf]
        %v4237 = vld [vmem:[%s3] sm:$0x1]
        %v4239 = vlaneseq
        %v4240 = vshrl.u32 %v4239, 7
        %v4241 = vsub.s32 0, %v4240
        %v4242 = vrot.slane %v4237, %v4241
        %v4260 = vunpack.c.l.b16 %v4157
        %v4261 = vunpack.c.h.b16 %v4157
        %v4262 = vunpack.c.l.b16 %v4158
        %v4263 = vunpack.c.h.b16 %v4158
        %v4264 = vunpack.c.l.b16 %v4159
        %v4265 = vunpack.c.h.b16 %v4159
        %v4266 = vunpack.c.l.b16 %v4160
        %v4267 = vunpack.c.h.b16 %v4160
        %v4268 = vunpack.c.l.b16 %v4161
        %v4269 = vunpack.c.h.b16 %v4161
        %v4270 = vunpack.c.l.b16 %v4162
        %v4271 = vunpack.c.h.b16 %v4162
        %v4272 = vunpack.c.l.b16 %v4163
        %v4273 = vunpack.c.h.b16 %v4163
        %v4274 = vunpack.c.l.b16 %v4164
        %v4275 = vunpack.c.h.b16 %v4164
        %v4276 = vunpack.c.l.b16 %v4165
        %v4277 = vunpack.c.h.b16 %v4165
        %v4278 = vunpack.c.l.b16 %v4166
        %v4279 = vunpack.c.h.b16 %v4166
        %v4280 = vunpack.c.l.b16 %v4167
        %v4281 = vunpack.c.h.b16 %v4167
        %v4282 = vunpack.c.l.b16 %v4168
        %v4283 = vunpack.c.h.b16 %v4168
        %v4284 = vunpack.c.l.b16 %v4169
        %v4285 = vunpack.c.h.b16 %v4169
        %v4286 = vunpack.c.l.b16 %v4170
        %v4287 = vunpack.c.h.b16 %v4170
        %v4288 = vunpack.c.l.b16 %v4171
        %v4289 = vunpack.c.h.b16 %v4171
        %v4290 = vunpack.c.l.b16 %v4172
        %v4291 = vunpack.c.h.b16 %v4172
        %v4292 = vpack.c.b16 %v4264, %v4260
        %v4293 = vpack.c.b16 %v4265, %v4261
        %v4294 = vpack.c.b16 %v4266, %v4262
        %v4295 = vpack.c.b16 %v4267, %v4263
        %v4296 = vpack.c.b16 %v4272, %v4268
        %v4297 = vpack.c.b16 %v4273, %v4269
        %v4298 = vpack.c.b16 %v4274, %v4270
        %v4299 = vpack.c.b16 %v4275, %v4271
        %v4300 = vpack.c.b16 %v4280, %v4276
        %v4301 = vpack.c.b16 %v4281, %v4277
        %v4302 = vpack.c.b16 %v4282, %v4278
        %v4303 = vpack.c.b16 %v4283, %v4279
        %v4304 = vpack.c.b16 %v4288, %v4284
        %v4305 = vpack.c.b16 %v4289, %v4285
        %v4306 = vpack.c.b16 %v4290, %v4286
        %v4307 = vpack.c.b16 %v4291, %v4287
        %v4388 = vunpack.c.l.b16 %v4173
        %v4389 = vunpack.c.l.b16 %v4174
        %v4390 = vunpack.c.l.b16 %v4175
        %v4391 = vunpack.c.l.b16 %v4176
        %v4392 = vunpack.c.l.b16 %v4177
        %v4393 = vunpack.c.l.b16 %v4178
        %v4394 = vunpack.c.l.b16 %v4179
        %v4395 = vunpack.c.l.b16 %v4180
        %v4396 = vunpack.c.l.b16 %v4181
        %v4397 = vunpack.c.l.b16 %v4182
        %v4398 = vunpack.c.l.b16 %v4183
        %v4399 = vunpack.c.l.b16 %v4184
        %v4400 = vunpack.c.l.b16 %v4185
        %v4401 = vunpack.c.l.b16 %v4186
        %v4402 = vunpack.c.l.b16 %v4187
        %v4403 = vunpack.c.l.b16 %v4188
        %v4404 = vunpack.c.l.b16 %v4189
        %v4405 = vunpack.c.l.b16 %v4190
        %v4406 = vunpack.c.l.b16 %v4191
        %v4407 = vunpack.c.l.b16 %v4192
        %v4408 = vunpack.c.l.b16 %v4193
        %v4409 = vunpack.c.l.b16 %v4194
        %v4410 = vunpack.c.l.b16 %v4195
        %v4411 = vunpack.c.l.b16 %v4196
        %v4412 = vunpack.c.l.b16 %v4197
        %v4413 = vunpack.c.l.b16 %v4198
        %v4414 = vunpack.c.l.b16 %v4199
        %v4415 = vunpack.c.l.b16 %v4200
        %v4416 = vunpack.c.l.b16 %v4201
        %v4417 = vunpack.c.l.b16 %v4202
        %v4418 = vunpack.c.l.b16 %v4203
        %v4419 = vunpack.c.l.b16 %v4204
        %v4420 = vunpack.c.l.b16 %v4205
        %v4421 = vunpack.c.l.b16 %v4206
        %v4422 = vunpack.c.l.b16 %v4207
        %v4423 = vunpack.c.l.b16 %v4208
        %v4424 = vunpack.c.l.b16 %v4209
        %v4425 = vunpack.c.l.b16 %v4210
        %v4426 = vunpack.c.l.b16 %v4211
        %v4427 = vunpack.c.l.b16 %v4212
        %v4428 = vunpack.c.l.b16 %v4213
        %v4429 = vunpack.c.l.b16 %v4214
        %v4430 = vunpack.c.l.b16 %v4215
        %v4431 = vunpack.c.l.b16 %v4216
        %v4432 = vunpack.c.l.b16 %v4217
        %v4433 = vunpack.c.l.b16 %v4218
        %v4434 = vunpack.c.l.b16 %v4219
        %v4435 = vunpack.c.l.b16 %v4220
        %v4436 = vunpack.c.l.b16 %v4221
        %v4437 = vunpack.c.l.b16 %v4222
        %v4438 = vunpack.c.l.b16 %v4223
        %v4439 = vunpack.c.l.b16 %v4224
        %v4440 = vunpack.c.l.b16 %v4225
        %v4441 = vunpack.c.l.b16 %v4226
        %v4442 = vunpack.c.l.b16 %v4227
        %v4443 = vunpack.c.l.b16 %v4228
        %v4444 = vunpack.c.l.b16 %v4229
        %v4445 = vunpack.c.l.b16 %v4230
        %v4446 = vunpack.c.l.b16 %v4231
        %v4447 = vunpack.c.l.b16 %v4232
        %v4448 = vunpack.c.l.b16 %v4233
        %v4449 = vunpack.c.l.b16 %v4234
        %v4450 = vunpack.c.l.b16 %v4235
        %v4451 = vunpack.c.l.b16 %v4236
        %v4452 = vpack.c.b16 %v4389, %v4388
        %v4453 = vpack.c.b16 %v4391, %v4390
        %v4454 = vpack.c.b16 %v4393, %v4392
        %v4455 = vpack.c.b16 %v4395, %v4394
        %v4456 = vpack.c.b16 %v4397, %v4396
        %v4457 = vpack.c.b16 %v4399, %v4398
        %v4458 = vpack.c.b16 %v4401, %v4400
        %v4459 = vpack.c.b16 %v4403, %v4402
        %v4460 = vpack.c.b16 %v4405, %v4404
        %v4461 = vpack.c.b16 %v4407, %v4406
        %v4462 = vpack.c.b16 %v4409, %v4408
        %v4463 = vpack.c.b16 %v4411, %v4410
        %v4464 = vpack.c.b16 %v4413, %v4412
        %v4465 = vpack.c.b16 %v4415, %v4414
        %v4466 = vpack.c.b16 %v4417, %v4416
        %v4467 = vpack.c.b16 %v4419, %v4418
        %v4468 = vpack.c.b16 %v4421, %v4420
        %v4469 = vpack.c.b16 %v4423, %v4422
        %v4470 = vpack.c.b16 %v4425, %v4424
        %v4471 = vpack.c.b16 %v4427, %v4426
        %v4472 = vpack.c.b16 %v4429, %v4428
        %v4473 = vpack.c.b16 %v4431, %v4430
        %v4474 = vpack.c.b16 %v4433, %v4432
        %v4475 = vpack.c.b16 %v4435, %v4434
        %v4476 = vpack.c.b16 %v4437, %v4436
        %v4477 = vpack.c.b16 %v4439, %v4438
        %v4478 = vpack.c.b16 %v4441, %v4440
        %v4479 = vpack.c.b16 %v4443, %v4442
        %v4480 = vpack.c.b16 %v4445, %v4444
        %v4481 = vpack.c.b16 %v4447, %v4446
        %v4482 = vpack.c.b16 %v4449, %v4448
        %v4483 = vpack.c.b16 %v4451, %v4450
        %4516 = vmatprep.subr.bf16.mxu0 0
        %4517 = vmatpush1.bf16.msra.mxu0 %v4459
        %4518 = vmatprep.subr.bf16.mxu0 0
        %4519 = vmatpush1.bf16.msra.mxu0 %v4458
        %4520 = vmatprep.subr.bf16.mxu0 0
        %4521 = vmatpush1.bf16.msra.mxu0 %v4457
        %4522 = vmatprep.subr.bf16.mxu0 0
        %4523 = vmatpush1.bf16.msra.mxu0 %v4456
        %4524 = vmatprep.subr.bf16.mxu0 0
        %4525 = vmatpush1.bf16.msra.mxu0 %v4455
        %4526 = vmatprep.subr.bf16.mxu0 0
        %4527 = vmatpush1.bf16.msra.mxu0 %v4454
        %4528 = vmatprep.subr.bf16.mxu0 0
        %4529 = vmatpush1.bf16.msra.mxu0 %v4453
        %4530 = vmatprep.subr.bf16.mxu0 0
        %4531 = vmatpush1.bf16.msra.mxu0 %v4452
        %4532 = vmatprep.subr.bf16.mxu0 0
        %4533 = vmatpush2.bf16.msra.mxu0 %v4467
        %4534 = vmatprep.subr.bf16.mxu0 0
        %4535 = vmatpush2.bf16.msra.mxu0 %v4466
        %4536 = vmatprep.subr.bf16.mxu0 0
        %4537 = vmatpush2.bf16.msra.mxu0 %v4465
        %4538 = vmatprep.subr.bf16.mxu0 0
        %4539 = vmatpush2.bf16.msra.mxu0 %v4464
        %4540 = vmatprep.subr.bf16.mxu0 0
        %4541 = vmatpush2.bf16.msra.mxu0 %v4463
        %4542 = vmatprep.subr.bf16.mxu0 0
        %4543 = vmatpush2.bf16.msra.mxu0 %v4462
        %4544 = vmatprep.subr.bf16.mxu0 0
        %4545 = vmatpush2.bf16.msra.mxu0 %v4461
        %4546 = vmatprep.subr.bf16.mxu0 0
        %4547 = vmatpush2.bf16.msra.mxu0 %v4460
        %4548 = vmatprep.mubr.bf16.mxu0 %v4293
        %4549 = vmatmul.mubr.bf16.gmra.mxu0 %v4292
        %v4550 = vpop.f32.mrf.mxu0
        %v4551 = vadd.f32 %v4242, %v4550
        %v4552 = vpop.f32.mrf.mxu0
        %v4553 = vpop.f32.mrf.mxu0
        %v4554 = vadd.f32 %v4242, %v4553
        %v4555 = vpop.f32.mrf.mxu0
        %4556 = vmatprep.mubr.bf16.mxu0 %v4297
        %4557 = vmatmul.mubr.bf16.gmra.mxu0 %v4296
        %v4558 = vpop.f32.mrf.mxu0
        %v4559 = vadd.f32 %v4242, %v4558
        %v4560 = vpop.f32.mrf.mxu0
        %v4561 = vpop.f32.mrf.mxu0
        %v4562 = vadd.f32 %v4242, %v4561
        %v4563 = vpop.f32.mrf.mxu0
        %4564 = vmatprep.mubr.bf16.mxu0 %v4301
        %4565 = vmatmul.mubr.bf16.gmra.mxu0 %v4300
        %v4566 = vpop.f32.mrf.mxu0
        %v4567 = vadd.f32 %v4242, %v4566
        %v4568 = vpop.f32.mrf.mxu0
        %v4569 = vpop.f32.mrf.mxu0
        %v4570 = vadd.f32 %v4242, %v4569
        %v4571 = vpop.f32.mrf.mxu0
        %4572 = vmatprep.mubr.bf16.mxu0 %v4305
        %4573 = vmatmul.mubr.bf16.gmra.mxu0 %v4304
        %v4574 = vpop.f32.mrf.mxu0
        %v4575 = vadd.f32 %v4242, %v4574
        %v4576 = vpop.f32.mrf.mxu0
        %v4577 = vpop.f32.mrf.mxu0
        %v4578 = vadd.f32 %v4242, %v4577
        %v4579 = vpop.f32.mrf.mxu0
        %4580 = vdwg.mxu0
        %4581 = vmatprep.subr.bf16.mxu0 0
        %4582 = vmatpush1.bf16.msra.mxu0 %v4475
        %4583 = vmatprep.subr.bf16.mxu0 0
        %4584 = vmatpush1.bf16.msra.mxu0 %v4474
        %4585 = vmatprep.subr.bf16.mxu0 0
        %4586 = vmatpush1.bf16.msra.mxu0 %v4473
        %4587 = vmatprep.subr.bf16.mxu0 0
        %4588 = vmatpush1.bf16.msra.mxu0 %v4472
        %4589 = vmatprep.subr.bf16.mxu0 0
        %4590 = vmatpush1.bf16.msra.mxu0 %v4471
        %4591 = vmatprep.subr.bf16.mxu0 0
        %4592 = vmatpush1.bf16.msra.mxu0 %v4470
        %4593 = vmatprep.subr.bf16.mxu0 0
        %4594 = vmatpush1.bf16.msra.mxu0 %v4469
        %4595 = vmatprep.subr.bf16.mxu0 0
        %4596 = vmatpush1.bf16.msra.mxu0 %v4468
        %4597 = vmatprep.subr.bf16.mxu0 0
        %4598 = vmatpush2.bf16.msra.mxu0 %v4483
        %4599 = vmatprep.subr.bf16.mxu0 0
        %4600 = vmatpush2.bf16.msra.mxu0 %v4482
        %4601 = vmatprep.subr.bf16.mxu0 0
        %4602 = vmatpush2.bf16.msra.mxu0 %v4481
        %4603 = vmatprep.subr.bf16.mxu0 0
        %4604 = vmatpush2.bf16.msra.mxu0 %v4480
        %4605 = vmatprep.subr.bf16.mxu0 0
        %4606 = vmatpush2.bf16.msra.mxu0 %v4479
        %4607 = vmatprep.subr.bf16.mxu0 0
        %4608 = vmatpush2.bf16.msra.mxu0 %v4478
        %4609 = vmatprep.subr.bf16.mxu0 0
        %4610 = vmatpush2.bf16.msra.mxu0 %v4477
        %4611 = vmatprep.subr.bf16.mxu0 0
        %4612 = vmatpush2.bf16.msra.mxu0 %v4476
        %4613 = vmatprep.mubr.bf16.mxu0 %v4295
        %4614 = vmatmul.mubr.bf16.gmra.mxu0 %v4294
        %v4615 = vpop.f32.mrf.mxu0
        %v4616 = vadd.f32 %v4551, %v4615
        %v4617 = vpop.f32.mrf.mxu0
        %v4618 = vpop.f32.mrf.mxu0
        %v4619 = vadd.f32 %v4554, %v4618
        %v4620 = vpop.f32.mrf.mxu0
        %4621 = vmatprep.mubr.bf16.mxu0 %v4299
        %4622 = vmatmul.mubr.bf16.gmra.mxu0 %v4298
        %v4623 = vpop.f32.mrf.mxu0
        %v4624 = vadd.f32 %v4559, %v4623
        %v4625 = vpop.f32.mrf.mxu0
        %v4626 = vpop.f32.mrf.mxu0
        %v4627 = vadd.f32 %v4562, %v4626
        %v4628 = vpop.f32.mrf.mxu0
        %4629 = vmatprep.mubr.bf16.mxu0 %v4303
        %4630 = vmatmul.mubr.bf16.gmra.mxu0 %v4302
        %v4631 = vpop.f32.mrf.mxu0
        %v4632 = vadd.f32 %v4567, %v4631
        %v4633 = vpop.f32.mrf.mxu0
        %v4634 = vpop.f32.mrf.mxu0
        %v4635 = vadd.f32 %v4570, %v4634
        %v4636 = vpop.f32.mrf.mxu0
        %4637 = vmatprep.mubr.bf16.mxu0 %v4307
        %4638 = vmatmul.mubr.bf16.gmra.mxu0 %v4306
        %v4639 = vpop.f32.mrf.mxu0
        %v4640 = vadd.f32 %v4575, %v4639
        %v4641 = vpop.f32.mrf.mxu0
        %v4642 = vpop.f32.mrf.mxu0
        %v4643 = vadd.f32 %v4578, %v4642
        %v4644 = vpop.f32.mrf.mxu0
        %4645 = vdwg.mxu0
        %4646 = vst [vmem:[%s258] sm:$0xff] %v4616
        %4647 = vst [vmem:[%s258 + $0x8] sm:$0xff] %v4619
        %4648 = vst [vmem:[%s258 + $0x10] sm:$0xff] %v4624
        %4649 = vst [vmem:[%s258 + $0x18] sm:$0xff] %v4627
        %4650 = vst [vmem:[%s258 + $0x20] sm:$0xff] %v4632
        %4651 = vst [vmem:[%s258 + $0x28] sm:$0xff] %v4635
        %4652 = vst [vmem:[%s258 + $0x30] sm:$0xff] %v4640
        %4653 = vst [vmem:[%s258 + $0x38] sm:$0xff] %v4643
        %s4654 = sand.u32 %s133, 1
        %s4655 = scalar_lea.sflag [#allocation6], %s4654
        %s4656 = sand.u32 %s133, 1
        %s4657 = smul.addr %s4656, 64
        %s4658 = scalar_lea.vmem [#allocation10], %s4657
        // Predicated region
        $region53: #{tpu_custom_call.1} parent=35 // pred_check
          %p4659 = pneg %p143
        $region54: #{tpu_custom_call.1} parent=35 // pred_check_branch
          %4661 = sbr.rel (%p4659) target = $region56
        $region55: #{tpu_custom_call.1} parent=35 // pred_region
          %s4662 = smul.u32 8, %s27
          %s4664 = ssub.s32 1024, 1024
          %4665 = vsyncadd %s4655, %s4664
          %s4666 = smul.addr %s26, 16
          %s4667 = sadd.s32 %s4662, %s4666
          %s4668 = smul.addr %s4667, 128
          %s4669 = scalar_lea.hbm %s4, %s4668
          %s4670 = sshll.u32 %s4658, 4
          %s4671 = int_to_ptr.vmem [resolvable:$true] %s4670
          %4676 = dma.vmem_to_hbm [thread:$0]  %s4671, 1024, %s4669, %s4655, 128, 128, 8
        $region56: #{tpu_custom_call.1} parent=35 // pred_fallthru
          _
      $region36: #{tpu_custom_call.1} parent=5 // pred_fallthru
        _
      %p4677 = scmp.le.s32.totalorder 2, %s17
      // Predicated region
      $region57: #{tpu_custom_call.1} parent=5 // pred_check
        %p4678 = pneg %p4677
      $region58: #{tpu_custom_call.1} parent=5 // pred_check_branch
        %4680 = sbr.rel (%p4678) target = $region60
      $region59: #{tpu_custom_call.1} parent=5 // pred_region
        %s4681 = ssub.s32 %s17, 2
        // Predicated region
        $region61: #{tpu_custom_call.1} parent=59 // pred_check
          %p4682 = pneg %p149
        $region62: #{tpu_custom_call.1} parent=59 // pred_check_branch
          %4684 = sbr.rel (%p4682) target = $region64
        $region63: #{tpu_custom_call.1} parent=59 // pred_region
          %s4685 = sand.u32 %s134, 1
          %s4686 = scalar_lea.sflag [#allocation6], %s4685
          %s4687 = sand.u32 %s134, 1
          %s4688 = smul.addr %s4687, 64
          %s4689 = scalar_lea.vmem [#allocation10], %s4688
          %4690 = dma.done %s4686, 1024
        $region64: #{tpu_custom_call.1} parent=59 // pred_fallthru
          _
      $region60: #{tpu_custom_call.1} parent=5 // pred_fallthru
        _
    $region6: #{tpu_custom_call.1} parent=1 // loop_footer
      %s21 = sadd.s32 1, %s17
    $region7: #{tpu_custom_call.1} parent=1 // loop_footer_branch
      %16 = sbr.rel target = $region3
    $region8: #{tpu_custom_call.1} parent=1 // loop_exit
      _
    %4691 = vsyncpa [#allocation5], 1
    %s4692 = scalar_lea.sflag [#allocation5], 1
    %4693 = vsyncpa %s4692, 1
    %4694 = vsyncpa [#allocation8], 1
    %4695 = vsyncpa [#allocation6], 1
    %s4696 = scalar_lea.sflag [#allocation6], 1
    %4697 = vsyncpa %s4696, 1

</llo_original>
